<compile_context>
chip_gen: v6e
topology: v6e:2x2x1
jax: 0.10.0
libtpu: 0.0.40
codegen_flags: <defaults>
</compile_context>

<pallas_src>
import jax
import jax.numpy as jnp
from jax.experimental import pallas as pl
from jax.experimental.pallas import tpu as pltpu


_VMEM_LIMIT_BYTES = 48 * 1024 * 1024   # > 16/32 MiB default scoped, < v7x 64 MiB physical
_VMEM_BLOCK_BUDGET = 20 * 1024 * 1024  # target working-set for the window-blocked tiles


# ---------------------------------------------------------------------------
# Fused kernel: QKV projection + windowed MHSA + output projection
#   x block:  (wb, N, C)   bf16 activations
#   w_qkv:    (C, 3C)      bf16, q columns pre-scaled by head_dim**-0.5
#   b_qkv:    (1, 3C)      f32, q part pre-scaled
#   bias:     (H, N, N)    f32 dense relative-position bias (host-gathered)
#   w_proj:   (H, D, C)    bf16, head-major split of the proj weight
#   b_proj:   (1, C)       f32
#   out:      (wb, N, C)
# ---------------------------------------------------------------------------
def _make_wmsa_kernel(num_heads, head_dim, wb, n_tokens):
    C = num_heads * head_dim
    N = n_tokens

    def kernel(x_ref, wqkv_ref, bqkv_ref, bias_ref, wproj_ref, bproj_ref, out_ref):
        # ---- fused QKV projection: one lane-dense bf16 MXU matmul ----
        x2d = x_ref[...].reshape(wb * N, C)                           # bf16
        qkv = jnp.dot(x2d, wqkv_ref[...],
                      preferred_element_type=jnp.float32)             # (wb*N, 3C) f32
        qkv = qkv + bqkv_ref[...]                                     # q already scaled

        acc = jnp.zeros((wb * N, C), jnp.float32)
        # Static unroll over heads (H is small for Swin-style blocks); per-head
        # temporaries die after each iteration, only `acc` carries.
        for h in range(num_heads):
            lo = h * head_dim
            q = qkv[:, lo:lo + head_dim].reshape(wb, N, head_dim).astype(jnp.bfloat16)
            k = qkv[:, C + lo:C + lo + head_dim].reshape(wb, N, head_dim).astype(jnp.bfloat16)
            v = qkv[:, 2 * C + lo:2 * C + lo + head_dim].reshape(wb, N, head_dim).astype(jnp.bfloat16)

            # scores + relative-position bias, softmax in f32
            s = jnp.einsum("bnd,bmd->bnm", q, k,
                           preferred_element_type=jnp.float32)        # (wb, N, N)
            s = s + bias_ref[h][None]
            s = s - jnp.max(s, axis=-1, keepdims=True)
            p = jnp.exp(s)
            p = p * pl.reciprocal(jnp.sum(p, axis=-1, keepdims=True), approx=True)

            ctx = jnp.einsum("bnm,bmd->bnd", p.astype(jnp.bfloat16), v,
                             preferred_element_type=jnp.float32)      # (wb, N, D)

            # fused head-concat + output projection (flattened 2-D matmul):
            #   concat_h(ctx_h) @ Wp == sum_h ctx_h @ Wp[h*D:(h+1)*D, :]
            acc = acc + jnp.dot(ctx.reshape(wb * N, head_dim).astype(jnp.bfloat16),
                                wproj_ref[h],
                                preferred_element_type=jnp.float32)   # (wb*N, C)

        out = acc + bproj_ref[...]
        out_ref[...] = out.reshape(wb, N, C).astype(out_ref.dtype)

    return kernel


# ---------------------------------------------------------------------------
# Host-side helpers and wrapper
# ---------------------------------------------------------------------------
def make_relative_position_index(window_size):
    """Mirrors the PyTorch buffer computation (torch.meshgrid indexing='xy')."""
    Wh, Ww = window_size
    coords = jnp.stack(jnp.meshgrid(jnp.arange(Wh), jnp.arange(Ww), indexing="xy"))
    coords_flatten = coords.reshape(2, -1)                              # (2, N)
    rel = coords_flatten[:, :, None] - coords_flatten[:, None, :]       # (2, N, N)
    rel = rel.transpose(1, 2, 0)                                        # (N, N, 2)
    rel = rel.at[:, :, 0].add(Wh - 1)
    rel = rel.at[:, :, 1].add(Ww - 1)
    rel = rel.at[:, :, 0].multiply(2 * Ww - 1)
    return rel.sum(-1).astype(jnp.int32)                                # (N, N)


def _pick_window_block(B_, N, C):
    """VMEM-budgeted window block; keeps grid length >= 2 when possible."""
    # rough per-window f32 bytes: x in (2x buffered) + out (2x) + qkv temp + acc + scores
    per_win = 4 * N * (2 * C + 2 * C + 3 * C + C + 2 * N)
    cap = max(1, _VMEM_BLOCK_BUDGET // max(per_win, 1))
    if B_ >= 2:
        cap = min(cap, max(1, B_ // 2))   # >=2 grid steps: v7x dual TC + pipelining
    cap = min(cap, B_, 256)
    for wb in range(int(cap), 0, -1):
        if B_ % wb == 0:
            return wb
    return 1


def window_attention(x, w_qkv, b_qkv, w_proj, b_proj,
                     rel_bias_table, rel_pos_index, num_heads, qk_scale=None):
    """Forward pass of WindowAttention (mask=None, eval mode).

    x:              (B_, N, C)   windows
    w_qkv:          (C, 3C)      qkv Linear weight in matmul form (W.T)
    b_qkv:          (3C,)
    w_proj:         (C, C)       proj Linear weight in matmul form
    b_proj:         (C,)
    rel_bias_table: ((2Wh-1)*(2Ww-1), H)
    rel_pos_index:  (N, N) int32
    returns:        (B_, N, C)
    """
    B_, N, C = x.shape
    H = num_heads
    D = C // H
    scale = qk_scale if qk_scale is not None else D ** (-0.5)

    # ---- host-side parameter prep (one-time, O(params)) ----
    # fold the q scaling into the q-columns of the qkv weight / bias
    scale_vec = jnp.concatenate(
        [jnp.full((C,), scale, jnp.float32), jnp.ones((2 * C,), jnp.float32)])
    w_qkv_f = (w_qkv.astype(jnp.float32) * scale_vec[None, :]).astype(jnp.bfloat16)
    b_qkv_f = (b_qkv.astype(jnp.float32) * scale_vec).reshape(1, 3 * C)
    w_proj_hm = w_proj.reshape(H, D, C).astype(jnp.bfloat16)          # head-major
    b_proj_f = b_proj.astype(jnp.float32).reshape(1, C)
    # dense relative-position bias (H, N, N)
    rel_bias = rel_bias_table[rel_pos_index.reshape(-1)]
    rel_bias = rel_bias.reshape(N, N, H).transpose(2, 0, 1).astype(jnp.float32)

    x_bf = x.astype(jnp.bfloat16)

    wb = _pick_window_block(B_, N, C)
    grid = (B_ // wb,)
    cost = pl.CostEstimate(
        flops=B_ * (2 * N * C * 3 * C + 4 * N * N * C + 2 * N * C * C),
        transcendentals=B_ * H * N * N,
        bytes_accessed=(2 * B_ * N * C          # x bf16
                        + 2 * C * 3 * C         # qkv weight bf16
                        + 4 * 3 * C             # qkv bias
                        + 4 * H * N * N         # rel-pos bias
                        + 2 * H * D * C         # proj weight bf16
                        + 4 * C                 # proj bias
                        + 4 * B_ * N * C),      # output f32
    )

    out = pl.pallas_call(
        _make_wmsa_kernel(H, D, wb, N),
        out_shape=jax.ShapeDtypeStruct((B_, N, C), x.dtype),
        grid_spec=pltpu.PrefetchScalarGridSpec(
            num_scalar_prefetch=0,
            grid=grid,
            in_specs=[
                pl.BlockSpec((wb, N, C), lambda g: (g, 0, 0)),      # x, tiled on windows
                pl.BlockSpec((C, 3 * C), lambda g: (0, 0)),         # qkv weight, resident
                pl.BlockSpec((1, 3 * C), lambda g: (0, 0)),         # qkv bias, resident
                pl.BlockSpec((H, N, N), lambda g: (0, 0, 0)),       # rel-pos bias, resident
                pl.BlockSpec((H, D, C), lambda g: (0, 0, 0)),       # proj weight (head-major)
                pl.BlockSpec((1, C), lambda g: (0, 0)),             # proj bias
            ],
            out_specs=pl.BlockSpec((wb, N, C), lambda g: (g, 0, 0)),
        ),
        compiler_params=pltpu.CompilerParams(
            dimension_semantics=("parallel",),
            vmem_limit_bytes=_VMEM_LIMIT_BYTES),
        cost_estimate=cost,
    )(x_bf, w_qkv_f, b_qkv_f, rel_bias, w_proj_hm, b_proj_f)
    return out


# ---------------------------------------------------------------------------
# Pure-JAX reference (mirrors the PyTorch forward, mask=None, eval mode)
# ---------------------------------------------------------------------------
def _reference(x, w_qkv, b_qkv, w_proj, b_proj, rel_bias_table, rel_pos_index,
               num_heads, scale):
    B_, N, C = x.shape
    H, D = num_heads, C // num_heads
    hp = jax.lax.Precision.HIGHEST
    qkv = jnp.einsum("bnc,cf->bnf", x, w_qkv, precision=hp) + b_qkv
    qkv = qkv.reshape(B_, N, 3, H, D).transpose(2, 0, 3, 1, 4)
    q, k, v = qkv[0] * scale, qkv[1], qkv[2]
    attn = jnp.einsum("bhnd,bhmd->bhnm", q, k, precision=hp)
    rel_bias = rel_bias_table[rel_pos_index.reshape(-1)]
    rel_bias = rel_bias.reshape(N, N, H).transpose(2, 0, 1)
    attn = attn + rel_bias[None]
    attn = jax.nn.softmax(attn, axis=-1)
    ctx = jnp.einsum("bhnm,bhmd->bhnd", attn, v, precision=hp)
    ctx = ctx.transpose(0, 2, 1, 3).reshape(B_, N, C)
    return jnp.einsum("bnc,cf->bnf", ctx, w_proj, precision=hp) + b_proj


if __name__ == "__main__":
    # small shapes consistent with the module:
    #   window_size=(4,4) -> N=16, dim=32, num_heads=4, B_ = num_windows*B = 8
    B_ = 8
    window_size = (4, 4)
    N = window_size[0] * window_size[1]
    C = 32
    H = 4
    D = C // H
    scale = D ** (-0.5)

    key = jax.random.PRNGKey(0)
    kx, kw1, kb1, kw2, kb2, kt = jax.random.split(key, 6)
    x = jax.random.normal(kx, (B_, N, C), dtype=jnp.float32)
    # nn.Linear weights stored in matmul form (in_features, out_features) = W.T
    w_qkv = jax.random.normal(kw1, (C, 3 * C), dtype=jnp.float32) * 0.1
    b_qkv = jax.random.normal(kb1, (3 * C,), dtype=jnp.float32) * 0.1
    w_proj = jax.random.normal(kw2, (C, C), dtype=jnp.float32) * 0.1
    b_proj = jax.random.normal(kb2, (C,), dtype=jnp.float32) * 0.1
    n_rel = (2 * window_size[0] - 1) * (2 * window_size[1] - 1)
    # PyTorch init is trunc_normal(std=0.02); deterministic normal*0.02 here.
    rel_table = jax.random.normal(kt, (n_rel, H), dtype=jnp.float32) * 0.02

    rel_idx = make_relative_position_index(window_size)

    out = window_attention(x, w_qkv, b_qkv, w_proj, b_proj, rel_table, rel_idx, H)
    out = jax.block_until_ready(out)

    ref = _reference(x, w_qkv, b_qkv, w_proj, b_proj, rel_table, rel_idx, H, scale)
    assert out.shape == (B_, N, C)
    # bf16 MXU operands (f32 accumulation, f32 softmax) vs. the f32 HIGHEST-
    # precision XLA reference: expect O(1e-2) absolute differences at these scales.
    max_err = float(jnp.max(jnp.abs(out - ref)))
    assert jnp.allclose(out, ref, atol=5e-2, rtol=5e-2), f"mismatch, max_err={max_err}"
    print("KERNEL_OK")
</pallas_src>

<mosaic_0001>
module attributes {stable_mosaic.version = 11 : i64} {
  func.func @kernel(%arg0: i32, %arg1: memref<4x16x32xbf16, #tpu.memory_space<vmem>>, %arg2: memref<32x96xbf16, #tpu.memory_space<vmem>>, %arg3: memref<1x96xf32, #tpu.memory_space<vmem>>, %arg4: memref<4x16x16xf32, #tpu.memory_space<vmem>>, %arg5: memref<4x8x32xbf16, #tpu.memory_space<vmem>>, %arg6: memref<1x32xf32, #tpu.memory_space<vmem>>, %arg7: memref<4x16x32xf32, #tpu.memory_space<vmem>>) attributes {dimension_semantics = [#tpu.dimension_semantics<parallel>], iteration_bounds = array<i64: 2>, scalar_prefetch = 0 : i64, scratch_operands = 0 : i64, tpu.core_type = #tpu.core_type<tc>, window_params = [{transform_indices = @transform_0, window_bounds = array<i64: 4, 16, 32>}, {pipeline_mode = #tpu.pipeline_mode<synchronous>, transform_indices = @transform_1, window_bounds = array<i64: 32, 96>}, {pipeline_mode = #tpu.pipeline_mode<synchronous>, transform_indices = @transform_2, window_bounds = array<i64: 1, 96>}, {pipeline_mode = #tpu.pipeline_mode<synchronous>, transform_indices = @transform_3, window_bounds = array<i64: 4, 16, 16>}, {pipeline_mode = #tpu.pipeline_mode<synchronous>, transform_indices = @transform_4, window_bounds = array<i64: 4, 8, 32>}, {pipeline_mode = #tpu.pipeline_mode<synchronous>, transform_indices = @transform_5, window_bounds = array<i64: 1, 32>}, {transform_indices = @transform_6, window_bounds = array<i64: 4, 16, 32>}]} {
    %c0 = arith.constant 0 : index
    %c0_0 = arith.constant 0 : index
    %c0_1 = arith.constant 0 : index
    %0 = vector.load %arg1[%c0, %c0_0, %c0_1] : memref<4x16x32xbf16, #tpu.memory_space<vmem>>, vector<4x16x32xbf16>
    %1 = vector.shape_cast %0 : vector<4x16x32xbf16> to vector<64x32xbf16>
    %c0_2 = arith.constant 0 : index
    %c0_3 = arith.constant 0 : index
    %2 = vector.load %arg2[%c0_2, %c0_3] : memref<32x96xbf16, #tpu.memory_space<vmem>>, vector<32x96xbf16>
    %cst = arith.constant dense<0.000000e+00> : vector<64x96xf32>
    %3 = tpu.matmul %1, %2, %cst {dimension_numbers = #tpu.dot_dimension_numbers<[1], [0], [0], [1], [0, 0, 1, 1], [], []>} : vector<64x32xbf16>, vector<32x96xbf16>, vector<64x96xf32> -> vector<64x96xf32>
    %c0_4 = arith.constant 0 : index
    %c0_5 = arith.constant 0 : index
    %4 = vector.load %arg3[%c0_4, %c0_5] : memref<1x96xf32, #tpu.memory_space<vmem>>, vector<1x96xf32>
    %5 = vector.broadcast %4 : vector<1x96xf32> to vector<64x96xf32>
    %6 = arith.addf %3, %5 : vector<64x96xf32>
    %cst_6 = arith.constant 0.000000e+00 : f32
    %7 = vector.broadcast %cst_6 : f32 to vector<64x32xf32>
    %8 = vector.extract_strided_slice %6 {offsets = [0, 0], sizes = [64, 8], strides = [1, 1]} : vector<64x96xf32> to vector<64x8xf32>
    %9 = vector.shape_cast %8 : vector<64x8xf32> to vector<4x16x8xf32>
    %10 = arith.truncf %9 : vector<4x16x8xf32> to vector<4x16x8xbf16>
    %11 = vector.extract_strided_slice %6 {offsets = [0, 32], sizes = [64, 8], strides = [1, 1]} : vector<64x96xf32> to vector<64x8xf32>
    %12 = vector.shape_cast %11 : vector<64x8xf32> to vector<4x16x8xf32>
    %13 = arith.truncf %12 : vector<4x16x8xf32> to vector<4x16x8xbf16>
    %14 = vector.extract_strided_slice %6 {offsets = [0, 64], sizes = [64, 8], strides = [1, 1]} : vector<64x96xf32> to vector<64x8xf32>
    %15 = vector.shape_cast %14 : vector<64x8xf32> to vector<4x16x8xf32>
    %16 = arith.truncf %15 : vector<4x16x8xf32> to vector<4x16x8xbf16>
    "tpu.trace_start"() <{level = 10 : i32, message = "bnd,bmd->bnm"}> : () -> ()
    %cst_7 = arith.constant dense<0.000000e+00> : vector<4x16x16xf32>
    %17 = tpu.matmul %10, %13, %cst_7 {dimension_numbers = #tpu.dot_dimension_numbers<[2], [2], [1], [1], [0, 0, 0, 1, 1, 1], [0], [0]>} : vector<4x16x8xbf16>, vector<4x16x8xbf16>, vector<4x16x16xf32> -> vector<4x16x16xf32>
    "tpu.trace_stop"() : () -> ()
    %c0_8 = arith.constant 0 : index
    %c0_9 = arith.constant 0 : index
    %c0_10 = arith.constant 0 : index
    %18 = vector.load %arg4[%c0_8, %c0_9, %c0_10] : memref<4x16x16xf32, #tpu.memory_space<vmem>>, vector<1x16x16xf32>
    %19 = vector.shape_cast %18 : vector<1x16x16xf32> to vector<16x16xf32>
    %20 = vector.shape_cast %19 : vector<16x16xf32> to vector<1x16x16xf32>
    %21 = vector.broadcast %20 : vector<1x16x16xf32> to vector<4x16x16xf32>
    %22 = arith.addf %17, %21 : vector<4x16x16xf32>
    %cst_11 = arith.constant dense<0xFF800000> : vector<4x16xf32>
    %23 = vector.multi_reduction <maximumf>, %22, %cst_11 [2] : vector<4x16x16xf32> to vector<4x16xf32>
    %24 = vector.shape_cast %23 : vector<4x16xf32> to vector<4x16x1xf32>
    %25 = vector.broadcast %24 : vector<4x16x1xf32> to vector<4x16x16xf32>
    %26 = arith.subf %22, %25 : vector<4x16x16xf32>
    %27 = math.exp %26 : vector<4x16x16xf32>
    %cst_12 = arith.constant dense<0.000000e+00> : vector<4x16xf32>
    %28 = vector.multi_reduction <add>, %27, %cst_12 [2] : vector<4x16x16xf32> to vector<4x16xf32>
    %29 = vector.shape_cast %28 : vector<4x16xf32> to vector<4x16x1xf32>
    %30 = tpu.reciprocal %29 {approx = true} : vector<4x16x1xf32> -> vector<4x16x1xf32>
    %31 = vector.broadcast %30 : vector<4x16x1xf32> to vector<4x16x16xf32>
    %32 = arith.mulf %27, %31 : vector<4x16x16xf32>
    %33 = arith.truncf %32 : vector<4x16x16xf32> to vector<4x16x16xbf16>
    "tpu.trace_start"() <{level = 10 : i32, message = "bnm,bmd->bnd"}> : () -> ()
    %cst_13 = arith.constant dense<0.000000e+00> : vector<4x16x8xf32>
    %34 = tpu.matmul %33, %16, %cst_13 {dimension_numbers = #tpu.dot_dimension_numbers<[2], [1], [1], [2], [0, 0, 0, 1, 1, 2], [0], [0]>} : vector<4x16x16xbf16>, vector<4x16x8xbf16>, vector<4x16x8xf32> -> vector<4x16x8xf32>
    "tpu.trace_stop"() : () -> ()
    %35 = vector.shape_cast %34 : vector<4x16x8xf32> to vector<64x8xf32>
    %36 = arith.truncf %35 : vector<64x8xf32> to vector<64x8xbf16>
    %c0_14 = arith.constant 0 : index
    %c0_15 = arith.constant 0 : index
    %c0_16 = arith.constant 0 : index
    %37 = vector.load %arg5[%c0_14, %c0_15, %c0_16] : memref<4x8x32xbf16, #tpu.memory_space<vmem>>, vector<1x8x32xbf16>
    %38 = vector.shape_cast %37 : vector<1x8x32xbf16> to vector<8x32xbf16>
    %cst_17 = arith.constant dense<0.000000e+00> : vector<64x32xf32>
    %39 = tpu.matmul %36, %38, %cst_17 {dimension_numbers = #tpu.dot_dimension_numbers<[1], [0], [0], [1], [0, 0, 1, 1], [], []>} : vector<64x8xbf16>, vector<8x32xbf16>, vector<64x32xf32> -> vector<64x32xf32>
    %40 = arith.addf %7, %39 : vector<64x32xf32>
    %41 = vector.extract_strided_slice %6 {offsets = [0, 8], sizes = [64, 8], strides = [1, 1]} : vector<64x96xf32> to vector<64x8xf32>
    %42 = vector.shape_cast %41 : vector<64x8xf32> to vector<4x16x8xf32>
    %43 = arith.truncf %42 : vector<4x16x8xf32> to vector<4x16x8xbf16>
    %44 = vector.extract_strided_slice %6 {offsets = [0, 40], sizes = [64, 8], strides = [1, 1]} : vector<64x96xf32> to vector<64x8xf32>
    %45 = vector.shape_cast %44 : vector<64x8xf32> to vector<4x16x8xf32>
    %46 = arith.truncf %45 : vector<4x16x8xf32> to vector<4x16x8xbf16>
    %47 = vector.extract_strided_slice %6 {offsets = [0, 72], sizes = [64, 8], strides = [1, 1]} : vector<64x96xf32> to vector<64x8xf32>
    %48 = vector.shape_cast %47 : vector<64x8xf32> to vector<4x16x8xf32>
    %49 = arith.truncf %48 : vector<4x16x8xf32> to vector<4x16x8xbf16>
    "tpu.trace_start"() <{level = 10 : i32, message = "bnd,bmd->bnm"}> : () -> ()
    %cst_18 = arith.constant dense<0.000000e+00> : vector<4x16x16xf32>
    %50 = tpu.matmul %43, %46, %cst_18 {dimension_numbers = #tpu.dot_dimension_numbers<[2], [2], [1], [1], [0, 0, 0, 1, 1, 1], [0], [0]>} : vector<4x16x8xbf16>, vector<4x16x8xbf16>, vector<4x16x16xf32> -> vector<4x16x16xf32>
    "tpu.trace_stop"() : () -> ()
    %c1 = arith.constant 1 : index
    %c0_19 = arith.constant 0 : index
    %c0_20 = arith.constant 0 : index
    %51 = vector.load %arg4[%c1, %c0_19, %c0_20] : memref<4x16x16xf32, #tpu.memory_space<vmem>>, vector<1x16x16xf32>
    %52 = vector.shape_cast %51 : vector<1x16x16xf32> to vector<16x16xf32>
    %53 = vector.shape_cast %52 : vector<16x16xf32> to vector<1x16x16xf32>
    %54 = vector.broadcast %53 : vector<1x16x16xf32> to vector<4x16x16xf32>
    %55 = arith.addf %50, %54 : vector<4x16x16xf32>
    %cst_21 = arith.constant dense<0xFF800000> : vector<4x16xf32>
    %56 = vector.multi_reduction <maximumf>, %55, %cst_21 [2] : vector<4x16x16xf32> to vector<4x16xf32>
    %57 = vector.shape_cast %56 : vector<4x16xf32> to vector<4x16x1xf32>
    %58 = vector.broadcast %57 : vector<4x16x1xf32> to vector<4x16x16xf32>
    %59 = arith.subf %55, %58 : vector<4x16x16xf32>
    %60 = math.exp %59 : vector<4x16x16xf32>
    %cst_22 = arith.constant dense<0.000000e+00> : vector<4x16xf32>
    %61 = vector.multi_reduction <add>, %60, %cst_22 [2] : vector<4x16x16xf32> to vector<4x16xf32>
    %62 = vector.shape_cast %61 : vector<4x16xf32> to vector<4x16x1xf32>
    %63 = tpu.reciprocal %62 {approx = true} : vector<4x16x1xf32> -> vector<4x16x1xf32>
    %64 = vector.broadcast %63 : vector<4x16x1xf32> to vector<4x16x16xf32>
    %65 = arith.mulf %60, %64 : vector<4x16x16xf32>
    %66 = arith.truncf %65 : vector<4x16x16xf32> to vector<4x16x16xbf16>
    "tpu.trace_start"() <{level = 10 : i32, message = "bnm,bmd->bnd"}> : () -> ()
    %cst_23 = arith.constant dense<0.000000e+00> : vector<4x16x8xf32>
    %67 = tpu.matmul %66, %49, %cst_23 {dimension_numbers = #tpu.dot_dimension_numbers<[2], [1], [1], [2], [0, 0, 0, 1, 1, 2], [0], [0]>} : vector<4x16x16xbf16>, vector<4x16x8xbf16>, vector<4x16x8xf32> -> vector<4x16x8xf32>
    "tpu.trace_stop"() : () -> ()
    %68 = vector.shape_cast %67 : vector<4x16x8xf32> to vector<64x8xf32>
    %69 = arith.truncf %68 : vector<64x8xf32> to vector<64x8xbf16>
    %c1_24 = arith.constant 1 : index
    %c0_25 = arith.constant 0 : index
    %c0_26 = arith.constant 0 : index
    %70 = vector.load %arg5[%c1_24, %c0_25, %c0_26] : memref<4x8x32xbf16, #tpu.memory_space<vmem>>, vector<1x8x32xbf16>
    %71 = vector.shape_cast %70 : vector<1x8x32xbf16> to vector<8x32xbf16>
    %cst_27 = arith.constant dense<0.000000e+00> : vector<64x32xf32>
    %72 = tpu.matmul %69, %71, %cst_27 {dimension_numbers = #tpu.dot_dimension_numbers<[1], [0], [0], [1], [0, 0, 1, 1], [], []>} : vector<64x8xbf16>, vector<8x32xbf16>, vector<64x32xf32> -> vector<64x32xf32>
    %73 = arith.addf %40, %72 : vector<64x32xf32>
    %74 = vector.extract_strided_slice %6 {offsets = [0, 16], sizes = [64, 8], strides = [1, 1]} : vector<64x96xf32> to vector<64x8xf32>
    %75 = vector.shape_cast %74 : vector<64x8xf32> to vector<4x16x8xf32>
    %76 = arith.truncf %75 : vector<4x16x8xf32> to vector<4x16x8xbf16>
    %77 = vector.extract_strided_slice %6 {offsets = [0, 48], sizes = [64, 8], strides = [1, 1]} : vector<64x96xf32> to vector<64x8xf32>
    %78 = vector.shape_cast %77 : vector<64x8xf32> to vector<4x16x8xf32>
    %79 = arith.truncf %78 : vector<4x16x8xf32> to vector<4x16x8xbf16>
    %80 = vector.extract_strided_slice %6 {offsets = [0, 80], sizes = [64, 8], strides = [1, 1]} : vector<64x96xf32> to vector<64x8xf32>
    %81 = vector.shape_cast %80 : vector<64x8xf32> to vector<4x16x8xf32>
    %82 = arith.truncf %81 : vector<4x16x8xf32> to vector<4x16x8xbf16>
    "tpu.trace_start"() <{level = 10 : i32, message = "bnd,bmd->bnm"}> : () -> ()
    %cst_28 = arith.constant dense<0.000000e+00> : vector<4x16x16xf32>
    %83 = tpu.matmul %76, %79, %cst_28 {dimension_numbers = #tpu.dot_dimension_numbers<[2], [2], [1], [1], [0, 0, 0, 1, 1, 1], [0], [0]>} : vector<4x16x8xbf16>, vector<4x16x8xbf16>, vector<4x16x16xf32> -> vector<4x16x16xf32>
    "tpu.trace_stop"() : () -> ()
    %c2 = arith.constant 2 : index
    %c0_29 = arith.constant 0 : index
    %c0_30 = arith.constant 0 : index
    %84 = vector.load %arg4[%c2, %c0_29, %c0_30] : memref<4x16x16xf32, #tpu.memory_space<vmem>>, vector<1x16x16xf32>
    %85 = vector.shape_cast %84 : vector<1x16x16xf32> to vector<16x16xf32>
    %86 = vector.shape_cast %85 : vector<16x16xf32> to vector<1x16x16xf32>
    %87 = vector.broadcast %86 : vector<1x16x16xf32> to vector<4x16x16xf32>
    %88 = arith.addf %83, %87 : vector<4x16x16xf32>
    %cst_31 = arith.constant dense<0xFF800000> : vector<4x16xf32>
    %89 = vector.multi_reduction <maximumf>, %88, %cst_31 [2] : vector<4x16x16xf32> to vector<4x16xf32>
    %90 = vector.shape_cast %89 : vector<4x16xf32> to vector<4x16x1xf32>
    %91 = vector.broadcast %90 : vector<4x16x1xf32> to vector<4x16x16xf32>
    %92 = arith.subf %88, %91 : vector<4x16x16xf32>
    %93 = math.exp %92 : vector<4x16x16xf32>
    %cst_32 = arith.constant dense<0.000000e+00> : vector<4x16xf32>
    %94 = vector.multi_reduction <add>, %93, %cst_32 [2] : vector<4x16x16xf32> to vector<4x16xf32>
    %95 = vector.shape_cast %94 : vector<4x16xf32> to vector<4x16x1xf32>
    %96 = tpu.reciprocal %95 {approx = true} : vector<4x16x1xf32> -> vector<4x16x1xf32>
    %97 = vector.broadcast %96 : vector<4x16x1xf32> to vector<4x16x16xf32>
    %98 = arith.mulf %93, %97 : vector<4x16x16xf32>
    %99 = arith.truncf %98 : vector<4x16x16xf32> to vector<4x16x16xbf16>
    "tpu.trace_start"() <{level = 10 : i32, message = "bnm,bmd->bnd"}> : () -> ()
    %cst_33 = arith.constant dense<0.000000e+00> : vector<4x16x8xf32>
    %100 = tpu.matmul %99, %82, %cst_33 {dimension_numbers = #tpu.dot_dimension_numbers<[2], [1], [1], [2], [0, 0, 0, 1, 1, 2], [0], [0]>} : vector<4x16x16xbf16>, vector<4x16x8xbf16>, vector<4x16x8xf32> -> vector<4x16x8xf32>
    "tpu.trace_stop"() : () -> ()
    %101 = vector.shape_cast %100 : vector<4x16x8xf32> to vector<64x8xf32>
    %102 = arith.truncf %101 : vector<64x8xf32> to vector<64x8xbf16>
    %c2_34 = arith.constant 2 : index
    %c0_35 = arith.constant 0 : index
    %c0_36 = arith.constant 0 : index
    %103 = vector.load %arg5[%c2_34, %c0_35, %c0_36] : memref<4x8x32xbf16, #tpu.memory_space<vmem>>, vector<1x8x32xbf16>
    %104 = vector.shape_cast %103 : vector<1x8x32xbf16> to vector<8x32xbf16>
    %cst_37 = arith.constant dense<0.000000e+00> : vector<64x32xf32>
    %105 = tpu.matmul %102, %104, %cst_37 {dimension_numbers = #tpu.dot_dimension_numbers<[1], [0], [0], [1], [0, 0, 1, 1], [], []>} : vector<64x8xbf16>, vector<8x32xbf16>, vector<64x32xf32> -> vector<64x32xf32>
    %106 = arith.addf %73, %105 : vector<64x32xf32>
    %107 = vector.extract_strided_slice %6 {offsets = [0, 24], sizes = [64, 8], strides = [1, 1]} : vector<64x96xf32> to vector<64x8xf32>
    %108 = vector.shape_cast %107 : vector<64x8xf32> to vector<4x16x8xf32>
    %109 = arith.truncf %108 : vector<4x16x8xf32> to vector<4x16x8xbf16>
    %110 = vector.extract_strided_slice %6 {offsets = [0, 56], sizes = [64, 8], strides = [1, 1]} : vector<64x96xf32> to vector<64x8xf32>
    %111 = vector.shape_cast %110 : vector<64x8xf32> to vector<4x16x8xf32>
    %112 = arith.truncf %111 : vector<4x16x8xf32> to vector<4x16x8xbf16>
    %113 = vector.extract_strided_slice %6 {offsets = [0, 88], sizes = [64, 8], strides = [1, 1]} : vector<64x96xf32> to vector<64x8xf32>
    %114 = vector.shape_cast %113 : vector<64x8xf32> to vector<4x16x8xf32>
    %115 = arith.truncf %114 : vector<4x16x8xf32> to vector<4x16x8xbf16>
    "tpu.trace_start"() <{level = 10 : i32, message = "bnd,bmd->bnm"}> : () -> ()
    %cst_38 = arith.constant dense<0.000000e+00> : vector<4x16x16xf32>
    %116 = tpu.matmul %109, %112, %cst_38 {dimension_numbers = #tpu.dot_dimension_numbers<[2], [2], [1], [1], [0, 0, 0, 1, 1, 1], [0], [0]>} : vector<4x16x8xbf16>, vector<4x16x8xbf16>, vector<4x16x16xf32> -> vector<4x16x16xf32>
    "tpu.trace_stop"() : () -> ()
    %c3 = arith.constant 3 : index
    %c0_39 = arith.constant 0 : index
    %c0_40 = arith.constant 0 : index
    %117 = vector.load %arg4[%c3, %c0_39, %c0_40] : memref<4x16x16xf32, #tpu.memory_space<vmem>>, vector<1x16x16xf32>
    %118 = vector.shape_cast %117 : vector<1x16x16xf32> to vector<16x16xf32>
    %119 = vector.shape_cast %118 : vector<16x16xf32> to vector<1x16x16xf32>
    %120 = vector.broadcast %119 : vector<1x16x16xf32> to vector<4x16x16xf32>
    %121 = arith.addf %116, %120 : vector<4x16x16xf32>
    %cst_41 = arith.constant dense<0xFF800000> : vector<4x16xf32>
    %122 = vector.multi_reduction <maximumf>, %121, %cst_41 [2] : vector<4x16x16xf32> to vector<4x16xf32>
    %123 = vector.shape_cast %122 : vector<4x16xf32> to vector<4x16x1xf32>
    %124 = vector.broadcast %123 : vector<4x16x1xf32> to vector<4x16x16xf32>
    %125 = arith.subf %121, %124 : vector<4x16x16xf32>
    %126 = math.exp %125 : vector<4x16x16xf32>
    %cst_42 = arith.constant dense<0.000000e+00> : vector<4x16xf32>
    %127 = vector.multi_reduction <add>, %126, %cst_42 [2] : vector<4x16x16xf32> to vector<4x16xf32>
    %128 = vector.shape_cast %127 : vector<4x16xf32> to vector<4x16x1xf32>
    %129 = tpu.reciprocal %128 {approx = true} : vector<4x16x1xf32> -> vector<4x16x1xf32>
    %130 = vector.broadcast %129 : vector<4x16x1xf32> to vector<4x16x16xf32>
    %131 = arith.mulf %126, %130 : vector<4x16x16xf32>
    %132 = arith.truncf %131 : vector<4x16x16xf32> to vector<4x16x16xbf16>
    "tpu.trace_start"() <{level = 10 : i32, message = "bnm,bmd->bnd"}> : () -> ()
    %cst_43 = arith.constant dense<0.000000e+00> : vector<4x16x8xf32>
    %133 = tpu.matmul %132, %115, %cst_43 {dimension_numbers = #tpu.dot_dimension_numbers<[2], [1], [1], [2], [0, 0, 0, 1, 1, 2], [0], [0]>} : vector<4x16x16xbf16>, vector<4x16x8xbf16>, vector<4x16x8xf32> -> vector<4x16x8xf32>
    "tpu.trace_stop"() : () -> ()
    %134 = vector.shape_cast %133 : vector<4x16x8xf32> to vector<64x8xf32>
    %135 = arith.truncf %134 : vector<64x8xf32> to vector<64x8xbf16>
    %c3_44 = arith.constant 3 : index
    %c0_45 = arith.constant 0 : index
    %c0_46 = arith.constant 0 : index
    %136 = vector.load %arg5[%c3_44, %c0_45, %c0_46] : memref<4x8x32xbf16, #tpu.memory_space<vmem>>, vector<1x8x32xbf16>
    %137 = vector.shape_cast %136 : vector<1x8x32xbf16> to vector<8x32xbf16>
    %cst_47 = arith.constant dense<0.000000e+00> : vector<64x32xf32>
    %138 = tpu.matmul %135, %137, %cst_47 {dimension_numbers = #tpu.dot_dimension_numbers<[1], [0], [0], [1], [0, 0, 1, 1], [], []>} : vector<64x8xbf16>, vector<8x32xbf16>, vector<64x32xf32> -> vector<64x32xf32>
    %139 = arith.addf %106, %138 : vector<64x32xf32>
    %c0_48 = arith.constant 0 : index
    %c0_49 = arith.constant 0 : index
    %140 = vector.load %arg6[%c0_48, %c0_49] : memref<1x32xf32, #tpu.memory_space<vmem>>, vector<1x32xf32>
    %141 = vector.broadcast %140 : vector<1x32xf32> to vector<64x32xf32>
    %142 = arith.addf %139, %141 : vector<64x32xf32>
    %143 = vector.shape_cast %142 : vector<64x32xf32> to vector<4x16x32xf32>
    %c0_50 = arith.constant 0 : index
    %c0_51 = arith.constant 0 : index
    %c0_52 = arith.constant 0 : index
    %144 = vector.load %arg7[%c0_50, %c0_51, %c0_52] : memref<4x16x32xf32, #tpu.memory_space<vmem>>, vector<4x16x32xf32>
    tpu.vector_store %arg7[%c0_50, %c0_51, %c0_52], %143 {strides = array<i32>} : memref<4x16x32xf32, #tpu.memory_space<vmem>>, vector<4x16x32xf32>,
    return
  }
  func.func @transform_0(%arg0: i32) -> (i32, i32, i32) {
    %c0_i32 = arith.constant 0 : i32
    %c0_i32_0 = arith.constant 0 : i32
    %c0_i32_1 = arith.constant 0 : i32
    return %arg0, %c0_i32, %c0_i32_0 : i32, i32, i32
  }
  func.func @transform_1(%arg0: i32) -> (i32, i32) {
    %c0_i32 = arith.constant 0 : i32
    %c0_i32_0 = arith.constant 0 : i32
    %c0_i32_1 = arith.constant 0 : i32
    return %c0_i32, %c0_i32_0 : i32, i32
  }
  func.func @transform_2(%arg0: i32) -> (i32, i32) {
    %c0_i32 = arith.constant 0 : i32
    %c0_i32_0 = arith.constant 0 : i32
    %c0_i32_1 = arith.constant 0 : i32
    return %c0_i32, %c0_i32_0 : i32, i32
  }
  func.func @transform_3(%arg0: i32) -> (i32, i32, i32) {
    %c0_i32 = arith.constant 0 : i32
    %c0_i32_0 = arith.constant 0 : i32
    %c0_i32_1 = arith.constant 0 : i32
    %c0_i32_2 = arith.constant 0 : i32
    return %c0_i32, %c0_i32_0, %c0_i32_1 : i32, i32, i32
  }
  func.func @transform_4(%arg0: i32) -> (i32, i32, i32) {
    %c0_i32 = arith.constant 0 : i32
    %c0_i32_0 = arith.constant 0 : i32
    %c0_i32_1 = arith.constant 0 : i32
    %c0_i32_2 = arith.constant 0 : i32
    return %c0_i32, %c0_i32_0, %c0_i32_1 : i32, i32, i32
  }
  func.func @transform_5(%arg0: i32) -> (i32, i32) {
    %c0_i32 = arith.constant 0 : i32
    %c0_i32_0 = arith.constant 0 : i32
    %c0_i32_1 = arith.constant 0 : i32
    return %c0_i32, %c0_i32_0 : i32, i32
  }
  func.func @transform_6(%arg0: i32) -> (i32, i32, i32) {
    %c0_i32 = arith.constant 0 : i32
    %c0_i32_0 = arith.constant 0 : i32
    %c0_i32_1 = arith.constant 0 : i32
    return %arg0, %c0_i32, %c0_i32_0 : i32, i32, i32
  }
}

</mosaic_0001>

<llo_original>
// kernel: tpu_custom_call.1
$region0: #{tpu_custom_call.1}
  #allocation0 [shape = 'u32[]', space=smem, size = 0x4, offset = 0x4, fixed_abs, tag = 'smem constant byte address 0x4 - core index']
  #allocation1 [shape = 'u32[144,128]{1,0:T(1,128)}', space=vmem, size = 0x12000, scoped, tag = 'internal scratch']
  %s0 = inlined_call_operand.hbm [shape: bf16[8,16,32], index: 0, kind: input, shape index: {}]
  %s1 = inlined_call_operand.hbm [shape: bf16[32,96], index: 1, kind: input, shape index: {}]
  %s2 = inlined_call_operand.vmem [shape: f32[1,96], index: 2, kind: input, shape index: {}]
  %s3 = inlined_call_operand.hbm [shape: f32[4,16,16], index: 3, kind: input, shape index: {}]
  %s4 = inlined_call_operand.hbm [shape: bf16[4,8,32], index: 4, kind: input, shape index: {}]
  %s5 = inlined_call_operand.vmem [shape: f32[1,32], index: 5, kind: input, shape index: {}]
  %s6 = inlined_call_operand.hbm [shape: f32[8,16,32], index: 6, kind: output, shape index: {}]
  %s7 = sld [smem:[#allocation0]]
  $region73: #{tpu_custom_call.1} parent=0
    _
  %s9 = ssub.s32 1, %s7
  %s10 = scalar_select 0, %s9, %s7
  $region1: #{tpu_custom_call.1} parent=0
    #allocation2 [shape = 'u8[32768]{0}', space=vmem, size = 0x8000, scoped, tag = 'input window, operand 0']
    #allocation3 [shape = 's32[2]{0}', space=sflag, size = 0x8, scoped, tag = 'scoped memory for tpu_custom_call.1']
    #allocation4 [shape = 's32[2]{0}', space=sflag, size = 0x8, scoped, tag = 'scoped memory for tpu_custom_call.1']
    #allocation5 [shape = 'u8[8192]{0}', space=vmem, size = 0x2000, scoped, tag = 'input window, operand 1, single buffered']
    #allocation6 [shape = 's32[1]{0}', space=sflag, size = 0x4, scoped, tag = 'scoped memory for tpu_custom_call.1']
    #allocation7 [shape = 'u8[32768]{0}', space=vmem, size = 0x8000, scoped, tag = 'input window, operand 3, single buffered']
    #allocation8 [shape = 'u8[8192]{0}', space=vmem, size = 0x2000, scoped, tag = 'input window, operand 4, single buffered']
    #allocation9 [shape = 's32[1]{0}', space=sflag, size = 0x4, scoped, tag = 'scoped memory for tpu_custom_call.1']
    #allocation10 [shape = 'u8[65536]{0}', space=vmem, size = 0x10000, scoped, tag = 'output window, operand 0']
    %11 = vsyncpa [#allocation3], 0
    %s12 = scalar_lea.sflag [#allocation3], 1
    %13 = vsyncpa %s12, 0
    %14 = vsyncpa [#allocation6], 0
    %15 = vsyncpa [#allocation9], 0
    %16 = vsyncpa [#allocation4], 0
    %s17 = scalar_lea.sflag [#allocation4], 1
    %18 = vsyncpa %s17, 0
    loop: start=0, step=1, limit=4
    $region2: #{tpu_custom_call.1} parent=1 // loop_pre_header
      _
    $region3: #{tpu_custom_call.1} parent=1 // loop_header
      %s20 = sphi 0, %s24
      %p21 = scmp.ge.s32.totalorder %s20, 4
      %s30 = sphi 0, %s32
      %s33 = sphi 0, %s30
      %s34 = sphi 0, %s33
      %s50 = sphi 0, %s34
      %s54 = sphi 0, %s54
      %s56 = sphi 0, %s54
      %s57 = sphi 0, %s56
      %s71 = sphi 0, %s57
      %s75 = sphi 0, %s75
      %s77 = sphi 0, %s75
      %s78 = sphi 0, %s77
      %s92 = sphi 0, %s78
      %s96 = sphi 0, %s96
      %s98 = sphi 0, %s96
      %s99 = sphi 0, %s98
      %s113 = sphi 0, %s99
      %s117 = sphi 0, %s117
      %s119 = sphi 0, %s117
      %s120 = sphi 0, %s119
      %s134 = sphi 0, %s120
      %s138 = sphi 0, %s138
      %s140 = sphi 0, %s138
      %s141 = sphi 0, %s140
      %s155 = sphi 0, %s141
      %s161 = sphi 0, %s163
      %s164 = sphi 0, %s161
      %s165 = sphi 0, %s164
      %s181 = sphi 0, %s165
    $region4: #{tpu_custom_call.1} parent=1 // loop_header_branch
      %23 = sbr.rel (%p21) target = $region8
    $region5: #{tpu_custom_call.1} parent=1 // loop_body
      %s25 = ssub.s32 %s20, 1
      %s26 = ssub.s32 %s20, 2
      %s27 = sadd.s32 %s20, 1
      %s28 = ssub.s32 %s20, %s27
      %p29 = scmp.eq.s32.totalorder %s28, 0
      %s31 = sadd.s32 %s30, 1
      %s32 = scalar_select %p29, %s30, %s31
      %p35 = pneg %p29
      %p36 = scmp.eq.s32.totalorder %s20, 1
      %p37 = por %p35, %p36
      %p38 = scmp.ne.s32.totalorder %s30, %s33
      %p39 = scmp.eq.s32.totalorder %s20, 0
      %p40 = por %p38, %p39
      %p41 = scmp.ne.s32.totalorder %s30, %s33
      %p42 = scmp.eq.s32.totalorder %s25, 1
      %p43 = por %p41, %p42
      %p44 = scmp.ne.s32.totalorder %s33, %s34
      %p45 = scmp.eq.s32.totalorder %s25, 0
      %p46 = por %p44, %p45
      %p47 = scmp.ne.s32.totalorder %s33, %s34
      %p48 = scmp.eq.s32.totalorder %s26, 1
      %p49 = por %p47, %p48
      %p51 = scmp.ne.s32.totalorder %s34, %s50
      %p52 = scmp.eq.s32.totalorder %s26, 0
      %p53 = por %p51, %p52
      %s55 = sadd.s32 %s54, 1
      %p58 = scmp.eq.s32.totalorder %s20, 1
      %p59 = scmp.ne.s32.totalorder %s54, %s56
      %p60 = scmp.eq.s32.totalorder %s20, 0
      %p61 = por %p59, %p60
      %p62 = scmp.ne.s32.totalorder %s54, %s56
      %p63 = scmp.eq.s32.totalorder %s25, 1
      %p64 = por %p62, %p63
      %p65 = scmp.ne.s32.totalorder %s56, %s57
      %p66 = scmp.eq.s32.totalorder %s25, 0
      %p67 = por %p65, %p66
      %p68 = scmp.ne.s32.totalorder %s56, %s57
      %p69 = scmp.eq.s32.totalorder %s26, 1
      %p70 = por %p68, %p69
      %p72 = scmp.ne.s32.totalorder %s57, %s71
      %p73 = scmp.eq.s32.totalorder %s26, 0
      %p74 = por %p72, %p73
      %s76 = sadd.s32 %s75, 1
      %p79 = scmp.eq.s32.totalorder %s20, 1
      %p80 = scmp.ne.s32.totalorder %s75, %s77
      %p81 = scmp.eq.s32.totalorder %s20, 0
      %p82 = por %p80, %p81
      %p83 = scmp.ne.s32.totalorder %s75, %s77
      %p84 = scmp.eq.s32.totalorder %s25, 1
      %p85 = por %p83, %p84
      %p86 = scmp.ne.s32.totalorder %s77, %s78
      %p87 = scmp.eq.s32.totalorder %s25, 0
      %p88 = por %p86, %p87
      %p89 = scmp.ne.s32.totalorder %s77, %s78
      %p90 = scmp.eq.s32.totalorder %s26, 1
      %p91 = por %p89, %p90
      %p93 = scmp.ne.s32.totalorder %s78, %s92
      %p94 = scmp.eq.s32.totalorder %s26, 0
      %p95 = por %p93, %p94
      %s97 = sadd.s32 %s96, 1
      %p100 = scmp.eq.s32.totalorder %s20, 1
      %p101 = scmp.ne.s32.totalorder %s96, %s98
      %p102 = scmp.eq.s32.totalorder %s20, 0
      %p103 = por %p101, %p102
      %p104 = scmp.ne.s32.totalorder %s96, %s98
      %p105 = scmp.eq.s32.totalorder %s25, 1
      %p106 = por %p104, %p105
      %p107 = scmp.ne.s32.totalorder %s98, %s99
      %p108 = scmp.eq.s32.totalorder %s25, 0
      %p109 = por %p107, %p108
      %p110 = scmp.ne.s32.totalorder %s98, %s99
      %p111 = scmp.eq.s32.totalorder %s26, 1
      %p112 = por %p110, %p111
      %p114 = scmp.ne.s32.totalorder %s99, %s113
      %p115 = scmp.eq.s32.totalorder %s26, 0
      %p116 = por %p114, %p115
      %s118 = sadd.s32 %s117, 1
      %p121 = scmp.eq.s32.totalorder %s20, 1
      %p122 = scmp.ne.s32.totalorder %s117, %s119
      %p123 = scmp.eq.s32.totalorder %s20, 0
      %p124 = por %p122, %p123
      %p125 = scmp.ne.s32.totalorder %s117, %s119
      %p126 = scmp.eq.s32.totalorder %s25, 1
      %p127 = por %p125, %p126
      %p128 = scmp.ne.s32.totalorder %s119, %s120
      %p129 = scmp.eq.s32.totalorder %s25, 0
      %p130 = por %p128, %p129
      %p131 = scmp.ne.s32.totalorder %s119, %s120
      %p132 = scmp.eq.s32.totalorder %s26, 1
      %p133 = por %p131, %p132
      %p135 = scmp.ne.s32.totalorder %s120, %s134
      %p136 = scmp.eq.s32.totalorder %s26, 0
      %p137 = por %p135, %p136
      %s139 = sadd.s32 %s138, 1
      %p142 = scmp.eq.s32.totalorder %s20, 1
      %p143 = scmp.ne.s32.totalorder %s138, %s140
      %p144 = scmp.eq.s32.totalorder %s20, 0
      %p145 = por %p143, %p144
      %p146 = scmp.ne.s32.totalorder %s138, %s140
      %p147 = scmp.eq.s32.totalorder %s25, 1
      %p148 = por %p146, %p147
      %p149 = scmp.ne.s32.totalorder %s140, %s141
      %p150 = scmp.eq.s32.totalorder %s25, 0
      %p151 = por %p149, %p150
      %p152 = scmp.ne.s32.totalorder %s140, %s141
      %p153 = scmp.eq.s32.totalorder %s26, 1
      %p154 = por %p152, %p153
      %p156 = scmp.ne.s32.totalorder %s141, %s155
      %p157 = scmp.eq.s32.totalorder %s26, 0
      %p158 = por %p156, %p157
      %s159 = ssub.s32 %s20, %s27
      %p160 = scmp.eq.s32.totalorder %s159, 0
      %s162 = sadd.s32 %s161, 1
      %s163 = scalar_select %p160, %s161, %s162
      %p166 = pneg %p160
      %p167 = scmp.eq.s32.totalorder %s20, 1
      %p168 = por %p166, %p167
      %p169 = scmp.ne.s32.totalorder %s161, %s164
      %p170 = scmp.eq.s32.totalorder %s20, 0
      %p171 = por %p169, %p170
      %p172 = scmp.ne.s32.totalorder %s161, %s164
      %p173 = scmp.eq.s32.totalorder %s25, 1
      %p174 = por %p172, %p173
      %p175 = scmp.ne.s32.totalorder %s164, %s165
      %p176 = scmp.eq.s32.totalorder %s25, 0
      %p177 = por %p175, %p176
      %p178 = scmp.ne.s32.totalorder %s164, %s165
      %p179 = scmp.eq.s32.totalorder %s26, 1
      %p180 = por %p178, %p179
      %p182 = scmp.ne.s32.totalorder %s165, %s181
      %p183 = scmp.eq.s32.totalorder %s26, 0
      %p184 = por %p182, %p183
      %p185 = scmp.le.s32.totalorder 1, %s20
      %p186 = scmp.lt.s32.totalorder %s20, 3
      %p187 = pnand %p185, %p186
      %p188 = pneg %p187
      // Predicated region
      $region9: #{tpu_custom_call.1} parent=5 // pred_check
        _
      $region10: #{tpu_custom_call.1} parent=5 // pred_check_branch
        %190 = sbr.rel (%p187) target = $region12
      $region11: #{tpu_custom_call.1} parent=5 // pred_region
        %s191 = ssub.s32 %s20, 1
        // Predicated region
        $region13: #{tpu_custom_call.1} parent=11 // pred_check
          %p192 = pneg %p67
        $region14: #{tpu_custom_call.1} parent=11 // pred_check_branch
          %194 = sbr.rel (%p192) target = $region16
        $region15: #{tpu_custom_call.1} parent=11 // pred_region
          %s196 = ssub.s32 256, 256
          %197 = vsyncadd [#allocation6], %s196
          %s198 = sshll.u32 [#allocation5], 4
          %s199 = int_to_ptr.vmem [resolvable:$true] %s198
          %204 = dma.hbm_to_vmem [thread:$0]  %s1, 256, %s199, [#allocation6], 64, 64, 4
        $region16: #{tpu_custom_call.1} parent=11 // pred_fallthru
          _
        // Predicated region
        $region17: #{tpu_custom_call.1} parent=11 // pred_check
          %p205 = pneg %p88
        $region18: #{tpu_custom_call.1} parent=11 // pred_check_branch
          %207 = sbr.rel (%p205) target = $region20
        $region19: #{tpu_custom_call.1} parent=11 // pred_region
          _
        $region20: #{tpu_custom_call.1} parent=11 // pred_fallthru
          _
        // Predicated region
        $region21: #{tpu_custom_call.1} parent=11 // pred_check
          %p208 = pneg %p109
        $region22: #{tpu_custom_call.1} parent=11 // pred_check_branch
          %210 = sbr.rel (%p208) target = $region24
        $region23: #{tpu_custom_call.1} parent=11 // pred_region
          %s212 = ssub.s32 1024, 1024
          %213 = vsyncadd [#allocation6], %s212
          %s214 = sshll.u32 [#allocation7], 4
          %s215 = int_to_ptr.vmem [resolvable:$true] %s214
          %220 = dma.hbm_to_vmem [thread:$0]  %s3, 1024, %s215, [#allocation6], 128, 128, 8
        $region24: #{tpu_custom_call.1} parent=11 // pred_fallthru
          _
        // Predicated region
        $region25: #{tpu_custom_call.1} parent=11 // pred_check
          %p221 = pneg %p130
        $region26: #{tpu_custom_call.1} parent=11 // pred_check_branch
          %223 = sbr.rel (%p221) target = $region28
        $region27: #{tpu_custom_call.1} parent=11 // pred_region
          %s225 = ssub.s32 256, 256
          %226 = vsyncadd [#allocation9], %s225
          %s227 = sshll.u32 [#allocation8], 4
          %s228 = int_to_ptr.vmem [resolvable:$true] %s227
          %233 = dma.hbm_to_vmem [thread:$0]  %s4, 256, %s228, [#allocation9], 64, 64, 4
        $region28: #{tpu_custom_call.1} parent=11 // pred_fallthru
          _
        // Predicated region
        $region29: #{tpu_custom_call.1} parent=11 // pred_check
          %p234 = pneg %p151
        $region30: #{tpu_custom_call.1} parent=11 // pred_check_branch
          %236 = sbr.rel (%p234) target = $region32
        $region31: #{tpu_custom_call.1} parent=11 // pred_region
          _
        $region32: #{tpu_custom_call.1} parent=11 // pred_fallthru
          _
      $region12: #{tpu_custom_call.1} parent=5 // pred_fallthru
        _
      %p237 = scmp.lt.s32.totalorder %s20, 2
      // Predicated region
      $region33: #{tpu_custom_call.1} parent=5 // pred_check
        %p238 = pneg %p237
      $region34: #{tpu_custom_call.1} parent=5 // pred_check_branch
        %240 = sbr.rel (%p238) target = $region36
      $region35: #{tpu_custom_call.1} parent=5 // pred_region
        // Predicated region
        $region37: #{tpu_custom_call.1} parent=35 // pred_check
          %p241 = pneg %p40
        $region38: #{tpu_custom_call.1} parent=35 // pred_check_branch
          %243 = sbr.rel (%p241) target = $region40
        $region39: #{tpu_custom_call.1} parent=35 // pred_region
          %s244 = sand.u32 %s30, 1
          %s245 = scalar_lea.sflag [#allocation3], %s244
          %s246 = sand.u32 %s30, 1
          %s247 = smul.addr %s246, 32
          %s248 = scalar_lea.vmem [#allocation2], %s247
          %s249 = smul.u32 4, %s20
          %s251 = ssub.s32 512, 512
          %252 = vsyncadd %s245, %s251
          %s253 = smul.addr %s249, 2
          %s254 = smul.addr %s253, 64
          %s255 = scalar_lea.hbm %s0, %s254
          %s256 = sshll.u32 %s248, 4
          %s257 = int_to_ptr.vmem [resolvable:$true] %s256
          %262 = dma.hbm_to_vmem [thread:$0]  %s255, 512, %s257, %s245, 64, 64, 4
        $region40: #{tpu_custom_call.1} parent=35 // pred_fallthru
          _
      $region36: #{tpu_custom_call.1} parent=5 // pred_fallthru
        _
      %p263 = scmp.le.s32.totalorder 1, %s20
      %p264 = scmp.lt.s32.totalorder %s20, 3
      %p265 = pnand %p263, %p264
      %p266 = pneg %p265
      // Predicated region
      $region41: #{tpu_custom_call.1} parent=5 // pred_check
        _
      $region42: #{tpu_custom_call.1} parent=5 // pred_check_branch
        %268 = sbr.rel (%p265) target = $region44
      $region43: #{tpu_custom_call.1} parent=5 // pred_region
        %s269 = ssub.s32 %s20, 1
        %s270 = sand.u32 %s33, 1
        %s271 = scalar_lea.sflag [#allocation3], %s270
        %s272 = sand.u32 %s33, 1
        %s273 = smul.addr %s272, 32
        %s274 = scalar_lea.vmem [#allocation2], %s273
        // Predicated region
        $region45: #{tpu_custom_call.1} parent=43 // pred_check
          %p275 = pneg %p46
        $region46: #{tpu_custom_call.1} parent=43 // pred_check_branch
          %277 = sbr.rel (%p275) target = $region48
        $region47: #{tpu_custom_call.1} parent=43 // pred_region
          %278 = dma.done %s271, 512
        $region48: #{tpu_custom_call.1} parent=43 // pred_fallthru
          _
        // Predicated region
        $region49: #{tpu_custom_call.1} parent=43 // pred_check
          %p279 = pneg %p67
        $region50: #{tpu_custom_call.1} parent=43 // pred_check_branch
          %281 = sbr.rel (%p279) target = $region52
        $region51: #{tpu_custom_call.1} parent=43 // pred_region
          %282 = dma.done [#allocation6], 256
        $region52: #{tpu_custom_call.1} parent=43 // pred_fallthru
          _
        // Predicated region
        $region53: #{tpu_custom_call.1} parent=43 // pred_check
          %p283 = pneg %p109
        $region54: #{tpu_custom_call.1} parent=43 // pred_check_branch
          %285 = sbr.rel (%p283) target = $region56
        $region55: #{tpu_custom_call.1} parent=43 // pred_region
          %286 = dma.done [#allocation6], 1024
        $region56: #{tpu_custom_call.1} parent=43 // pred_fallthru
          _
        // Predicated region
        $region57: #{tpu_custom_call.1} parent=43 // pred_check
          %p287 = pneg %p130
        $region58: #{tpu_custom_call.1} parent=43 // pred_check_branch
          %289 = sbr.rel (%p287) target = $region60
        $region59: #{tpu_custom_call.1} parent=43 // pred_region
          %290 = dma.done [#allocation9], 256
        $region60: #{tpu_custom_call.1} parent=43 // pred_fallthru
          _
        %s291 = sand.u32 %s33, 1
        %s292 = scalar_lea.sflag [#allocation3], %s291
        %s293 = sand.u32 %s33, 1
        %s294 = smul.addr %s293, 32
        %s295 = scalar_lea.vmem [#allocation2], %s294
        %p296 = pneg %p46
        %p297 = pneg %p43
        %p298 = pneg %p67
        %p299 = pneg %p64
        %p300 = pneg %p88
        %p301 = pneg %p85
        %p302 = pneg %p109
        %p303 = pneg %p106
        %p304 = pneg %p130
        %p305 = pneg %p127
        %p306 = pneg %p151
        %p307 = pneg %p148
        %p308 = pneg %p177
        %p309 = pneg %p174
        %s310 = sand.u32 %s164, 1
        %s311 = scalar_lea.sflag [#allocation4], %s310
        %s312 = sand.u32 %s164, 1
        %s313 = smul.addr %s312, 64
        %s314 = scalar_lea.vmem [#allocation10], %s313
        %s315 = smul.u32 4, %s25
        %s316 = smul.u32 4, %s25
        %v318 = vld [vmem:[%s274] sm:$0xf]
        %v319 = vld [vmem:[%s274 + $0x4] sm:$0xf]
        %v320 = vld [vmem:[%s274 + $0x8] sm:$0xf]
        %v321 = vld [vmem:[%s274 + $0xc] sm:$0xf]
        %v322 = vld [vmem:[%s274 + $0x10] sm:$0xf]
        %v323 = vld [vmem:[%s274 + $0x14] sm:$0xf]
        %v324 = vld [vmem:[%s274 + $0x18] sm:$0xf]
        %v325 = vld [vmem:[%s274 + $0x1c] sm:$0xf]
        %v326 = vld [vmem:[#allocation5] sm:$0xf]
        %v327 = vld [vmem:[#allocation5 + $0x4] sm:$0xf]
        %v328 = vld [vmem:[#allocation5 + $0x8] sm:$0xf]
        %v329 = vld [vmem:[#allocation5 + $0xc] sm:$0xf]
        %v330 = vld [vmem:[%s2] sm:$0x1]
        %v332 = vlaneseq
        %v333 = vshrl.u32 %v332, 7
        %v334 = vsub.s32 0, %v333
        %v335 = vrot.slane %v330, %v334
        %v345 = vunpack.c.l.b16 %v318
        %v346 = vunpack.c.l.b16 %v319
        %v347 = vunpack.c.l.b16 %v320
        %v348 = vunpack.c.l.b16 %v321
        %v349 = vunpack.c.l.b16 %v322
        %v350 = vunpack.c.l.b16 %v323
        %v351 = vunpack.c.l.b16 %v324
        %v352 = vunpack.c.l.b16 %v325
        %v353 = vpack.c.b16 %v346, %v345
        %v354 = vpack.c.b16 %v348, %v347
        %v355 = vpack.c.b16 %v350, %v349
        %v356 = vpack.c.b16 %v352, %v351
        %v361 = vunpack.c.l.b16 %v326
        %v362 = vunpack.c.l.b16 %v327
        %v363 = vunpack.c.l.b16 %v328
        %v364 = vunpack.c.l.b16 %v329
        %v365 = vpack.c.b16 %v362, %v361
        %v366 = vpack.c.b16 %v364, %v363
        %vm369 = vcmask 261120
        %v371 = vsel %vm369, %v353, 0
        %v374 = vsel %vm369, %v354, 0
        %v377 = vsel %vm369, %v355, 0
        %v380 = vsel %vm369, %v356, 0
        %382 = vmatprep.subr.bf16.mxu0 0
        %383 = vmatpush1.bf16.msra.mxu0 0
        %384 = vmatprep.subr.bf16.mxu0 0
        %385 = vmatpush1.bf16.msra.mxu0 0
        %386 = vmatprep.subr.bf16.mxu0 0
        %387 = vmatpush1.bf16.msra.mxu0 0
        %388 = vmatprep.subr.bf16.mxu0 0
        %389 = vmatpush1.bf16.msra.mxu0 0
        %390 = vmatprep.subr.bf16.mxu0 0
        %391 = vmatpush1.bf16.msra.mxu0 0
        %392 = vmatprep.subr.bf16.mxu0 0
        %393 = vmatpush1.bf16.msra.mxu0 0
        %394 = vmatprep.subr.bf16.mxu0 0
        %395 = vmatpush1.bf16.msra.mxu0 %v366
        %396 = vmatprep.subr.bf16.mxu0 0
        %397 = vmatpush1.bf16.msra.mxu0 %v365
        %398 = vmatprep.subr.bf16.mxu0 0
        %399 = vmatpush2.bf16.msra.mxu0 0
        %400 = vmatprep.subr.bf16.mxu0 0
        %401 = vmatpush2.bf16.msra.mxu0 0
        %402 = vmatprep.subr.bf16.mxu0 0
        %403 = vmatpush2.bf16.msra.mxu0 0
        %404 = vmatprep.subr.bf16.mxu0 0
        %405 = vmatpush2.bf16.msra.mxu0 0
        %406 = vmatprep.subr.bf16.mxu0 0
        %407 = vmatpush2.bf16.msra.mxu0 0
        %408 = vmatprep.subr.bf16.mxu0 0
        %409 = vmatpush2.bf16.msra.mxu0 0
        %410 = vmatprep.subr.bf16.mxu0 0
        %411 = vmatpush2.bf16.msra.mxu0 0
        %412 = vmatprep.subr.bf16.mxu0 0
        %413 = vmatpush2.bf16.msra.mxu0 0
        %414 = vmatprep.mubr.bf16.mxu0 0
        %415 = vmatmul.mubr.bf16.gmra.mxu0 %v371
        %v416 = vpop.f32.mrf.mxu0
        %v417 = vadd.f32 %v335, %v416
        %v418 = vpop.f32.mrf.mxu0
        %v419 = vpop.f32.mrf.mxu0
        %v420 = vadd.f32 %v335, %v419
        %v421 = vpop.f32.mrf.mxu0
        %422 = vmatprep.mubr.bf16.mxu0 0
        %423 = vmatmul.mubr.bf16.gmra.mxu0 %v374
        %v424 = vpop.f32.mrf.mxu0
        %v425 = vadd.f32 %v335, %v424
        %v426 = vpop.f32.mrf.mxu0
        %v427 = vpop.f32.mrf.mxu0
        %v428 = vadd.f32 %v335, %v427
        %v429 = vpop.f32.mrf.mxu0
        %430 = vmatprep.mubr.bf16.mxu0 0
        %431 = vmatmul.mubr.bf16.gmra.mxu0 %v377
        %v432 = vpop.f32.mrf.mxu0
        %v433 = vadd.f32 %v335, %v432
        %v434 = vpop.f32.mrf.mxu0
        %v435 = vpop.f32.mrf.mxu0
        %v436 = vadd.f32 %v335, %v435
        %v437 = vpop.f32.mrf.mxu0
        %438 = vmatprep.mubr.bf16.mxu0 0
        %439 = vmatmul.mubr.bf16.gmra.mxu0 %v380
        %v440 = vpop.f32.mrf.mxu0
        %v441 = vadd.f32 %v335, %v440
        %v442 = vpop.f32.mrf.mxu0
        %v443 = vpop.f32.mrf.mxu0
        %v444 = vadd.f32 %v335, %v443
        %v445 = vpop.f32.mrf.mxu0
        %446 = vdwg.mxu0
        %v447 = vpack.c.bf16 %v420, %v417
        %v448 = vpack.c.bf16 %v428, %v425
        %v449 = vpack.c.bf16 %v436, %v433
        %v450 = vpack.c.bf16 %v444, %v441
        %v451 = vld [vmem:[#allocation7] sm:$0xff]
        %v452 = vld [vmem:[#allocation7 + $0x8] sm:$0xff]
        %454 = vrot.lane.b32.xlu0 %v447, 96
        %v455 = vpop.permute.xlu0 %454
        %vm456 = vcmask 64512
        %v458 = vsel %vm456, %v447, 0
        %v461 = vsel %vm456, %v455, 0
        %463 = vmatprep.subr.bf16.mxu0 0
        %464 = vmatpush1.bf16.xpose.msra.mxu0 0
        %465 = vmatprep.subr.bf16.mxu0 0
        %466 = vmatpush1.bf16.xpose.msra.mxu0 0
        %467 = vmatprep.subr.bf16.mxu0 0
        %468 = vmatpush1.bf16.xpose.msra.mxu0 0
        %469 = vmatprep.subr.bf16.mxu0 0
        %470 = vmatpush1.bf16.xpose.msra.mxu0 0
        %471 = vmatprep.subr.bf16.mxu0 0
        %472 = vmatpush1.bf16.xpose.msra.mxu0 0
        %473 = vmatprep.subr.bf16.mxu0 0
        %474 = vmatpush1.bf16.xpose.msra.mxu0 0
        %475 = vmatprep.subr.bf16.mxu0 0
        %476 = vmatpush1.bf16.xpose.msra.mxu0 0
        %477 = vmatprep.subr.bf16.mxu0 0
        %478 = vmatpush1.bf16.xpose.msra.mxu0 %v461
        %479 = vmatprep.subr.bf16.mxu0 0
        %480 = vmatpush2.bf16.xpose.msra.mxu0 0
        %481 = vmatprep.subr.bf16.mxu0 0
        %482 = vmatpush2.bf16.xpose.msra.mxu0 0
        %483 = vmatprep.subr.bf16.mxu0 0
        %484 = vmatpush2.bf16.xpose.msra.mxu0 0
        %485 = vmatprep.subr.bf16.mxu0 0
        %486 = vmatpush2.bf16.xpose.msra.mxu0 0
        %487 = vmatprep.subr.bf16.mxu0 0
        %488 = vmatpush2.bf16.xpose.msra.mxu0 0
        %489 = vmatprep.subr.bf16.mxu0 0
        %490 = vmatpush2.bf16.xpose.msra.mxu0 0
        %491 = vmatprep.subr.bf16.mxu0 0
        %492 = vmatpush2.bf16.xpose.msra.mxu0 0
        %493 = vmatprep.subr.bf16.mxu0 0
        %494 = vmatpush2.bf16.xpose.msra.mxu0 0
        %495 = vmatprep.mubr.bf16.mxu0 0
        %496 = vmatmul.mubr.bf16.gmra.mxu0 %v458
        %v497 = vpop.f32.mrf.mxu0
        %v498 = vadd.f32 %v451, %v497
        %v499 = vpop.f32.mrf.mxu0
        %v500 = vpop.f32.mrf.mxu0
        %v501 = vadd.f32 %v452, %v500
        %v502 = vpop.f32.mrf.mxu0
        %503 = vdwg.mxu0
        %505 = vrot.lane.b32.xlu0 %v448, 96
        %v506 = vpop.permute.xlu0 %505
        %v508 = vsel %vm456, %v448, 0
        %v511 = vsel %vm456, %v506, 0
        %513 = vmatprep.subr.bf16.mxu0 0
        %514 = vmatpush1.bf16.xpose.msra.mxu0 0
        %515 = vmatprep.subr.bf16.mxu0 0
        %516 = vmatpush1.bf16.xpose.msra.mxu0 0
        %517 = vmatprep.subr.bf16.mxu0 0
        %518 = vmatpush1.bf16.xpose.msra.mxu0 0
        %519 = vmatprep.subr.bf16.mxu0 0
        %520 = vmatpush1.bf16.xpose.msra.mxu0 0
        %521 = vmatprep.subr.bf16.mxu0 0
        %522 = vmatpush1.bf16.xpose.msra.mxu0 0
        %523 = vmatprep.subr.bf16.mxu0 0
        %524 = vmatpush1.bf16.xpose.msra.mxu0 0
        %525 = vmatprep.subr.bf16.mxu0 0
        %526 = vmatpush1.bf16.xpose.msra.mxu0 0
        %527 = vmatprep.subr.bf16.mxu0 0
        %528 = vmatpush1.bf16.xpose.msra.mxu0 %v511
        %529 = vmatprep.subr.bf16.mxu0 0
        %530 = vmatpush2.bf16.xpose.msra.mxu0 0
        %531 = vmatprep.subr.bf16.mxu0 0
        %532 = vmatpush2.bf16.xpose.msra.mxu0 0
        %533 = vmatprep.subr.bf16.mxu0 0
        %534 = vmatpush2.bf16.xpose.msra.mxu0 0
        %535 = vmatprep.subr.bf16.mxu0 0
        %536 = vmatpush2.bf16.xpose.msra.mxu0 0
        %537 = vmatprep.subr.bf16.mxu0 0
        %538 = vmatpush2.bf16.xpose.msra.mxu0 0
        %539 = vmatprep.subr.bf16.mxu0 0
        %540 = vmatpush2.bf16.xpose.msra.mxu0 0
        %541 = vmatprep.subr.bf16.mxu0 0
        %542 = vmatpush2.bf16.xpose.msra.mxu0 0
        %543 = vmatprep.subr.bf16.mxu0 0
        %544 = vmatpush2.bf16.xpose.msra.mxu0 0
        %545 = vmatprep.mubr.bf16.mxu0 0
        %546 = vmatmul.mubr.bf16.gmra.mxu0 %v508
        %v547 = vpop.f32.mrf.mxu0
        %v548 = vadd.f32 %v451, %v547
        %v549 = vpop.f32.mrf.mxu0
        %v550 = vpop.f32.mrf.mxu0
        %v551 = vadd.f32 %v452, %v550
        %v552 = vpop.f32.mrf.mxu0
        %553 = vdwg.mxu0
        %555 = vrot.lane.b32.xlu0 %v449, 96
        %v556 = vpop.permute.xlu0 %555
        %v558 = vsel %vm456, %v449, 0
        %v561 = vsel %vm456, %v556, 0
        %563 = vmatprep.subr.bf16.mxu0 0
        %564 = vmatpush1.bf16.xpose.msra.mxu0 0
        %565 = vmatprep.subr.bf16.mxu0 0
        %566 = vmatpush1.bf16.xpose.msra.mxu0 0
        %567 = vmatprep.subr.bf16.mxu0 0
        %568 = vmatpush1.bf16.xpose.msra.mxu0 0
        %569 = vmatprep.subr.bf16.mxu0 0
        %570 = vmatpush1.bf16.xpose.msra.mxu0 0
        %571 = vmatprep.subr.bf16.mxu0 0
        %572 = vmatpush1.bf16.xpose.msra.mxu0 0
        %573 = vmatprep.subr.bf16.mxu0 0
        %574 = vmatpush1.bf16.xpose.msra.mxu0 0
        %575 = vmatprep.subr.bf16.mxu0 0
        %576 = vmatpush1.bf16.xpose.msra.mxu0 0
        %577 = vmatprep.subr.bf16.mxu0 0
        %578 = vmatpush1.bf16.xpose.msra.mxu0 %v561
        %579 = vmatprep.subr.bf16.mxu0 0
        %580 = vmatpush2.bf16.xpose.msra.mxu0 0
        %581 = vmatprep.subr.bf16.mxu0 0
        %582 = vmatpush2.bf16.xpose.msra.mxu0 0
        %583 = vmatprep.subr.bf16.mxu0 0
        %584 = vmatpush2.bf16.xpose.msra.mxu0 0
        %585 = vmatprep.subr.bf16.mxu0 0
        %586 = vmatpush2.bf16.xpose.msra.mxu0 0
        %587 = vmatprep.subr.bf16.mxu0 0
        %588 = vmatpush2.bf16.xpose.msra.mxu0 0
        %589 = vmatprep.subr.bf16.mxu0 0
        %590 = vmatpush2.bf16.xpose.msra.mxu0 0
        %591 = vmatprep.subr.bf16.mxu0 0
        %592 = vmatpush2.bf16.xpose.msra.mxu0 0
        %593 = vmatprep.subr.bf16.mxu0 0
        %594 = vmatpush2.bf16.xpose.msra.mxu0 0
        %595 = vmatprep.mubr.bf16.mxu0 0
        %596 = vmatmul.mubr.bf16.gmra.mxu0 %v558
        %v597 = vpop.f32.mrf.mxu0
        %v598 = vadd.f32 %v451, %v597
        %v599 = vpop.f32.mrf.mxu0
        %v600 = vpop.f32.mrf.mxu0
        %v601 = vadd.f32 %v452, %v600
        %v602 = vpop.f32.mrf.mxu0
        %603 = vdwg.mxu0
        %605 = vrot.lane.b32.xlu0 %v450, 96
        %v606 = vpop.permute.xlu0 %605
        %v608 = vsel %vm456, %v450, 0
        %v611 = vsel %vm456, %v606, 0
        %613 = vmatprep.subr.bf16.mxu0 0
        %614 = vmatpush1.bf16.xpose.msra.mxu0 0
        %615 = vmatprep.subr.bf16.mxu0 0
        %616 = vmatpush1.bf16.xpose.msra.mxu0 0
        %617 = vmatprep.subr.bf16.mxu0 0
        %618 = vmatpush1.bf16.xpose.msra.mxu0 0
        %619 = vmatprep.subr.bf16.mxu0 0
        %620 = vmatpush1.bf16.xpose.msra.mxu0 0
        %621 = vmatprep.subr.bf16.mxu0 0
        %622 = vmatpush1.bf16.xpose.msra.mxu0 0
        %623 = vmatprep.subr.bf16.mxu0 0
        %624 = vmatpush1.bf16.xpose.msra.mxu0 0
        %625 = vmatprep.subr.bf16.mxu0 0
        %626 = vmatpush1.bf16.xpose.msra.mxu0 0
        %627 = vmatprep.subr.bf16.mxu0 0
        %628 = vmatpush1.bf16.xpose.msra.mxu0 %v611
        %629 = vmatprep.subr.bf16.mxu0 0
        %630 = vmatpush2.bf16.xpose.msra.mxu0 0
        %631 = vmatprep.subr.bf16.mxu0 0
        %632 = vmatpush2.bf16.xpose.msra.mxu0 0
        %633 = vmatprep.subr.bf16.mxu0 0
        %634 = vmatpush2.bf16.xpose.msra.mxu0 0
        %635 = vmatprep.subr.bf16.mxu0 0
        %636 = vmatpush2.bf16.xpose.msra.mxu0 0
        %637 = vmatprep.subr.bf16.mxu0 0
        %638 = vmatpush2.bf16.xpose.msra.mxu0 0
        %639 = vmatprep.subr.bf16.mxu0 0
        %640 = vmatpush2.bf16.xpose.msra.mxu0 0
        %641 = vmatprep.subr.bf16.mxu0 0
        %642 = vmatpush2.bf16.xpose.msra.mxu0 0
        %643 = vmatprep.subr.bf16.mxu0 0
        %644 = vmatpush2.bf16.xpose.msra.mxu0 0
        %645 = vmatprep.mubr.bf16.mxu0 0
        %646 = vmatmul.mubr.bf16.gmra.mxu0 %v608
        %v647 = vpop.f32.mrf.mxu0
        %v648 = vadd.f32 %v451, %v647
        %v649 = vpop.f32.mrf.mxu0
        %v650 = vpop.f32.mrf.mxu0
        %v651 = vadd.f32 %v452, %v650
        %v652 = vpop.f32.mrf.mxu0
        %653 = vdwg.mxu0
        %vm654 = vcmask 130048
        %v655 = vsel %vm654, %v498, -inf
        %656 = vmax.xlane.f32.xlu0 %v655
        %v657 = vpop.xlane.xlu0 %656
        %v658 = vsel %vm654, %v501, -inf
        %659 = vmax.xlane.f32.xlu0 %v658
        %v660 = vpop.xlane.xlu0 %659
        %v661 = vsel %vm654, %v548, -inf
        %662 = vmax.xlane.f32.xlu0 %v661
        %v663 = vpop.xlane.xlu0 %662
        %v664 = vsel %vm654, %v551, -inf
        %665 = vmax.xlane.f32.xlu0 %v664
        %v666 = vpop.xlane.xlu0 %665
        %v667 = vsel %vm654, %v598, -inf
        %668 = vmax.xlane.f32.xlu0 %v667
        %v669 = vpop.xlane.xlu0 %668
        %v670 = vsel %vm654, %v601, -inf
        %671 = vmax.xlane.f32.xlu0 %v670
        %v672 = vpop.xlane.xlu0 %671
        %v673 = vsel %vm654, %v648, -inf
        %674 = vmax.xlane.f32.xlu0 %v673
        %v675 = vpop.xlane.xlu0 %674
        %v676 = vsel %vm654, %v651, -inf
        %677 = vmax.xlane.f32.xlu0 %v676
        %v678 = vpop.xlane.xlu0 %677
        %v679 = vsub.f32 %v498, %v657
        %v680 = vsub.f32 %v501, %v660
        %v681 = vsub.f32 %v548, %v663
        %v682 = vsub.f32 %v551, %v666
        %v683 = vsub.f32 %v598, %v669
        %v684 = vsub.f32 %v601, %v672
        %v685 = vsub.f32 %v648, %v675
        %v686 = vsub.f32 %v651, %v678
        %v687 = vmul.f32 %v679, 1.442695
        %v688 = vpow.pop %v687
        %v689 = vmul.f32 %v680, 1.442695
        %v690 = vpow.pop %v689
        %v691 = vmul.f32 %v681, 1.442695
        %v692 = vpow.pop %v691
        %v693 = vmul.f32 %v682, 1.442695
        %v694 = vpow.pop %v693
        %v695 = vmul.f32 %v683, 1.442695
        %v696 = vpow.pop %v695
        %v697 = vmul.f32 %v684, 1.442695
        %v698 = vpow.pop %v697
        %v699 = vmul.f32 %v685, 1.442695
        %v700 = vpow.pop %v699
        %v701 = vmul.f32 %v686, 1.442695
        %v702 = vpow.pop %v701
        %v703 = vsel %vm654, %v688, 0.0
        %704 = vadd.xlane.f32.xlu0 %v703
        %v705 = vpop.xlane.xlu0 %704
        %v706 = vsel %vm654, %v690, 0.0
        %707 = vadd.xlane.f32.xlu0 %v706
        %v708 = vpop.xlane.xlu0 %707
        %v709 = vsel %vm654, %v692, 0.0
        %710 = vadd.xlane.f32.xlu0 %v709
        %v711 = vpop.xlane.xlu0 %710
        %v712 = vsel %vm654, %v694, 0.0
        %713 = vadd.xlane.f32.xlu0 %v712
        %v714 = vpop.xlane.xlu0 %713
        %v715 = vsel %vm654, %v696, 0.0
        %716 = vadd.xlane.f32.xlu0 %v715
        %v717 = vpop.xlane.xlu0 %716
        %v718 = vsel %vm654, %v698, 0.0
        %719 = vadd.xlane.f32.xlu0 %v718
        %v720 = vpop.xlane.xlu0 %719
        %v721 = vsel %vm654, %v700, 0.0
        %722 = vadd.xlane.f32.xlu0 %v721
        %v723 = vpop.xlane.xlu0 %722
        %v724 = vsel %vm654, %v702, 0.0
        %725 = vadd.xlane.f32.xlu0 %v724
        %v726 = vpop.xlane.xlu0 %725
        %v727 = vrcp.pop %v705
        %v728 = vrcp.pop %v708
        %v729 = vrcp.pop %v711
        %v730 = vrcp.pop %v714
        %v731 = vrcp.pop %v717
        %v732 = vrcp.pop %v720
        %v733 = vrcp.pop %v723
        %v734 = vrcp.pop %v726
        %v735 = vmul.f32 %v688, %v727
        %v736 = vmul.f32 %v690, %v728
        %v737 = vmul.f32 %v692, %v729
        %v738 = vmul.f32 %v694, %v730
        %v739 = vmul.f32 %v696, %v731
        %v740 = vmul.f32 %v698, %v732
        %v741 = vmul.f32 %v700, %v733
        %v742 = vmul.f32 %v702, %v734
        %v743 = vpack.c.bf16 %v736, %v735
        %v744 = vpack.c.bf16 %v738, %v737
        %v745 = vpack.c.bf16 %v740, %v739
        %v746 = vpack.c.bf16 %v742, %v741
        %747 = vrot.lane.b32.xlu0 %v447, 64
        %v748 = vpop.permute.xlu0 %747
        %v751 = vsel %vm654, %v743, 0
        %753 = vmatprep.subr.bf16.mxu0 0
        %754 = vmatpush1.bf16.msra.mxu0 0
        %755 = vmatprep.subr.bf16.mxu0 0
        %756 = vmatpush1.bf16.msra.mxu0 0
        %757 = vmatprep.subr.bf16.mxu0 0
        %758 = vmatpush1.bf16.msra.mxu0 0
        %759 = vmatprep.subr.bf16.mxu0 0
        %760 = vmatpush1.bf16.msra.mxu0 0
        %761 = vmatprep.subr.bf16.mxu0 0
        %762 = vmatpush1.bf16.msra.mxu0 0
        %763 = vmatprep.subr.bf16.mxu0 0
        %764 = vmatpush1.bf16.msra.mxu0 0
        %765 = vmatprep.subr.bf16.mxu0 0
        %766 = vmatpush1.bf16.msra.mxu0 0
        %767 = vmatprep.subr.bf16.mxu0 0
        %768 = vmatpush1.bf16.msra.mxu0 %v748
        %769 = vmatprep.subr.bf16.mxu0 0
        %770 = vmatpush2.bf16.msra.mxu0 0
        %771 = vmatprep.subr.bf16.mxu0 0
        %772 = vmatpush2.bf16.msra.mxu0 0
        %773 = vmatprep.subr.bf16.mxu0 0
        %774 = vmatpush2.bf16.msra.mxu0 0
        %775 = vmatprep.subr.bf16.mxu0 0
        %776 = vmatpush2.bf16.msra.mxu0 0
        %777 = vmatprep.subr.bf16.mxu0 0
        %778 = vmatpush2.bf16.msra.mxu0 0
        %779 = vmatprep.subr.bf16.mxu0 0
        %780 = vmatpush2.bf16.msra.mxu0 0
        %781 = vmatprep.subr.bf16.mxu0 0
        %782 = vmatpush2.bf16.msra.mxu0 0
        %783 = vmatprep.subr.bf16.mxu0 0
        %784 = vmatpush2.bf16.msra.mxu0 0
        %785 = vmatprep.mubr.bf16.mxu0 0
        %786 = vmatmul.mubr.bf16.gmra.mxu0 %v751
        %v787 = vpop.f32.mrf.mxu0
        %v788 = vadd.f32 0.0, %v787
        %v789 = vpop.f32.mrf.mxu0
        %v790 = vpop.f32.mrf.mxu0
        %v791 = vadd.f32 0.0, %v790
        %v792 = vpop.f32.mrf.mxu0
        %793 = vdwg.mxu0
        %794 = vrot.lane.b32.xlu0 %v448, 64
        %v795 = vpop.permute.xlu0 %794
        %v798 = vsel %vm654, %v744, 0
        %800 = vmatprep.subr.bf16.mxu0 0
        %801 = vmatpush1.bf16.msra.mxu0 0
        %802 = vmatprep.subr.bf16.mxu0 0
        %803 = vmatpush1.bf16.msra.mxu0 0
        %804 = vmatprep.subr.bf16.mxu0 0
        %805 = vmatpush1.bf16.msra.mxu0 0
        %806 = vmatprep.subr.bf16.mxu0 0
        %807 = vmatpush1.bf16.msra.mxu0 0
        %808 = vmatprep.subr.bf16.mxu0 0
        %809 = vmatpush1.bf16.msra.mxu0 0
        %810 = vmatprep.subr.bf16.mxu0 0
        %811 = vmatpush1.bf16.msra.mxu0 0
        %812 = vmatprep.subr.bf16.mxu0 0
        %813 = vmatpush1.bf16.msra.mxu0 0
        %814 = vmatprep.subr.bf16.mxu0 0
        %815 = vmatpush1.bf16.msra.mxu0 %v795
        %816 = vmatprep.subr.bf16.mxu0 0
        %817 = vmatpush2.bf16.msra.mxu0 0
        %818 = vmatprep.subr.bf16.mxu0 0
        %819 = vmatpush2.bf16.msra.mxu0 0
        %820 = vmatprep.subr.bf16.mxu0 0
        %821 = vmatpush2.bf16.msra.mxu0 0
        %822 = vmatprep.subr.bf16.mxu0 0
        %823 = vmatpush2.bf16.msra.mxu0 0
        %824 = vmatprep.subr.bf16.mxu0 0
        %825 = vmatpush2.bf16.msra.mxu0 0
        %826 = vmatprep.subr.bf16.mxu0 0
        %827 = vmatpush2.bf16.msra.mxu0 0
        %828 = vmatprep.subr.bf16.mxu0 0
        %829 = vmatpush2.bf16.msra.mxu0 0
        %830 = vmatprep.subr.bf16.mxu0 0
        %831 = vmatpush2.bf16.msra.mxu0 0
        %832 = vmatprep.mubr.bf16.mxu0 0
        %833 = vmatmul.mubr.bf16.gmra.mxu0 %v798
        %v834 = vpop.f32.mrf.mxu0
        %v835 = vadd.f32 0.0, %v834
        %v836 = vpop.f32.mrf.mxu0
        %v837 = vpop.f32.mrf.mxu0
        %v838 = vadd.f32 0.0, %v837
        %v839 = vpop.f32.mrf.mxu0
        %840 = vdwg.mxu0
        %841 = vrot.lane.b32.xlu0 %v449, 64
        %v842 = vpop.permute.xlu0 %841
        %v845 = vsel %vm654, %v745, 0
        %847 = vmatprep.subr.bf16.mxu0 0
        %848 = vmatpush1.bf16.msra.mxu0 0
        %849 = vmatprep.subr.bf16.mxu0 0
        %850 = vmatpush1.bf16.msra.mxu0 0
        %851 = vmatprep.subr.bf16.mxu0 0
        %852 = vmatpush1.bf16.msra.mxu0 0
        %853 = vmatprep.subr.bf16.mxu0 0
        %854 = vmatpush1.bf16.msra.mxu0 0
        %855 = vmatprep.subr.bf16.mxu0 0
        %856 = vmatpush1.bf16.msra.mxu0 0
        %857 = vmatprep.subr.bf16.mxu0 0
        %858 = vmatpush1.bf16.msra.mxu0 0
        %859 = vmatprep.subr.bf16.mxu0 0
        %860 = vmatpush1.bf16.msra.mxu0 0
        %861 = vmatprep.subr.bf16.mxu0 0
        %862 = vmatpush1.bf16.msra.mxu0 %v842
        %863 = vmatprep.subr.bf16.mxu0 0
        %864 = vmatpush2.bf16.msra.mxu0 0
        %865 = vmatprep.subr.bf16.mxu0 0
        %866 = vmatpush2.bf16.msra.mxu0 0
        %867 = vmatprep.subr.bf16.mxu0 0
        %868 = vmatpush2.bf16.msra.mxu0 0
        %869 = vmatprep.subr.bf16.mxu0 0
        %870 = vmatpush2.bf16.msra.mxu0 0
        %871 = vmatprep.subr.bf16.mxu0 0
        %872 = vmatpush2.bf16.msra.mxu0 0
        %873 = vmatprep.subr.bf16.mxu0 0
        %874 = vmatpush2.bf16.msra.mxu0 0
        %875 = vmatprep.subr.bf16.mxu0 0
        %876 = vmatpush2.bf16.msra.mxu0 0
        %877 = vmatprep.subr.bf16.mxu0 0
        %878 = vmatpush2.bf16.msra.mxu0 0
        %879 = vmatprep.mubr.bf16.mxu0 0
        %880 = vmatmul.mubr.bf16.gmra.mxu0 %v845
        %v881 = vpop.f32.mrf.mxu0
        %v882 = vadd.f32 0.0, %v881
        %v883 = vpop.f32.mrf.mxu0
        %v884 = vpop.f32.mrf.mxu0
        %v885 = vadd.f32 0.0, %v884
        %v886 = vpop.f32.mrf.mxu0
        %887 = vdwg.mxu0
        %888 = vrot.lane.b32.xlu0 %v450, 64
        %v889 = vpop.permute.xlu0 %888
        %v892 = vsel %vm654, %v746, 0
        %894 = vmatprep.subr.bf16.mxu0 0
        %895 = vmatpush1.bf16.msra.mxu0 0
        %896 = vmatprep.subr.bf16.mxu0 0
        %897 = vmatpush1.bf16.msra.mxu0 0
        %898 = vmatprep.subr.bf16.mxu0 0
        %899 = vmatpush1.bf16.msra.mxu0 0
        %900 = vmatprep.subr.bf16.mxu0 0
        %901 = vmatpush1.bf16.msra.mxu0 0
        %902 = vmatprep.subr.bf16.mxu0 0
        %903 = vmatpush1.bf16.msra.mxu0 0
        %904 = vmatprep.subr.bf16.mxu0 0
        %905 = vmatpush1.bf16.msra.mxu0 0
        %906 = vmatprep.subr.bf16.mxu0 0
        %907 = vmatpush1.bf16.msra.mxu0 0
        %908 = vmatprep.subr.bf16.mxu0 0
        %909 = vmatpush1.bf16.msra.mxu0 %v889
        %910 = vmatprep.subr.bf16.mxu0 0
        %911 = vmatpush2.bf16.msra.mxu0 0
        %912 = vmatprep.subr.bf16.mxu0 0
        %913 = vmatpush2.bf16.msra.mxu0 0
        %914 = vmatprep.subr.bf16.mxu0 0
        %915 = vmatpush2.bf16.msra.mxu0 0
        %916 = vmatprep.subr.bf16.mxu0 0
        %917 = vmatpush2.bf16.msra.mxu0 0
        %918 = vmatprep.subr.bf16.mxu0 0
        %919 = vmatpush2.bf16.msra.mxu0 0
        %920 = vmatprep.subr.bf16.mxu0 0
        %921 = vmatpush2.bf16.msra.mxu0 0
        %922 = vmatprep.subr.bf16.mxu0 0
        %923 = vmatpush2.bf16.msra.mxu0 0
        %924 = vmatprep.subr.bf16.mxu0 0
        %925 = vmatpush2.bf16.msra.mxu0 0
        %926 = vmatprep.mubr.bf16.mxu0 0
        %927 = vmatmul.mubr.bf16.gmra.mxu0 %v892
        %v928 = vpop.f32.mrf.mxu0
        %v929 = vadd.f32 0.0, %v928
        %v930 = vpop.f32.mrf.mxu0
        %v931 = vpop.f32.mrf.mxu0
        %v932 = vadd.f32 0.0, %v931
        %v933 = vpop.f32.mrf.mxu0
        %934 = vdwg.mxu0
        %v935 = vpack.c.bf16 %v791, %v788
        %v936 = vpack.c.bf16 %v838, %v835
        %v937 = vpack.c.bf16 %v885, %v882
        %v938 = vpack.c.bf16 %v932, %v929
        %v939 = vld [vmem:[#allocation8] sm:$0xf]
        %s940 = scalar_lea.vmem [#allocation7], 16
        %v941 = vld [vmem:[%s940] sm:$0xff]
        %v942 = vld [vmem:[%s940 + $0x8] sm:$0xff]
        %943 = vrot.lane.b32.xlu0 %v447, 120
        %v944 = vpop.permute.xlu0 %943
        %945 = vrot.lane.b32.xlu0 %v447, 88
        %v946 = vpop.permute.xlu0 %945
        %v948 = vsel %vm456, %v944, 0
        %v951 = vsel %vm456, %v946, 0
        %953 = vmatprep.subr.bf16.mxu0 0
        %954 = vmatpush1.bf16.xpose.msra.mxu0 0
        %955 = vmatprep.subr.bf16.mxu0 0
        %956 = vmatpush1.bf16.xpose.msra.mxu0 0
        %957 = vmatprep.subr.bf16.mxu0 0
        %958 = vmatpush1.bf16.xpose.msra.mxu0 0
        %959 = vmatprep.subr.bf16.mxu0 0
        %960 = vmatpush1.bf16.xpose.msra.mxu0 0
        %961 = vmatprep.subr.bf16.mxu0 0
        %962 = vmatpush1.bf16.xpose.msra.mxu0 0
        %963 = vmatprep.subr.bf16.mxu0 0
        %964 = vmatpush1.bf16.xpose.msra.mxu0 0
        %965 = vmatprep.subr.bf16.mxu0 0
        %966 = vmatpush1.bf16.xpose.msra.mxu0 0
        %967 = vmatprep.subr.bf16.mxu0 0
        %968 = vmatpush1.bf16.xpose.msra.mxu0 %v951
        %969 = vmatprep.subr.bf16.mxu0 0
        %970 = vmatpush2.bf16.xpose.msra.mxu0 0
        %971 = vmatprep.subr.bf16.mxu0 0
        %972 = vmatpush2.bf16.xpose.msra.mxu0 0
        %973 = vmatprep.subr.bf16.mxu0 0
        %974 = vmatpush2.bf16.xpose.msra.mxu0 0
        %975 = vmatprep.subr.bf16.mxu0 0
        %976 = vmatpush2.bf16.xpose.msra.mxu0 0
        %977 = vmatprep.subr.bf16.mxu0 0
        %978 = vmatpush2.bf16.xpose.msra.mxu0 0
        %979 = vmatprep.subr.bf16.mxu0 0
        %980 = vmatpush2.bf16.xpose.msra.mxu0 0
        %981 = vmatprep.subr.bf16.mxu0 0
        %982 = vmatpush2.bf16.xpose.msra.mxu0 0
        %983 = vmatprep.subr.bf16.mxu0 0
        %984 = vmatpush2.bf16.xpose.msra.mxu0 0
        %985 = vmatprep.mubr.bf16.mxu0 0
        %986 = vmatmul.mubr.bf16.gmra.mxu0 %v948
        %v987 = vpop.f32.mrf.mxu0
        %v988 = vadd.f32 %v941, %v987
        %v989 = vpop.f32.mrf.mxu0
        %v990 = vpop.f32.mrf.mxu0
        %v991 = vadd.f32 %v942, %v990
        %v992 = vpop.f32.mrf.mxu0
        %993 = vdwg.mxu0
        %994 = vrot.lane.b32.xlu0 %v448, 120
        %v995 = vpop.permute.xlu0 %994
        %996 = vrot.lane.b32.xlu0 %v448, 88
        %v997 = vpop.permute.xlu0 %996
        %v999 = vsel %vm456, %v995, 0
        %v1002 = vsel %vm456, %v997, 0
        %1004 = vmatprep.subr.bf16.mxu0 0
        %1005 = vmatpush1.bf16.xpose.msra.mxu0 0
        %1006 = vmatprep.subr.bf16.mxu0 0
        %1007 = vmatpush1.bf16.xpose.msra.mxu0 0
        %1008 = vmatprep.subr.bf16.mxu0 0
        %1009 = vmatpush1.bf16.xpose.msra.mxu0 0
        %1010 = vmatprep.subr.bf16.mxu0 0
        %1011 = vmatpush1.bf16.xpose.msra.mxu0 0
        %1012 = vmatprep.subr.bf16.mxu0 0
        %1013 = vmatpush1.bf16.xpose.msra.mxu0 0
        %1014 = vmatprep.subr.bf16.mxu0 0
        %1015 = vmatpush1.bf16.xpose.msra.mxu0 0
        %1016 = vmatprep.subr.bf16.mxu0 0
        %1017 = vmatpush1.bf16.xpose.msra.mxu0 0
        %1018 = vmatprep.subr.bf16.mxu0 0
        %1019 = vmatpush1.bf16.xpose.msra.mxu0 %v1002
        %1020 = vmatprep.subr.bf16.mxu0 0
        %1021 = vmatpush2.bf16.xpose.msra.mxu0 0
        %1022 = vmatprep.subr.bf16.mxu0 0
        %1023 = vmatpush2.bf16.xpose.msra.mxu0 0
        %1024 = vmatprep.subr.bf16.mxu0 0
        %1025 = vmatpush2.bf16.xpose.msra.mxu0 0
        %1026 = vmatprep.subr.bf16.mxu0 0
        %1027 = vmatpush2.bf16.xpose.msra.mxu0 0
        %1028 = vmatprep.subr.bf16.mxu0 0
        %1029 = vmatpush2.bf16.xpose.msra.mxu0 0
        %1030 = vmatprep.subr.bf16.mxu0 0
        %1031 = vmatpush2.bf16.xpose.msra.mxu0 0
        %1032 = vmatprep.subr.bf16.mxu0 0
        %1033 = vmatpush2.bf16.xpose.msra.mxu0 0
        %1034 = vmatprep.subr.bf16.mxu0 0
        %1035 = vmatpush2.bf16.xpose.msra.mxu0 0
        %1036 = vmatprep.mubr.bf16.mxu0 0
        %1037 = vmatmul.mubr.bf16.gmra.mxu0 %v999
        %v1038 = vpop.f32.mrf.mxu0
        %v1039 = vadd.f32 %v941, %v1038
        %v1040 = vpop.f32.mrf.mxu0
        %v1041 = vpop.f32.mrf.mxu0
        %v1042 = vadd.f32 %v942, %v1041
        %v1043 = vpop.f32.mrf.mxu0
        %1044 = vdwg.mxu0
        %1045 = vrot.lane.b32.xlu0 %v449, 120
        %v1046 = vpop.permute.xlu0 %1045
        %1047 = vrot.lane.b32.xlu0 %v449, 88
        %v1048 = vpop.permute.xlu0 %1047
        %v1050 = vsel %vm456, %v1046, 0
        %v1053 = vsel %vm456, %v1048, 0
        %1055 = vmatprep.subr.bf16.mxu0 0
        %1056 = vmatpush1.bf16.xpose.msra.mxu0 0
        %1057 = vmatprep.subr.bf16.mxu0 0
        %1058 = vmatpush1.bf16.xpose.msra.mxu0 0
        %1059 = vmatprep.subr.bf16.mxu0 0
        %1060 = vmatpush1.bf16.xpose.msra.mxu0 0
        %1061 = vmatprep.subr.bf16.mxu0 0
        %1062 = vmatpush1.bf16.xpose.msra.mxu0 0
        %1063 = vmatprep.subr.bf16.mxu0 0
        %1064 = vmatpush1.bf16.xpose.msra.mxu0 0
        %1065 = vmatprep.subr.bf16.mxu0 0
        %1066 = vmatpush1.bf16.xpose.msra.mxu0 0
        %1067 = vmatprep.subr.bf16.mxu0 0
        %1068 = vmatpush1.bf16.xpose.msra.mxu0 0
        %1069 = vmatprep.subr.bf16.mxu0 0
        %1070 = vmatpush1.bf16.xpose.msra.mxu0 %v1053
        %1071 = vmatprep.subr.bf16.mxu0 0
        %1072 = vmatpush2.bf16.xpose.msra.mxu0 0
        %1073 = vmatprep.subr.bf16.mxu0 0
        %1074 = vmatpush2.bf16.xpose.msra.mxu0 0
        %1075 = vmatprep.subr.bf16.mxu0 0
        %1076 = vmatpush2.bf16.xpose.msra.mxu0 0
        %1077 = vmatprep.subr.bf16.mxu0 0
        %1078 = vmatpush2.bf16.xpose.msra.mxu0 0
        %1079 = vmatprep.subr.bf16.mxu0 0
        %1080 = vmatpush2.bf16.xpose.msra.mxu0 0
        %1081 = vmatprep.subr.bf16.mxu0 0
        %1082 = vmatpush2.bf16.xpose.msra.mxu0 0
        %1083 = vmatprep.subr.bf16.mxu0 0
        %1084 = vmatpush2.bf16.xpose.msra.mxu0 0
        %1085 = vmatprep.subr.bf16.mxu0 0
        %1086 = vmatpush2.bf16.xpose.msra.mxu0 0
        %1087 = vmatprep.mubr.bf16.mxu0 0
        %1088 = vmatmul.mubr.bf16.gmra.mxu0 %v1050
        %v1089 = vpop.f32.mrf.mxu0
        %v1090 = vadd.f32 %v941, %v1089
        %v1091 = vpop.f32.mrf.mxu0
        %v1092 = vpop.f32.mrf.mxu0
        %v1093 = vadd.f32 %v942, %v1092
        %v1094 = vpop.f32.mrf.mxu0
        %1095 = vdwg.mxu0
        %1096 = vrot.lane.b32.xlu0 %v450, 120
        %v1097 = vpop.permute.xlu0 %1096
        %1098 = vrot.lane.b32.xlu0 %v450, 88
        %v1099 = vpop.permute.xlu0 %1098
        %v1101 = vsel %vm456, %v1097, 0
        %v1104 = vsel %vm456, %v1099, 0
        %1106 = vmatprep.subr.bf16.mxu0 0
        %1107 = vmatpush1.bf16.xpose.msra.mxu0 0
        %1108 = vmatprep.subr.bf16.mxu0 0
        %1109 = vmatpush1.bf16.xpose.msra.mxu0 0
        %1110 = vmatprep.subr.bf16.mxu0 0
        %1111 = vmatpush1.bf16.xpose.msra.mxu0 0
        %1112 = vmatprep.subr.bf16.mxu0 0
        %1113 = vmatpush1.bf16.xpose.msra.mxu0 0
        %1114 = vmatprep.subr.bf16.mxu0 0
        %1115 = vmatpush1.bf16.xpose.msra.mxu0 0
        %1116 = vmatprep.subr.bf16.mxu0 0
        %1117 = vmatpush1.bf16.xpose.msra.mxu0 0
        %1118 = vmatprep.subr.bf16.mxu0 0
        %1119 = vmatpush1.bf16.xpose.msra.mxu0 0
        %1120 = vmatprep.subr.bf16.mxu0 0
        %1121 = vmatpush1.bf16.xpose.msra.mxu0 %v1104
        %1122 = vmatprep.subr.bf16.mxu0 0
        %1123 = vmatpush2.bf16.xpose.msra.mxu0 0
        %1124 = vmatprep.subr.bf16.mxu0 0
        %1125 = vmatpush2.bf16.xpose.msra.mxu0 0
        %1126 = vmatprep.subr.bf16.mxu0 0
        %1127 = vmatpush2.bf16.xpose.msra.mxu0 0
        %1128 = vmatprep.subr.bf16.mxu0 0
        %1129 = vmatpush2.bf16.xpose.msra.mxu0 0
        %1130 = vmatprep.subr.bf16.mxu0 0
        %1131 = vmatpush2.bf16.xpose.msra.mxu0 0
        %1132 = vmatprep.subr.bf16.mxu0 0
        %1133 = vmatpush2.bf16.xpose.msra.mxu0 0
        %1134 = vmatprep.subr.bf16.mxu0 0
        %1135 = vmatpush2.bf16.xpose.msra.mxu0 0
        %1136 = vmatprep.subr.bf16.mxu0 0
        %1137 = vmatpush2.bf16.xpose.msra.mxu0 0
        %1138 = vmatprep.mubr.bf16.mxu0 0
        %1139 = vmatmul.mubr.bf16.gmra.mxu0 %v1101
        %v1140 = vpop.f32.mrf.mxu0
        %v1141 = vadd.f32 %v941, %v1140
        %v1142 = vpop.f32.mrf.mxu0
        %v1143 = vpop.f32.mrf.mxu0
        %v1144 = vadd.f32 %v942, %v1143
        %v1145 = vpop.f32.mrf.mxu0
        %1146 = vdwg.mxu0
        %v1147 = vsel %vm654, %v988, -inf
        %1148 = vmax.xlane.f32.xlu0 %v1147
        %v1149 = vpop.xlane.xlu0 %1148
        %v1150 = vsel %vm654, %v991, -inf
        %1151 = vmax.xlane.f32.xlu0 %v1150
        %v1152 = vpop.xlane.xlu0 %1151
        %v1153 = vsel %vm654, %v1039, -inf
        %1154 = vmax.xlane.f32.xlu0 %v1153
        %v1155 = vpop.xlane.xlu0 %1154
        %v1156 = vsel %vm654, %v1042, -inf
        %1157 = vmax.xlane.f32.xlu0 %v1156
        %v1158 = vpop.xlane.xlu0 %1157
        %v1159 = vsel %vm654, %v1090, -inf
        %1160 = vmax.xlane.f32.xlu0 %v1159
        %v1161 = vpop.xlane.xlu0 %1160
        %v1162 = vsel %vm654, %v1093, -inf
        %1163 = vmax.xlane.f32.xlu0 %v1162
        %v1164 = vpop.xlane.xlu0 %1163
        %v1165 = vsel %vm654, %v1141, -inf
        %1166 = vmax.xlane.f32.xlu0 %v1165
        %v1167 = vpop.xlane.xlu0 %1166
        %v1168 = vsel %vm654, %v1144, -inf
        %1169 = vmax.xlane.f32.xlu0 %v1168
        %v1170 = vpop.xlane.xlu0 %1169
        %v1171 = vsub.f32 %v988, %v1149
        %v1172 = vsub.f32 %v991, %v1152
        %v1173 = vsub.f32 %v1039, %v1155
        %v1174 = vsub.f32 %v1042, %v1158
        %v1175 = vsub.f32 %v1090, %v1161
        %v1176 = vsub.f32 %v1093, %v1164
        %v1177 = vsub.f32 %v1141, %v1167
        %v1178 = vsub.f32 %v1144, %v1170
        %v1179 = vmul.f32 %v1171, 1.442695
        %v1180 = vpow.pop %v1179
        %v1181 = vmul.f32 %v1172, 1.442695
        %v1182 = vpow.pop %v1181
        %v1183 = vmul.f32 %v1173, 1.442695
        %v1184 = vpow.pop %v1183
        %v1185 = vmul.f32 %v1174, 1.442695
        %v1186 = vpow.pop %v1185
        %v1187 = vmul.f32 %v1175, 1.442695
        %v1188 = vpow.pop %v1187
        %v1189 = vmul.f32 %v1176, 1.442695
        %v1190 = vpow.pop %v1189
        %v1191 = vmul.f32 %v1177, 1.442695
        %v1192 = vpow.pop %v1191
        %v1193 = vmul.f32 %v1178, 1.442695
        %v1194 = vpow.pop %v1193
        %v1195 = vsel %vm654, %v1180, 0.0
        %1196 = vadd.xlane.f32.xlu0 %v1195
        %v1197 = vpop.xlane.xlu0 %1196
        %v1198 = vsel %vm654, %v1182, 0.0
        %1199 = vadd.xlane.f32.xlu0 %v1198
        %v1200 = vpop.xlane.xlu0 %1199
        %v1201 = vsel %vm654, %v1184, 0.0
        %1202 = vadd.xlane.f32.xlu0 %v1201
        %v1203 = vpop.xlane.xlu0 %1202
        %v1204 = vsel %vm654, %v1186, 0.0
        %1205 = vadd.xlane.f32.xlu0 %v1204
        %v1206 = vpop.xlane.xlu0 %1205
        %v1207 = vsel %vm654, %v1188, 0.0
        %1208 = vadd.xlane.f32.xlu0 %v1207
        %v1209 = vpop.xlane.xlu0 %1208
        %v1210 = vsel %vm654, %v1190, 0.0
        %1211 = vadd.xlane.f32.xlu0 %v1210
        %v1212 = vpop.xlane.xlu0 %1211
        %v1213 = vsel %vm654, %v1192, 0.0
        %1214 = vadd.xlane.f32.xlu0 %v1213
        %v1215 = vpop.xlane.xlu0 %1214
        %v1216 = vsel %vm654, %v1194, 0.0
        %1217 = vadd.xlane.f32.xlu0 %v1216
        %v1218 = vpop.xlane.xlu0 %1217
        %v1219 = vrcp.pop %v1197
        %v1220 = vrcp.pop %v1200
        %v1221 = vrcp.pop %v1203
        %v1222 = vrcp.pop %v1206
        %v1223 = vrcp.pop %v1209
        %v1224 = vrcp.pop %v1212
        %v1225 = vrcp.pop %v1215
        %v1226 = vrcp.pop %v1218
        %v1227 = vmul.f32 %v1180, %v1219
        %v1228 = vmul.f32 %v1182, %v1220
        %v1229 = vmul.f32 %v1184, %v1221
        %v1230 = vmul.f32 %v1186, %v1222
        %v1231 = vmul.f32 %v1188, %v1223
        %v1232 = vmul.f32 %v1190, %v1224
        %v1233 = vmul.f32 %v1192, %v1225
        %v1234 = vmul.f32 %v1194, %v1226
        %v1235 = vpack.c.bf16 %v1228, %v1227
        %v1236 = vpack.c.bf16 %v1230, %v1229
        %v1237 = vpack.c.bf16 %v1232, %v1231
        %v1238 = vpack.c.bf16 %v1234, %v1233
        %1239 = vrot.lane.b32.xlu0 %v447, 56
        %v1240 = vpop.permute.xlu0 %1239
        %v1243 = vsel %vm654, %v1235, 0
        %1245 = vmatprep.subr.bf16.mxu0 0
        %1246 = vmatpush1.bf16.msra.mxu0 0
        %1247 = vmatprep.subr.bf16.mxu0 0
        %1248 = vmatpush1.bf16.msra.mxu0 0
        %1249 = vmatprep.subr.bf16.mxu0 0
        %1250 = vmatpush1.bf16.msra.mxu0 0
        %1251 = vmatprep.subr.bf16.mxu0 0
        %1252 = vmatpush1.bf16.msra.mxu0 0
        %1253 = vmatprep.subr.bf16.mxu0 0
        %1254 = vmatpush1.bf16.msra.mxu0 0
        %1255 = vmatprep.subr.bf16.mxu0 0
        %1256 = vmatpush1.bf16.msra.mxu0 0
        %1257 = vmatprep.subr.bf16.mxu0 0
        %1258 = vmatpush1.bf16.msra.mxu0 0
        %1259 = vmatprep.subr.bf16.mxu0 0
        %1260 = vmatpush1.bf16.msra.mxu0 %v1240
        %1261 = vmatprep.subr.bf16.mxu0 0
        %1262 = vmatpush2.bf16.msra.mxu0 0
        %1263 = vmatprep.subr.bf16.mxu0 0
        %1264 = vmatpush2.bf16.msra.mxu0 0
        %1265 = vmatprep.subr.bf16.mxu0 0
        %1266 = vmatpush2.bf16.msra.mxu0 0
        %1267 = vmatprep.subr.bf16.mxu0 0
        %1268 = vmatpush2.bf16.msra.mxu0 0
        %1269 = vmatprep.subr.bf16.mxu0 0
        %1270 = vmatpush2.bf16.msra.mxu0 0
        %1271 = vmatprep.subr.bf16.mxu0 0
        %1272 = vmatpush2.bf16.msra.mxu0 0
        %1273 = vmatprep.subr.bf16.mxu0 0
        %1274 = vmatpush2.bf16.msra.mxu0 0
        %1275 = vmatprep.subr.bf16.mxu0 0
        %1276 = vmatpush2.bf16.msra.mxu0 0
        %1277 = vmatprep.mubr.bf16.mxu0 0
        %1278 = vmatmul.mubr.bf16.gmra.mxu0 %v1243
        %v1279 = vpop.f32.mrf.mxu0
        %v1280 = vadd.f32 0.0, %v1279
        %v1281 = vpop.f32.mrf.mxu0
        %v1282 = vpop.f32.mrf.mxu0
        %v1283 = vadd.f32 0.0, %v1282
        %v1284 = vpop.f32.mrf.mxu0
        %1285 = vdwg.mxu0
        %1286 = vrot.lane.b32.xlu0 %v448, 56
        %v1287 = vpop.permute.xlu0 %1286
        %v1290 = vsel %vm654, %v1236, 0
        %1292 = vmatprep.subr.bf16.mxu0 0
        %1293 = vmatpush1.bf16.msra.mxu0 0
        %1294 = vmatprep.subr.bf16.mxu0 0
        %1295 = vmatpush1.bf16.msra.mxu0 0
        %1296 = vmatprep.subr.bf16.mxu0 0
        %1297 = vmatpush1.bf16.msra.mxu0 0
        %1298 = vmatprep.subr.bf16.mxu0 0
        %1299 = vmatpush1.bf16.msra.mxu0 0
        %1300 = vmatprep.subr.bf16.mxu0 0
        %1301 = vmatpush1.bf16.msra.mxu0 0
        %1302 = vmatprep.subr.bf16.mxu0 0
        %1303 = vmatpush1.bf16.msra.mxu0 0
        %1304 = vmatprep.subr.bf16.mxu0 0
        %1305 = vmatpush1.bf16.msra.mxu0 0
        %1306 = vmatprep.subr.bf16.mxu0 0
        %1307 = vmatpush1.bf16.msra.mxu0 %v1287
        %1308 = vmatprep.subr.bf16.mxu0 0
        %1309 = vmatpush2.bf16.msra.mxu0 0
        %1310 = vmatprep.subr.bf16.mxu0 0
        %1311 = vmatpush2.bf16.msra.mxu0 0
        %1312 = vmatprep.subr.bf16.mxu0 0
        %1313 = vmatpush2.bf16.msra.mxu0 0
        %1314 = vmatprep.subr.bf16.mxu0 0
        %1315 = vmatpush2.bf16.msra.mxu0 0
        %1316 = vmatprep.subr.bf16.mxu0 0
        %1317 = vmatpush2.bf16.msra.mxu0 0
        %1318 = vmatprep.subr.bf16.mxu0 0
        %1319 = vmatpush2.bf16.msra.mxu0 0
        %1320 = vmatprep.subr.bf16.mxu0 0
        %1321 = vmatpush2.bf16.msra.mxu0 0
        %1322 = vmatprep.subr.bf16.mxu0 0
        %1323 = vmatpush2.bf16.msra.mxu0 0
        %1324 = vmatprep.mubr.bf16.mxu0 0
        %1325 = vmatmul.mubr.bf16.gmra.mxu0 %v1290
        %v1326 = vpop.f32.mrf.mxu0
        %v1327 = vadd.f32 0.0, %v1326
        %v1328 = vpop.f32.mrf.mxu0
        %v1329 = vpop.f32.mrf.mxu0
        %v1330 = vadd.f32 0.0, %v1329
        %v1331 = vpop.f32.mrf.mxu0
        %1332 = vdwg.mxu0
        %1333 = vrot.lane.b32.xlu0 %v449, 56
        %v1334 = vpop.permute.xlu0 %1333
        %v1337 = vsel %vm654, %v1237, 0
        %1339 = vmatprep.subr.bf16.mxu0 0
        %1340 = vmatpush1.bf16.msra.mxu0 0
        %1341 = vmatprep.subr.bf16.mxu0 0
        %1342 = vmatpush1.bf16.msra.mxu0 0
        %1343 = vmatprep.subr.bf16.mxu0 0
        %1344 = vmatpush1.bf16.msra.mxu0 0
        %1345 = vmatprep.subr.bf16.mxu0 0
        %1346 = vmatpush1.bf16.msra.mxu0 0
        %1347 = vmatprep.subr.bf16.mxu0 0
        %1348 = vmatpush1.bf16.msra.mxu0 0
        %1349 = vmatprep.subr.bf16.mxu0 0
        %1350 = vmatpush1.bf16.msra.mxu0 0
        %1351 = vmatprep.subr.bf16.mxu0 0
        %1352 = vmatpush1.bf16.msra.mxu0 0
        %1353 = vmatprep.subr.bf16.mxu0 0
        %1354 = vmatpush1.bf16.msra.mxu0 %v1334
        %1355 = vmatprep.subr.bf16.mxu0 0
        %1356 = vmatpush2.bf16.msra.mxu0 0
        %1357 = vmatprep.subr.bf16.mxu0 0
        %1358 = vmatpush2.bf16.msra.mxu0 0
        %1359 = vmatprep.subr.bf16.mxu0 0
        %1360 = vmatpush2.bf16.msra.mxu0 0
        %1361 = vmatprep.subr.bf16.mxu0 0
        %1362 = vmatpush2.bf16.msra.mxu0 0
        %1363 = vmatprep.subr.bf16.mxu0 0
        %1364 = vmatpush2.bf16.msra.mxu0 0
        %1365 = vmatprep.subr.bf16.mxu0 0
        %1366 = vmatpush2.bf16.msra.mxu0 0
        %1367 = vmatprep.subr.bf16.mxu0 0
        %1368 = vmatpush2.bf16.msra.mxu0 0
        %1369 = vmatprep.subr.bf16.mxu0 0
        %1370 = vmatpush2.bf16.msra.mxu0 0
        %1371 = vmatprep.mubr.bf16.mxu0 0
        %1372 = vmatmul.mubr.bf16.gmra.mxu0 %v1337
        %v1373 = vpop.f32.mrf.mxu0
        %v1374 = vadd.f32 0.0, %v1373
        %v1375 = vpop.f32.mrf.mxu0
        %v1376 = vpop.f32.mrf.mxu0
        %v1377 = vadd.f32 0.0, %v1376
        %v1378 = vpop.f32.mrf.mxu0
        %1379 = vdwg.mxu0
        %1380 = vrot.lane.b32.xlu0 %v450, 56
        %v1381 = vpop.permute.xlu0 %1380
        %v1384 = vsel %vm654, %v1238, 0
        %1386 = vmatprep.subr.bf16.mxu0 0
        %1387 = vmatpush1.bf16.msra.mxu0 0
        %1388 = vmatprep.subr.bf16.mxu0 0
        %1389 = vmatpush1.bf16.msra.mxu0 0
        %1390 = vmatprep.subr.bf16.mxu0 0
        %1391 = vmatpush1.bf16.msra.mxu0 0
        %1392 = vmatprep.subr.bf16.mxu0 0
        %1393 = vmatpush1.bf16.msra.mxu0 0
        %1394 = vmatprep.subr.bf16.mxu0 0
        %1395 = vmatpush1.bf16.msra.mxu0 0
        %1396 = vmatprep.subr.bf16.mxu0 0
        %1397 = vmatpush1.bf16.msra.mxu0 0
        %1398 = vmatprep.subr.bf16.mxu0 0
        %1399 = vmatpush1.bf16.msra.mxu0 0
        %1400 = vmatprep.subr.bf16.mxu0 0
        %1401 = vmatpush1.bf16.msra.mxu0 %v1381
        %1402 = vmatprep.subr.bf16.mxu0 0
        %1403 = vmatpush2.bf16.msra.mxu0 0
        %1404 = vmatprep.subr.bf16.mxu0 0
        %1405 = vmatpush2.bf16.msra.mxu0 0
        %1406 = vmatprep.subr.bf16.mxu0 0
        %1407 = vmatpush2.bf16.msra.mxu0 0
        %1408 = vmatprep.subr.bf16.mxu0 0
        %1409 = vmatpush2.bf16.msra.mxu0 0
        %1410 = vmatprep.subr.bf16.mxu0 0
        %1411 = vmatpush2.bf16.msra.mxu0 0
        %1412 = vmatprep.subr.bf16.mxu0 0
        %1413 = vmatpush2.bf16.msra.mxu0 0
        %1414 = vmatprep.subr.bf16.mxu0 0
        %1415 = vmatpush2.bf16.msra.mxu0 0
        %1416 = vmatprep.subr.bf16.mxu0 0
        %1417 = vmatpush2.bf16.msra.mxu0 0
        %1418 = vmatprep.mubr.bf16.mxu0 0
        %1419 = vmatmul.mubr.bf16.gmra.mxu0 %v1384
        %v1420 = vpop.f32.mrf.mxu0
        %v1421 = vadd.f32 0.0, %v1420
        %v1422 = vpop.f32.mrf.mxu0
        %v1423 = vpop.f32.mrf.mxu0
        %v1424 = vadd.f32 0.0, %v1423
        %v1425 = vpop.f32.mrf.mxu0
        %1426 = vdwg.mxu0
        %v1427 = vpack.c.bf16 %v1283, %v1280
        %v1428 = vpack.c.bf16 %v1330, %v1327
        %v1429 = vpack.c.bf16 %v1377, %v1374
        %v1430 = vpack.c.bf16 %v1424, %v1421
        %s1431 = scalar_lea.vmem [#allocation8], 4
        %v1432 = vld [vmem:[%s1431] sm:$0xf]
        %v1434 = vsel %vm456, %v1427, 0
        %v1437 = vsel %vm456, %v1428, 0
        %v1440 = vsel %vm456, %v1429, 0
        %v1443 = vsel %vm456, %v1430, 0
        %vm1445 = vcmask 1043456
        %v1447 = vsel %vm1445, %v1432, 0
        %1449 = vmatprep.subr.bf16.mxu0 0
        %1450 = vmatpush1.bf16.msra.mxu0 0
        %1451 = vmatprep.subr.bf16.mxu0 0
        %1452 = vmatpush1.bf16.msra.mxu0 0
        %1453 = vmatprep.subr.bf16.mxu0 0
        %1454 = vmatpush1.bf16.msra.mxu0 0
        %1455 = vmatprep.subr.bf16.mxu0 0
        %1456 = vmatpush1.bf16.msra.mxu0 0
        %1457 = vmatprep.subr.bf16.mxu0 0
        %1458 = vmatpush1.bf16.msra.mxu0 0
        %1459 = vmatprep.subr.bf16.mxu0 0
        %1460 = vmatpush1.bf16.msra.mxu0 0
        %1461 = vmatprep.subr.bf16.mxu0 0
        %1462 = vmatpush1.bf16.msra.mxu0 0
        %1463 = vmatprep.subr.bf16.mxu0 0
        %1464 = vmatpush1.bf16.msra.mxu0 %v1447
        %1465 = vmatprep.subr.bf16.mxu0 0
        %1466 = vmatpush2.bf16.msra.mxu0 0
        %1467 = vmatprep.subr.bf16.mxu0 0
        %1468 = vmatpush2.bf16.msra.mxu0 0
        %1469 = vmatprep.subr.bf16.mxu0 0
        %1470 = vmatpush2.bf16.msra.mxu0 0
        %1471 = vmatprep.subr.bf16.mxu0 0
        %1472 = vmatpush2.bf16.msra.mxu0 0
        %1473 = vmatprep.subr.bf16.mxu0 0
        %1474 = vmatpush2.bf16.msra.mxu0 0
        %1475 = vmatprep.subr.bf16.mxu0 0
        %1476 = vmatpush2.bf16.msra.mxu0 0
        %1477 = vmatprep.subr.bf16.mxu0 0
        %1478 = vmatpush2.bf16.msra.mxu0 0
        %1479 = vmatprep.subr.bf16.mxu0 0
        %1480 = vmatpush2.bf16.msra.mxu0 0
        %1481 = vmatprep.mubr.bf16.mxu0 0
        %1482 = vmatmul.mubr.bf16.gmra.mxu0 %v1434
        %v1483 = vpop.f32.mrf.mxu0
        %v1484 = vadd.f32 0.0, %v1483
        %v1485 = vpop.f32.mrf.mxu0
        %v1486 = vpop.f32.mrf.mxu0
        %v1487 = vadd.f32 0.0, %v1486
        %v1488 = vpop.f32.mrf.mxu0
        %1489 = vmatprep.mubr.bf16.mxu0 0
        %1490 = vmatmul.mubr.bf16.gmra.mxu0 %v1437
        %v1491 = vpop.f32.mrf.mxu0
        %v1492 = vadd.f32 0.0, %v1491
        %v1493 = vpop.f32.mrf.mxu0
        %v1494 = vpop.f32.mrf.mxu0
        %v1495 = vadd.f32 0.0, %v1494
        %v1496 = vpop.f32.mrf.mxu0
        %1497 = vmatprep.mubr.bf16.mxu0 0
        %1498 = vmatmul.mubr.bf16.gmra.mxu0 %v1440
        %v1499 = vpop.f32.mrf.mxu0
        %v1500 = vadd.f32 0.0, %v1499
        %v1501 = vpop.f32.mrf.mxu0
        %v1502 = vpop.f32.mrf.mxu0
        %v1503 = vadd.f32 0.0, %v1502
        %v1504 = vpop.f32.mrf.mxu0
        %1505 = vmatprep.mubr.bf16.mxu0 0
        %1506 = vmatmul.mubr.bf16.gmra.mxu0 %v1443
        %v1507 = vpop.f32.mrf.mxu0
        %v1508 = vadd.f32 0.0, %v1507
        %v1509 = vpop.f32.mrf.mxu0
        %v1510 = vpop.f32.mrf.mxu0
        %v1511 = vadd.f32 0.0, %v1510
        %v1512 = vpop.f32.mrf.mxu0
        %1513 = vdwg.mxu0
        %v1515 = vsel %vm456, %v935, 0
        %v1518 = vsel %vm456, %v936, 0
        %v1521 = vsel %vm456, %v937, 0
        %v1524 = vsel %vm456, %v938, 0
        %v1527 = vsel %vm1445, %v939, 0
        %1529 = vmatprep.subr.bf16.mxu0 0
        %1530 = vmatpush1.bf16.msra.mxu0 0
        %1531 = vmatprep.subr.bf16.mxu0 0
        %1532 = vmatpush1.bf16.msra.mxu0 0
        %1533 = vmatprep.subr.bf16.mxu0 0
        %1534 = vmatpush1.bf16.msra.mxu0 0
        %1535 = vmatprep.subr.bf16.mxu0 0
        %1536 = vmatpush1.bf16.msra.mxu0 0
        %1537 = vmatprep.subr.bf16.mxu0 0
        %1538 = vmatpush1.bf16.msra.mxu0 0
        %1539 = vmatprep.subr.bf16.mxu0 0
        %1540 = vmatpush1.bf16.msra.mxu0 0
        %1541 = vmatprep.subr.bf16.mxu0 0
        %1542 = vmatpush1.bf16.msra.mxu0 0
        %1543 = vmatprep.subr.bf16.mxu0 0
        %1544 = vmatpush1.bf16.msra.mxu0 %v1527
        %1545 = vmatprep.subr.bf16.mxu0 0
        %1546 = vmatpush2.bf16.msra.mxu0 0
        %1547 = vmatprep.subr.bf16.mxu0 0
        %1548 = vmatpush2.bf16.msra.mxu0 0
        %1549 = vmatprep.subr.bf16.mxu0 0
        %1550 = vmatpush2.bf16.msra.mxu0 0
        %1551 = vmatprep.subr.bf16.mxu0 0
        %1552 = vmatpush2.bf16.msra.mxu0 0
        %1553 = vmatprep.subr.bf16.mxu0 0
        %1554 = vmatpush2.bf16.msra.mxu0 0
        %1555 = vmatprep.subr.bf16.mxu0 0
        %1556 = vmatpush2.bf16.msra.mxu0 0
        %1557 = vmatprep.subr.bf16.mxu0 0
        %1558 = vmatpush2.bf16.msra.mxu0 0
        %1559 = vmatprep.subr.bf16.mxu0 0
        %1560 = vmatpush2.bf16.msra.mxu0 0
        %1561 = vmatprep.mubr.bf16.mxu0 0
        %1562 = vmatmul.mubr.bf16.gmra.mxu0 %v1515
        %v1563 = vpop.f32.mrf.mxu0
        %v1564 = vadd.f32 %v1484, %v1563
        %v1565 = vpop.f32.mrf.mxu0
        %v1566 = vpop.f32.mrf.mxu0
        %v1567 = vadd.f32 %v1487, %v1566
        %v1568 = vpop.f32.mrf.mxu0
        %1569 = vmatprep.mubr.bf16.mxu0 0
        %1570 = vmatmul.mubr.bf16.gmra.mxu0 %v1518
        %v1571 = vpop.f32.mrf.mxu0
        %v1572 = vadd.f32 %v1492, %v1571
        %v1573 = vpop.f32.mrf.mxu0
        %v1574 = vpop.f32.mrf.mxu0
        %v1575 = vadd.f32 %v1495, %v1574
        %v1576 = vpop.f32.mrf.mxu0
        %1577 = vmatprep.mubr.bf16.mxu0 0
        %1578 = vmatmul.mubr.bf16.gmra.mxu0 %v1521
        %v1579 = vpop.f32.mrf.mxu0
        %v1580 = vadd.f32 %v1500, %v1579
        %v1581 = vpop.f32.mrf.mxu0
        %v1582 = vpop.f32.mrf.mxu0
        %v1583 = vadd.f32 %v1503, %v1582
        %v1584 = vpop.f32.mrf.mxu0
        %1585 = vmatprep.mubr.bf16.mxu0 0
        %1586 = vmatmul.mubr.bf16.gmra.mxu0 %v1524
        %v1587 = vpop.f32.mrf.mxu0
        %v1588 = vadd.f32 %v1508, %v1587
        %v1589 = vpop.f32.mrf.mxu0
        %v1590 = vpop.f32.mrf.mxu0
        %v1591 = vadd.f32 %v1511, %v1590
        %v1592 = vpop.f32.mrf.mxu0
        %1593 = vdwg.mxu0
        %s1594 = scalar_lea.vmem [#allocation7], 32
        %v1595 = vld [vmem:[%s1594] sm:$0xff]
        %v1596 = vld [vmem:[%s1594 + $0x8] sm:$0xff]
        %1597 = vrot.lane.b32.xlu0 %v447, 112
        %v1598 = vpop.permute.xlu0 %1597
        %1599 = vrot.lane.b32.xlu0 %v447, 80
        %v1600 = vpop.permute.xlu0 %1599
        %v1602 = vsel %vm456, %v1598, 0
        %v1605 = vsel %vm456, %v1600, 0
        %1607 = vmatprep.subr.bf16.mxu0 0
        %1608 = vmatpush1.bf16.xpose.msra.mxu0 0
        %1609 = vmatprep.subr.bf16.mxu0 0
        %1610 = vmatpush1.bf16.xpose.msra.mxu0 0
        %1611 = vmatprep.subr.bf16.mxu0 0
        %1612 = vmatpush1.bf16.xpose.msra.mxu0 0
        %1613 = vmatprep.subr.bf16.mxu0 0
        %1614 = vmatpush1.bf16.xpose.msra.mxu0 0
        %1615 = vmatprep.subr.bf16.mxu0 0
        %1616 = vmatpush1.bf16.xpose.msra.mxu0 0
        %1617 = vmatprep.subr.bf16.mxu0 0
        %1618 = vmatpush1.bf16.xpose.msra.mxu0 0
        %1619 = vmatprep.subr.bf16.mxu0 0
        %1620 = vmatpush1.bf16.xpose.msra.mxu0 0
        %1621 = vmatprep.subr.bf16.mxu0 0
        %1622 = vmatpush1.bf16.xpose.msra.mxu0 %v1605
        %1623 = vmatprep.subr.bf16.mxu0 0
        %1624 = vmatpush2.bf16.xpose.msra.mxu0 0
        %1625 = vmatprep.subr.bf16.mxu0 0
        %1626 = vmatpush2.bf16.xpose.msra.mxu0 0
        %1627 = vmatprep.subr.bf16.mxu0 0
        %1628 = vmatpush2.bf16.xpose.msra.mxu0 0
        %1629 = vmatprep.subr.bf16.mxu0 0
        %1630 = vmatpush2.bf16.xpose.msra.mxu0 0
        %1631 = vmatprep.subr.bf16.mxu0 0
        %1632 = vmatpush2.bf16.xpose.msra.mxu0 0
        %1633 = vmatprep.subr.bf16.mxu0 0
        %1634 = vmatpush2.bf16.xpose.msra.mxu0 0
        %1635 = vmatprep.subr.bf16.mxu0 0
        %1636 = vmatpush2.bf16.xpose.msra.mxu0 0
        %1637 = vmatprep.subr.bf16.mxu0 0
        %1638 = vmatpush2.bf16.xpose.msra.mxu0 0
        %1639 = vmatprep.mubr.bf16.mxu0 0
        %1640 = vmatmul.mubr.bf16.gmra.mxu0 %v1602
        %v1641 = vpop.f32.mrf.mxu0
        %v1642 = vadd.f32 %v1595, %v1641
        %v1643 = vpop.f32.mrf.mxu0
        %v1644 = vpop.f32.mrf.mxu0
        %v1645 = vadd.f32 %v1596, %v1644
        %v1646 = vpop.f32.mrf.mxu0
        %1647 = vdwg.mxu0
        %1648 = vrot.lane.b32.xlu0 %v448, 112
        %v1649 = vpop.permute.xlu0 %1648
        %1650 = vrot.lane.b32.xlu0 %v448, 80
        %v1651 = vpop.permute.xlu0 %1650
        %v1653 = vsel %vm456, %v1649, 0
        %v1656 = vsel %vm456, %v1651, 0
        %1658 = vmatprep.subr.bf16.mxu0 0
        %1659 = vmatpush1.bf16.xpose.msra.mxu0 0
        %1660 = vmatprep.subr.bf16.mxu0 0
        %1661 = vmatpush1.bf16.xpose.msra.mxu0 0
        %1662 = vmatprep.subr.bf16.mxu0 0
        %1663 = vmatpush1.bf16.xpose.msra.mxu0 0
        %1664 = vmatprep.subr.bf16.mxu0 0
        %1665 = vmatpush1.bf16.xpose.msra.mxu0 0
        %1666 = vmatprep.subr.bf16.mxu0 0
        %1667 = vmatpush1.bf16.xpose.msra.mxu0 0
        %1668 = vmatprep.subr.bf16.mxu0 0
        %1669 = vmatpush1.bf16.xpose.msra.mxu0 0
        %1670 = vmatprep.subr.bf16.mxu0 0
        %1671 = vmatpush1.bf16.xpose.msra.mxu0 0
        %1672 = vmatprep.subr.bf16.mxu0 0
        %1673 = vmatpush1.bf16.xpose.msra.mxu0 %v1656
        %1674 = vmatprep.subr.bf16.mxu0 0
        %1675 = vmatpush2.bf16.xpose.msra.mxu0 0
        %1676 = vmatprep.subr.bf16.mxu0 0
        %1677 = vmatpush2.bf16.xpose.msra.mxu0 0
        %1678 = vmatprep.subr.bf16.mxu0 0
        %1679 = vmatpush2.bf16.xpose.msra.mxu0 0
        %1680 = vmatprep.subr.bf16.mxu0 0
        %1681 = vmatpush2.bf16.xpose.msra.mxu0 0
        %1682 = vmatprep.subr.bf16.mxu0 0
        %1683 = vmatpush2.bf16.xpose.msra.mxu0 0
        %1684 = vmatprep.subr.bf16.mxu0 0
        %1685 = vmatpush2.bf16.xpose.msra.mxu0 0
        %1686 = vmatprep.subr.bf16.mxu0 0
        %1687 = vmatpush2.bf16.xpose.msra.mxu0 0
        %1688 = vmatprep.subr.bf16.mxu0 0
        %1689 = vmatpush2.bf16.xpose.msra.mxu0 0
        %1690 = vmatprep.mubr.bf16.mxu0 0
        %1691 = vmatmul.mubr.bf16.gmra.mxu0 %v1653
        %v1692 = vpop.f32.mrf.mxu0
        %v1693 = vadd.f32 %v1595, %v1692
        %v1694 = vpop.f32.mrf.mxu0
        %v1695 = vpop.f32.mrf.mxu0
        %v1696 = vadd.f32 %v1596, %v1695
        %v1697 = vpop.f32.mrf.mxu0
        %1698 = vdwg.mxu0
        %1699 = vrot.lane.b32.xlu0 %v449, 112
        %v1700 = vpop.permute.xlu0 %1699
        %1701 = vrot.lane.b32.xlu0 %v449, 80
        %v1702 = vpop.permute.xlu0 %1701
        %v1704 = vsel %vm456, %v1700, 0
        %v1707 = vsel %vm456, %v1702, 0
        %1709 = vmatprep.subr.bf16.mxu0 0
        %1710 = vmatpush1.bf16.xpose.msra.mxu0 0
        %1711 = vmatprep.subr.bf16.mxu0 0
        %1712 = vmatpush1.bf16.xpose.msra.mxu0 0
        %1713 = vmatprep.subr.bf16.mxu0 0
        %1714 = vmatpush1.bf16.xpose.msra.mxu0 0
        %1715 = vmatprep.subr.bf16.mxu0 0
        %1716 = vmatpush1.bf16.xpose.msra.mxu0 0
        %1717 = vmatprep.subr.bf16.mxu0 0
        %1718 = vmatpush1.bf16.xpose.msra.mxu0 0
        %1719 = vmatprep.subr.bf16.mxu0 0
        %1720 = vmatpush1.bf16.xpose.msra.mxu0 0
        %1721 = vmatprep.subr.bf16.mxu0 0
        %1722 = vmatpush1.bf16.xpose.msra.mxu0 0
        %1723 = vmatprep.subr.bf16.mxu0 0
        %1724 = vmatpush1.bf16.xpose.msra.mxu0 %v1707
        %1725 = vmatprep.subr.bf16.mxu0 0
        %1726 = vmatpush2.bf16.xpose.msra.mxu0 0
        %1727 = vmatprep.subr.bf16.mxu0 0
        %1728 = vmatpush2.bf16.xpose.msra.mxu0 0
        %1729 = vmatprep.subr.bf16.mxu0 0
        %1730 = vmatpush2.bf16.xpose.msra.mxu0 0
        %1731 = vmatprep.subr.bf16.mxu0 0
        %1732 = vmatpush2.bf16.xpose.msra.mxu0 0
        %1733 = vmatprep.subr.bf16.mxu0 0
        %1734 = vmatpush2.bf16.xpose.msra.mxu0 0
        %1735 = vmatprep.subr.bf16.mxu0 0
        %1736 = vmatpush2.bf16.xpose.msra.mxu0 0
        %1737 = vmatprep.subr.bf16.mxu0 0
        %1738 = vmatpush2.bf16.xpose.msra.mxu0 0
        %1739 = vmatprep.subr.bf16.mxu0 0
        %1740 = vmatpush2.bf16.xpose.msra.mxu0 0
        %1741 = vmatprep.mubr.bf16.mxu0 0
        %1742 = vmatmul.mubr.bf16.gmra.mxu0 %v1704
        %v1743 = vpop.f32.mrf.mxu0
        %v1744 = vadd.f32 %v1595, %v1743
        %v1745 = vpop.f32.mrf.mxu0
        %v1746 = vpop.f32.mrf.mxu0
        %v1747 = vadd.f32 %v1596, %v1746
        %v1748 = vpop.f32.mrf.mxu0
        %1749 = vdwg.mxu0
        %1750 = vrot.lane.b32.xlu0 %v450, 112
        %v1751 = vpop.permute.xlu0 %1750
        %1752 = vrot.lane.b32.xlu0 %v450, 80
        %v1753 = vpop.permute.xlu0 %1752
        %v1755 = vsel %vm456, %v1751, 0
        %v1758 = vsel %vm456, %v1753, 0
        %1760 = vmatprep.subr.bf16.mxu0 0
        %1761 = vmatpush1.bf16.xpose.msra.mxu0 0
        %1762 = vmatprep.subr.bf16.mxu0 0
        %1763 = vmatpush1.bf16.xpose.msra.mxu0 0
        %1764 = vmatprep.subr.bf16.mxu0 0
        %1765 = vmatpush1.bf16.xpose.msra.mxu0 0
        %1766 = vmatprep.subr.bf16.mxu0 0
        %1767 = vmatpush1.bf16.xpose.msra.mxu0 0
        %1768 = vmatprep.subr.bf16.mxu0 0
        %1769 = vmatpush1.bf16.xpose.msra.mxu0 0
        %1770 = vmatprep.subr.bf16.mxu0 0
        %1771 = vmatpush1.bf16.xpose.msra.mxu0 0
        %1772 = vmatprep.subr.bf16.mxu0 0
        %1773 = vmatpush1.bf16.xpose.msra.mxu0 0
        %1774 = vmatprep.subr.bf16.mxu0 0
        %1775 = vmatpush1.bf16.xpose.msra.mxu0 %v1758
        %1776 = vmatprep.subr.bf16.mxu0 0
        %1777 = vmatpush2.bf16.xpose.msra.mxu0 0
        %1778 = vmatprep.subr.bf16.mxu0 0
        %1779 = vmatpush2.bf16.xpose.msra.mxu0 0
        %1780 = vmatprep.subr.bf16.mxu0 0
        %1781 = vmatpush2.bf16.xpose.msra.mxu0 0
        %1782 = vmatprep.subr.bf16.mxu0 0
        %1783 = vmatpush2.bf16.xpose.msra.mxu0 0
        %1784 = vmatprep.subr.bf16.mxu0 0
        %1785 = vmatpush2.bf16.xpose.msra.mxu0 0
        %1786 = vmatprep.subr.bf16.mxu0 0
        %1787 = vmatpush2.bf16.xpose.msra.mxu0 0
        %1788 = vmatprep.subr.bf16.mxu0 0
        %1789 = vmatpush2.bf16.xpose.msra.mxu0 0
        %1790 = vmatprep.subr.bf16.mxu0 0
        %1791 = vmatpush2.bf16.xpose.msra.mxu0 0
        %1792 = vmatprep.mubr.bf16.mxu0 0
        %1793 = vmatmul.mubr.bf16.gmra.mxu0 %v1755
        %v1794 = vpop.f32.mrf.mxu0
        %v1795 = vadd.f32 %v1595, %v1794
        %v1796 = vpop.f32.mrf.mxu0
        %v1797 = vpop.f32.mrf.mxu0
        %v1798 = vadd.f32 %v1596, %v1797
        %v1799 = vpop.f32.mrf.mxu0
        %1800 = vdwg.mxu0
        %v1801 = vsel %vm654, %v1642, -inf
        %1802 = vmax.xlane.f32.xlu0 %v1801
        %v1803 = vpop.xlane.xlu0 %1802
        %v1804 = vsel %vm654, %v1645, -inf
        %1805 = vmax.xlane.f32.xlu0 %v1804
        %v1806 = vpop.xlane.xlu0 %1805
        %v1807 = vsel %vm654, %v1693, -inf
        %1808 = vmax.xlane.f32.xlu0 %v1807
        %v1809 = vpop.xlane.xlu0 %1808
        %v1810 = vsel %vm654, %v1696, -inf
        %1811 = vmax.xlane.f32.xlu0 %v1810
        %v1812 = vpop.xlane.xlu0 %1811
        %v1813 = vsel %vm654, %v1744, -inf
        %1814 = vmax.xlane.f32.xlu0 %v1813
        %v1815 = vpop.xlane.xlu0 %1814
        %v1816 = vsel %vm654, %v1747, -inf
        %1817 = vmax.xlane.f32.xlu0 %v1816
        %v1818 = vpop.xlane.xlu0 %1817
        %v1819 = vsel %vm654, %v1795, -inf
        %1820 = vmax.xlane.f32.xlu0 %v1819
        %v1821 = vpop.xlane.xlu0 %1820
        %v1822 = vsel %vm654, %v1798, -inf
        %1823 = vmax.xlane.f32.xlu0 %v1822
        %v1824 = vpop.xlane.xlu0 %1823
        %v1825 = vsub.f32 %v1642, %v1803
        %v1826 = vsub.f32 %v1645, %v1806
        %v1827 = vsub.f32 %v1693, %v1809
        %v1828 = vsub.f32 %v1696, %v1812
        %v1829 = vsub.f32 %v1744, %v1815
        %v1830 = vsub.f32 %v1747, %v1818
        %v1831 = vsub.f32 %v1795, %v1821
        %v1832 = vsub.f32 %v1798, %v1824
        %v1833 = vmul.f32 %v1825, 1.442695
        %v1834 = vpow.pop %v1833
        %v1835 = vmul.f32 %v1826, 1.442695
        %v1836 = vpow.pop %v1835
        %v1837 = vmul.f32 %v1827, 1.442695
        %v1838 = vpow.pop %v1837
        %v1839 = vmul.f32 %v1828, 1.442695
        %v1840 = vpow.pop %v1839
        %v1841 = vmul.f32 %v1829, 1.442695
        %v1842 = vpow.pop %v1841
        %v1843 = vmul.f32 %v1830, 1.442695
        %v1844 = vpow.pop %v1843
        %v1845 = vmul.f32 %v1831, 1.442695
        %v1846 = vpow.pop %v1845
        %v1847 = vmul.f32 %v1832, 1.442695
        %v1848 = vpow.pop %v1847
        %v1849 = vsel %vm654, %v1834, 0.0
        %1850 = vadd.xlane.f32.xlu0 %v1849
        %v1851 = vpop.xlane.xlu0 %1850
        %v1852 = vsel %vm654, %v1836, 0.0
        %1853 = vadd.xlane.f32.xlu0 %v1852
        %v1854 = vpop.xlane.xlu0 %1853
        %v1855 = vsel %vm654, %v1838, 0.0
        %1856 = vadd.xlane.f32.xlu0 %v1855
        %v1857 = vpop.xlane.xlu0 %1856
        %v1858 = vsel %vm654, %v1840, 0.0
        %1859 = vadd.xlane.f32.xlu0 %v1858
        %v1860 = vpop.xlane.xlu0 %1859
        %v1861 = vsel %vm654, %v1842, 0.0
        %1862 = vadd.xlane.f32.xlu0 %v1861
        %v1863 = vpop.xlane.xlu0 %1862
        %v1864 = vsel %vm654, %v1844, 0.0
        %1865 = vadd.xlane.f32.xlu0 %v1864
        %v1866 = vpop.xlane.xlu0 %1865
        %v1867 = vsel %vm654, %v1846, 0.0
        %1868 = vadd.xlane.f32.xlu0 %v1867
        %v1869 = vpop.xlane.xlu0 %1868
        %v1870 = vsel %vm654, %v1848, 0.0
        %1871 = vadd.xlane.f32.xlu0 %v1870
        %v1872 = vpop.xlane.xlu0 %1871
        %v1873 = vrcp.pop %v1851
        %v1874 = vrcp.pop %v1854
        %v1875 = vrcp.pop %v1857
        %v1876 = vrcp.pop %v1860
        %v1877 = vrcp.pop %v1863
        %v1878 = vrcp.pop %v1866
        %v1879 = vrcp.pop %v1869
        %v1880 = vrcp.pop %v1872
        %v1881 = vmul.f32 %v1834, %v1873
        %v1882 = vmul.f32 %v1836, %v1874
        %v1883 = vmul.f32 %v1838, %v1875
        %v1884 = vmul.f32 %v1840, %v1876
        %v1885 = vmul.f32 %v1842, %v1877
        %v1886 = vmul.f32 %v1844, %v1878
        %v1887 = vmul.f32 %v1846, %v1879
        %v1888 = vmul.f32 %v1848, %v1880
        %v1889 = vpack.c.bf16 %v1882, %v1881
        %v1890 = vpack.c.bf16 %v1884, %v1883
        %v1891 = vpack.c.bf16 %v1886, %v1885
        %v1892 = vpack.c.bf16 %v1888, %v1887
        %1893 = vrot.lane.b32.xlu0 %v447, 48
        %v1894 = vpop.permute.xlu0 %1893
        %v1897 = vsel %vm654, %v1889, 0
        %1899 = vmatprep.subr.bf16.mxu0 0
        %1900 = vmatpush1.bf16.msra.mxu0 0
        %1901 = vmatprep.subr.bf16.mxu0 0
        %1902 = vmatpush1.bf16.msra.mxu0 0
        %1903 = vmatprep.subr.bf16.mxu0 0
        %1904 = vmatpush1.bf16.msra.mxu0 0
        %1905 = vmatprep.subr.bf16.mxu0 0
        %1906 = vmatpush1.bf16.msra.mxu0 0
        %1907 = vmatprep.subr.bf16.mxu0 0
        %1908 = vmatpush1.bf16.msra.mxu0 0
        %1909 = vmatprep.subr.bf16.mxu0 0
        %1910 = vmatpush1.bf16.msra.mxu0 0
        %1911 = vmatprep.subr.bf16.mxu0 0
        %1912 = vmatpush1.bf16.msra.mxu0 0
        %1913 = vmatprep.subr.bf16.mxu0 0
        %1914 = vmatpush1.bf16.msra.mxu0 %v1894
        %1915 = vmatprep.subr.bf16.mxu0 0
        %1916 = vmatpush2.bf16.msra.mxu0 0
        %1917 = vmatprep.subr.bf16.mxu0 0
        %1918 = vmatpush2.bf16.msra.mxu0 0
        %1919 = vmatprep.subr.bf16.mxu0 0
        %1920 = vmatpush2.bf16.msra.mxu0 0
        %1921 = vmatprep.subr.bf16.mxu0 0
        %1922 = vmatpush2.bf16.msra.mxu0 0
        %1923 = vmatprep.subr.bf16.mxu0 0
        %1924 = vmatpush2.bf16.msra.mxu0 0
        %1925 = vmatprep.subr.bf16.mxu0 0
        %1926 = vmatpush2.bf16.msra.mxu0 0
        %1927 = vmatprep.subr.bf16.mxu0 0
        %1928 = vmatpush2.bf16.msra.mxu0 0
        %1929 = vmatprep.subr.bf16.mxu0 0
        %1930 = vmatpush2.bf16.msra.mxu0 0
        %1931 = vmatprep.mubr.bf16.mxu0 0
        %1932 = vmatmul.mubr.bf16.gmra.mxu0 %v1897
        %v1933 = vpop.f32.mrf.mxu0
        %v1934 = vadd.f32 0.0, %v1933
        %v1935 = vpop.f32.mrf.mxu0
        %v1936 = vpop.f32.mrf.mxu0
        %v1937 = vadd.f32 0.0, %v1936
        %v1938 = vpop.f32.mrf.mxu0
        %1939 = vdwg.mxu0
        %1940 = vrot.lane.b32.xlu0 %v448, 48
        %v1941 = vpop.permute.xlu0 %1940
        %v1944 = vsel %vm654, %v1890, 0
        %1946 = vmatprep.subr.bf16.mxu0 0
        %1947 = vmatpush1.bf16.msra.mxu0 0
        %1948 = vmatprep.subr.bf16.mxu0 0
        %1949 = vmatpush1.bf16.msra.mxu0 0
        %1950 = vmatprep.subr.bf16.mxu0 0
        %1951 = vmatpush1.bf16.msra.mxu0 0
        %1952 = vmatprep.subr.bf16.mxu0 0
        %1953 = vmatpush1.bf16.msra.mxu0 0
        %1954 = vmatprep.subr.bf16.mxu0 0
        %1955 = vmatpush1.bf16.msra.mxu0 0
        %1956 = vmatprep.subr.bf16.mxu0 0
        %1957 = vmatpush1.bf16.msra.mxu0 0
        %1958 = vmatprep.subr.bf16.mxu0 0
        %1959 = vmatpush1.bf16.msra.mxu0 0
        %1960 = vmatprep.subr.bf16.mxu0 0
        %1961 = vmatpush1.bf16.msra.mxu0 %v1941
        %1962 = vmatprep.subr.bf16.mxu0 0
        %1963 = vmatpush2.bf16.msra.mxu0 0
        %1964 = vmatprep.subr.bf16.mxu0 0
        %1965 = vmatpush2.bf16.msra.mxu0 0
        %1966 = vmatprep.subr.bf16.mxu0 0
        %1967 = vmatpush2.bf16.msra.mxu0 0
        %1968 = vmatprep.subr.bf16.mxu0 0
        %1969 = vmatpush2.bf16.msra.mxu0 0
        %1970 = vmatprep.subr.bf16.mxu0 0
        %1971 = vmatpush2.bf16.msra.mxu0 0
        %1972 = vmatprep.subr.bf16.mxu0 0
        %1973 = vmatpush2.bf16.msra.mxu0 0
        %1974 = vmatprep.subr.bf16.mxu0 0
        %1975 = vmatpush2.bf16.msra.mxu0 0
        %1976 = vmatprep.subr.bf16.mxu0 0
        %1977 = vmatpush2.bf16.msra.mxu0 0
        %1978 = vmatprep.mubr.bf16.mxu0 0
        %1979 = vmatmul.mubr.bf16.gmra.mxu0 %v1944
        %v1980 = vpop.f32.mrf.mxu0
        %v1981 = vadd.f32 0.0, %v1980
        %v1982 = vpop.f32.mrf.mxu0
        %v1983 = vpop.f32.mrf.mxu0
        %v1984 = vadd.f32 0.0, %v1983
        %v1985 = vpop.f32.mrf.mxu0
        %1986 = vdwg.mxu0
        %1987 = vrot.lane.b32.xlu0 %v449, 48
        %v1988 = vpop.permute.xlu0 %1987
        %v1991 = vsel %vm654, %v1891, 0
        %1993 = vmatprep.subr.bf16.mxu0 0
        %1994 = vmatpush1.bf16.msra.mxu0 0
        %1995 = vmatprep.subr.bf16.mxu0 0
        %1996 = vmatpush1.bf16.msra.mxu0 0
        %1997 = vmatprep.subr.bf16.mxu0 0
        %1998 = vmatpush1.bf16.msra.mxu0 0
        %1999 = vmatprep.subr.bf16.mxu0 0
        %2000 = vmatpush1.bf16.msra.mxu0 0
        %2001 = vmatprep.subr.bf16.mxu0 0
        %2002 = vmatpush1.bf16.msra.mxu0 0
        %2003 = vmatprep.subr.bf16.mxu0 0
        %2004 = vmatpush1.bf16.msra.mxu0 0
        %2005 = vmatprep.subr.bf16.mxu0 0
        %2006 = vmatpush1.bf16.msra.mxu0 0
        %2007 = vmatprep.subr.bf16.mxu0 0
        %2008 = vmatpush1.bf16.msra.mxu0 %v1988
        %2009 = vmatprep.subr.bf16.mxu0 0
        %2010 = vmatpush2.bf16.msra.mxu0 0
        %2011 = vmatprep.subr.bf16.mxu0 0
        %2012 = vmatpush2.bf16.msra.mxu0 0
        %2013 = vmatprep.subr.bf16.mxu0 0
        %2014 = vmatpush2.bf16.msra.mxu0 0
        %2015 = vmatprep.subr.bf16.mxu0 0
        %2016 = vmatpush2.bf16.msra.mxu0 0
        %2017 = vmatprep.subr.bf16.mxu0 0
        %2018 = vmatpush2.bf16.msra.mxu0 0
        %2019 = vmatprep.subr.bf16.mxu0 0
        %2020 = vmatpush2.bf16.msra.mxu0 0
        %2021 = vmatprep.subr.bf16.mxu0 0
        %2022 = vmatpush2.bf16.msra.mxu0 0
        %2023 = vmatprep.subr.bf16.mxu0 0
        %2024 = vmatpush2.bf16.msra.mxu0 0
        %2025 = vmatprep.mubr.bf16.mxu0 0
        %2026 = vmatmul.mubr.bf16.gmra.mxu0 %v1991
        %v2027 = vpop.f32.mrf.mxu0
        %v2028 = vadd.f32 0.0, %v2027
        %v2029 = vpop.f32.mrf.mxu0
        %v2030 = vpop.f32.mrf.mxu0
        %v2031 = vadd.f32 0.0, %v2030
        %v2032 = vpop.f32.mrf.mxu0
        %2033 = vdwg.mxu0
        %2034 = vrot.lane.b32.xlu0 %v450, 48
        %v2035 = vpop.permute.xlu0 %2034
        %v2038 = vsel %vm654, %v1892, 0
        %2040 = vmatprep.subr.bf16.mxu0 0
        %2041 = vmatpush1.bf16.msra.mxu0 0
        %2042 = vmatprep.subr.bf16.mxu0 0
        %2043 = vmatpush1.bf16.msra.mxu0 0
        %2044 = vmatprep.subr.bf16.mxu0 0
        %2045 = vmatpush1.bf16.msra.mxu0 0
        %2046 = vmatprep.subr.bf16.mxu0 0
        %2047 = vmatpush1.bf16.msra.mxu0 0
        %2048 = vmatprep.subr.bf16.mxu0 0
        %2049 = vmatpush1.bf16.msra.mxu0 0
        %2050 = vmatprep.subr.bf16.mxu0 0
        %2051 = vmatpush1.bf16.msra.mxu0 0
        %2052 = vmatprep.subr.bf16.mxu0 0
        %2053 = vmatpush1.bf16.msra.mxu0 0
        %2054 = vmatprep.subr.bf16.mxu0 0
        %2055 = vmatpush1.bf16.msra.mxu0 %v2035
        %2056 = vmatprep.subr.bf16.mxu0 0
        %2057 = vmatpush2.bf16.msra.mxu0 0
        %2058 = vmatprep.subr.bf16.mxu0 0
        %2059 = vmatpush2.bf16.msra.mxu0 0
        %2060 = vmatprep.subr.bf16.mxu0 0
        %2061 = vmatpush2.bf16.msra.mxu0 0
        %2062 = vmatprep.subr.bf16.mxu0 0
        %2063 = vmatpush2.bf16.msra.mxu0 0
        %2064 = vmatprep.subr.bf16.mxu0 0
        %2065 = vmatpush2.bf16.msra.mxu0 0
        %2066 = vmatprep.subr.bf16.mxu0 0
        %2067 = vmatpush2.bf16.msra.mxu0 0
        %2068 = vmatprep.subr.bf16.mxu0 0
        %2069 = vmatpush2.bf16.msra.mxu0 0
        %2070 = vmatprep.subr.bf16.mxu0 0
        %2071 = vmatpush2.bf16.msra.mxu0 0
        %2072 = vmatprep.mubr.bf16.mxu0 0
        %2073 = vmatmul.mubr.bf16.gmra.mxu0 %v2038
        %v2074 = vpop.f32.mrf.mxu0
        %v2075 = vadd.f32 0.0, %v2074
        %v2076 = vpop.f32.mrf.mxu0
        %v2077 = vpop.f32.mrf.mxu0
        %v2078 = vadd.f32 0.0, %v2077
        %v2079 = vpop.f32.mrf.mxu0
        %2080 = vdwg.mxu0
        %v2081 = vpack.c.bf16 %v1937, %v1934
        %v2082 = vpack.c.bf16 %v1984, %v1981
        %v2083 = vpack.c.bf16 %v2031, %v2028
        %v2084 = vpack.c.bf16 %v2078, %v2075
        %s2085 = scalar_lea.vmem [#allocation8], 8
        %v2086 = vld [vmem:[%s2085] sm:$0xf]
        %v2088 = vsel %vm456, %v2081, 0
        %v2091 = vsel %vm456, %v2082, 0
        %v2094 = vsel %vm456, %v2083, 0
        %v2097 = vsel %vm456, %v2084, 0
        %v2100 = vsel %vm1445, %v2086, 0
        %2102 = vmatprep.subr.bf16.mxu0 0
        %2103 = vmatpush1.bf16.msra.mxu0 0
        %2104 = vmatprep.subr.bf16.mxu0 0
        %2105 = vmatpush1.bf16.msra.mxu0 0
        %2106 = vmatprep.subr.bf16.mxu0 0
        %2107 = vmatpush1.bf16.msra.mxu0 0
        %2108 = vmatprep.subr.bf16.mxu0 0
        %2109 = vmatpush1.bf16.msra.mxu0 0
        %2110 = vmatprep.subr.bf16.mxu0 0
        %2111 = vmatpush1.bf16.msra.mxu0 0
        %2112 = vmatprep.subr.bf16.mxu0 0
        %2113 = vmatpush1.bf16.msra.mxu0 0
        %2114 = vmatprep.subr.bf16.mxu0 0
        %2115 = vmatpush1.bf16.msra.mxu0 0
        %2116 = vmatprep.subr.bf16.mxu0 0
        %2117 = vmatpush1.bf16.msra.mxu0 %v2100
        %2118 = vmatprep.subr.bf16.mxu0 0
        %2119 = vmatpush2.bf16.msra.mxu0 0
        %2120 = vmatprep.subr.bf16.mxu0 0
        %2121 = vmatpush2.bf16.msra.mxu0 0
        %2122 = vmatprep.subr.bf16.mxu0 0
        %2123 = vmatpush2.bf16.msra.mxu0 0
        %2124 = vmatprep.subr.bf16.mxu0 0
        %2125 = vmatpush2.bf16.msra.mxu0 0
        %2126 = vmatprep.subr.bf16.mxu0 0
        %2127 = vmatpush2.bf16.msra.mxu0 0
        %2128 = vmatprep.subr.bf16.mxu0 0
        %2129 = vmatpush2.bf16.msra.mxu0 0
        %2130 = vmatprep.subr.bf16.mxu0 0
        %2131 = vmatpush2.bf16.msra.mxu0 0
        %2132 = vmatprep.subr.bf16.mxu0 0
        %2133 = vmatpush2.bf16.msra.mxu0 0
        %2134 = vmatprep.mubr.bf16.mxu0 0
        %2135 = vmatmul.mubr.bf16.gmra.mxu0 %v2088
        %v2136 = vpop.f32.mrf.mxu0
        %v2137 = vadd.f32 0.0, %v2136
        %v2138 = vpop.f32.mrf.mxu0
        %v2139 = vpop.f32.mrf.mxu0
        %v2140 = vadd.f32 0.0, %v2139
        %v2141 = vpop.f32.mrf.mxu0
        %2142 = vmatprep.mubr.bf16.mxu0 0
        %2143 = vmatmul.mubr.bf16.gmra.mxu0 %v2091
        %v2144 = vpop.f32.mrf.mxu0
        %v2145 = vadd.f32 0.0, %v2144
        %v2146 = vpop.f32.mrf.mxu0
        %v2147 = vpop.f32.mrf.mxu0
        %v2148 = vadd.f32 0.0, %v2147
        %v2149 = vpop.f32.mrf.mxu0
        %2150 = vmatprep.mubr.bf16.mxu0 0
        %2151 = vmatmul.mubr.bf16.gmra.mxu0 %v2094
        %v2152 = vpop.f32.mrf.mxu0
        %v2153 = vadd.f32 0.0, %v2152
        %v2154 = vpop.f32.mrf.mxu0
        %v2155 = vpop.f32.mrf.mxu0
        %v2156 = vadd.f32 0.0, %v2155
        %v2157 = vpop.f32.mrf.mxu0
        %2158 = vmatprep.mubr.bf16.mxu0 0
        %2159 = vmatmul.mubr.bf16.gmra.mxu0 %v2097
        %v2160 = vpop.f32.mrf.mxu0
        %v2161 = vadd.f32 0.0, %v2160
        %v2162 = vpop.f32.mrf.mxu0
        %v2163 = vpop.f32.mrf.mxu0
        %v2164 = vadd.f32 0.0, %v2163
        %v2165 = vpop.f32.mrf.mxu0
        %2166 = vdwg.mxu0
        %v2167 = vadd.f32 %v1564, %v2137
        %v2168 = vadd.f32 %v1567, %v2140
        %v2169 = vadd.f32 %v1572, %v2145
        %v2170 = vadd.f32 %v1575, %v2148
        %v2171 = vadd.f32 %v1580, %v2153
        %v2172 = vadd.f32 %v1583, %v2156
        %v2173 = vadd.f32 %v1588, %v2161
        %v2174 = vadd.f32 %v1591, %v2164
        %s2175 = scalar_lea.vmem [#allocation7], 48
        %v2176 = vld [vmem:[%s2175] sm:$0xff]
        %v2177 = vld [vmem:[%s2175 + $0x8] sm:$0xff]
        %2178 = vrot.lane.b32.xlu0 %v447, 104
        %v2179 = vpop.permute.xlu0 %2178
        %2180 = vrot.lane.b32.xlu0 %v447, 72
        %v2181 = vpop.permute.xlu0 %2180
        %v2183 = vsel %vm456, %v2179, 0
        %v2186 = vsel %vm456, %v2181, 0
        %2188 = vmatprep.subr.bf16.mxu0 0
        %2189 = vmatpush1.bf16.xpose.msra.mxu0 0
        %2190 = vmatprep.subr.bf16.mxu0 0
        %2191 = vmatpush1.bf16.xpose.msra.mxu0 0
        %2192 = vmatprep.subr.bf16.mxu0 0
        %2193 = vmatpush1.bf16.xpose.msra.mxu0 0
        %2194 = vmatprep.subr.bf16.mxu0 0
        %2195 = vmatpush1.bf16.xpose.msra.mxu0 0
        %2196 = vmatprep.subr.bf16.mxu0 0
        %2197 = vmatpush1.bf16.xpose.msra.mxu0 0
        %2198 = vmatprep.subr.bf16.mxu0 0
        %2199 = vmatpush1.bf16.xpose.msra.mxu0 0
        %2200 = vmatprep.subr.bf16.mxu0 0
        %2201 = vmatpush1.bf16.xpose.msra.mxu0 0
        %2202 = vmatprep.subr.bf16.mxu0 0
        %2203 = vmatpush1.bf16.xpose.msra.mxu0 %v2186
        %2204 = vmatprep.subr.bf16.mxu0 0
        %2205 = vmatpush2.bf16.xpose.msra.mxu0 0
        %2206 = vmatprep.subr.bf16.mxu0 0
        %2207 = vmatpush2.bf16.xpose.msra.mxu0 0
        %2208 = vmatprep.subr.bf16.mxu0 0
        %2209 = vmatpush2.bf16.xpose.msra.mxu0 0
        %2210 = vmatprep.subr.bf16.mxu0 0
        %2211 = vmatpush2.bf16.xpose.msra.mxu0 0
        %2212 = vmatprep.subr.bf16.mxu0 0
        %2213 = vmatpush2.bf16.xpose.msra.mxu0 0
        %2214 = vmatprep.subr.bf16.mxu0 0
        %2215 = vmatpush2.bf16.xpose.msra.mxu0 0
        %2216 = vmatprep.subr.bf16.mxu0 0
        %2217 = vmatpush2.bf16.xpose.msra.mxu0 0
        %2218 = vmatprep.subr.bf16.mxu0 0
        %2219 = vmatpush2.bf16.xpose.msra.mxu0 0
        %2220 = vmatprep.mubr.bf16.mxu0 0
        %2221 = vmatmul.mubr.bf16.gmra.mxu0 %v2183
        %v2222 = vpop.f32.mrf.mxu0
        %v2223 = vadd.f32 %v2176, %v2222
        %v2224 = vpop.f32.mrf.mxu0
        %v2225 = vpop.f32.mrf.mxu0
        %v2226 = vadd.f32 %v2177, %v2225
        %v2227 = vpop.f32.mrf.mxu0
        %2228 = vdwg.mxu0
        %2229 = vrot.lane.b32.xlu0 %v448, 104
        %v2230 = vpop.permute.xlu0 %2229
        %2231 = vrot.lane.b32.xlu0 %v448, 72
        %v2232 = vpop.permute.xlu0 %2231
        %v2234 = vsel %vm456, %v2230, 0
        %v2237 = vsel %vm456, %v2232, 0
        %2239 = vmatprep.subr.bf16.mxu0 0
        %2240 = vmatpush1.bf16.xpose.msra.mxu0 0
        %2241 = vmatprep.subr.bf16.mxu0 0
        %2242 = vmatpush1.bf16.xpose.msra.mxu0 0
        %2243 = vmatprep.subr.bf16.mxu0 0
        %2244 = vmatpush1.bf16.xpose.msra.mxu0 0
        %2245 = vmatprep.subr.bf16.mxu0 0
        %2246 = vmatpush1.bf16.xpose.msra.mxu0 0
        %2247 = vmatprep.subr.bf16.mxu0 0
        %2248 = vmatpush1.bf16.xpose.msra.mxu0 0
        %2249 = vmatprep.subr.bf16.mxu0 0
        %2250 = vmatpush1.bf16.xpose.msra.mxu0 0
        %2251 = vmatprep.subr.bf16.mxu0 0
        %2252 = vmatpush1.bf16.xpose.msra.mxu0 0
        %2253 = vmatprep.subr.bf16.mxu0 0
        %2254 = vmatpush1.bf16.xpose.msra.mxu0 %v2237
        %2255 = vmatprep.subr.bf16.mxu0 0
        %2256 = vmatpush2.bf16.xpose.msra.mxu0 0
        %2257 = vmatprep.subr.bf16.mxu0 0
        %2258 = vmatpush2.bf16.xpose.msra.mxu0 0
        %2259 = vmatprep.subr.bf16.mxu0 0
        %2260 = vmatpush2.bf16.xpose.msra.mxu0 0
        %2261 = vmatprep.subr.bf16.mxu0 0
        %2262 = vmatpush2.bf16.xpose.msra.mxu0 0
        %2263 = vmatprep.subr.bf16.mxu0 0
        %2264 = vmatpush2.bf16.xpose.msra.mxu0 0
        %2265 = vmatprep.subr.bf16.mxu0 0
        %2266 = vmatpush2.bf16.xpose.msra.mxu0 0
        %2267 = vmatprep.subr.bf16.mxu0 0
        %2268 = vmatpush2.bf16.xpose.msra.mxu0 0
        %2269 = vmatprep.subr.bf16.mxu0 0
        %2270 = vmatpush2.bf16.xpose.msra.mxu0 0
        %2271 = vmatprep.mubr.bf16.mxu0 0
        %2272 = vmatmul.mubr.bf16.gmra.mxu0 %v2234
        %v2273 = vpop.f32.mrf.mxu0
        %v2274 = vadd.f32 %v2176, %v2273
        %v2275 = vpop.f32.mrf.mxu0
        %v2276 = vpop.f32.mrf.mxu0
        %v2277 = vadd.f32 %v2177, %v2276
        %v2278 = vpop.f32.mrf.mxu0
        %2279 = vdwg.mxu0
        %2280 = vrot.lane.b32.xlu0 %v449, 104
        %v2281 = vpop.permute.xlu0 %2280
        %2282 = vrot.lane.b32.xlu0 %v449, 72
        %v2283 = vpop.permute.xlu0 %2282
        %v2285 = vsel %vm456, %v2281, 0
        %v2288 = vsel %vm456, %v2283, 0
        %2290 = vmatprep.subr.bf16.mxu0 0
        %2291 = vmatpush1.bf16.xpose.msra.mxu0 0
        %2292 = vmatprep.subr.bf16.mxu0 0
        %2293 = vmatpush1.bf16.xpose.msra.mxu0 0
        %2294 = vmatprep.subr.bf16.mxu0 0
        %2295 = vmatpush1.bf16.xpose.msra.mxu0 0
        %2296 = vmatprep.subr.bf16.mxu0 0
        %2297 = vmatpush1.bf16.xpose.msra.mxu0 0
        %2298 = vmatprep.subr.bf16.mxu0 0
        %2299 = vmatpush1.bf16.xpose.msra.mxu0 0
        %2300 = vmatprep.subr.bf16.mxu0 0
        %2301 = vmatpush1.bf16.xpose.msra.mxu0 0
        %2302 = vmatprep.subr.bf16.mxu0 0
        %2303 = vmatpush1.bf16.xpose.msra.mxu0 0
        %2304 = vmatprep.subr.bf16.mxu0 0
        %2305 = vmatpush1.bf16.xpose.msra.mxu0 %v2288
        %2306 = vmatprep.subr.bf16.mxu0 0
        %2307 = vmatpush2.bf16.xpose.msra.mxu0 0
        %2308 = vmatprep.subr.bf16.mxu0 0
        %2309 = vmatpush2.bf16.xpose.msra.mxu0 0
        %2310 = vmatprep.subr.bf16.mxu0 0
        %2311 = vmatpush2.bf16.xpose.msra.mxu0 0
        %2312 = vmatprep.subr.bf16.mxu0 0
        %2313 = vmatpush2.bf16.xpose.msra.mxu0 0
        %2314 = vmatprep.subr.bf16.mxu0 0
        %2315 = vmatpush2.bf16.xpose.msra.mxu0 0
        %2316 = vmatprep.subr.bf16.mxu0 0
        %2317 = vmatpush2.bf16.xpose.msra.mxu0 0
        %2318 = vmatprep.subr.bf16.mxu0 0
        %2319 = vmatpush2.bf16.xpose.msra.mxu0 0
        %2320 = vmatprep.subr.bf16.mxu0 0
        %2321 = vmatpush2.bf16.xpose.msra.mxu0 0
        %2322 = vmatprep.mubr.bf16.mxu0 0
        %2323 = vmatmul.mubr.bf16.gmra.mxu0 %v2285
        %v2324 = vpop.f32.mrf.mxu0
        %v2325 = vadd.f32 %v2176, %v2324
        %v2326 = vpop.f32.mrf.mxu0
        %v2327 = vpop.f32.mrf.mxu0
        %v2328 = vadd.f32 %v2177, %v2327
        %v2329 = vpop.f32.mrf.mxu0
        %2330 = vdwg.mxu0
        %2331 = vrot.lane.b32.xlu0 %v450, 104
        %v2332 = vpop.permute.xlu0 %2331
        %2333 = vrot.lane.b32.xlu0 %v450, 72
        %v2334 = vpop.permute.xlu0 %2333
        %v2336 = vsel %vm456, %v2332, 0
        %v2339 = vsel %vm456, %v2334, 0
        %2341 = vmatprep.subr.bf16.mxu0 0
        %2342 = vmatpush1.bf16.xpose.msra.mxu0 0
        %2343 = vmatprep.subr.bf16.mxu0 0
        %2344 = vmatpush1.bf16.xpose.msra.mxu0 0
        %2345 = vmatprep.subr.bf16.mxu0 0
        %2346 = vmatpush1.bf16.xpose.msra.mxu0 0
        %2347 = vmatprep.subr.bf16.mxu0 0
        %2348 = vmatpush1.bf16.xpose.msra.mxu0 0
        %2349 = vmatprep.subr.bf16.mxu0 0
        %2350 = vmatpush1.bf16.xpose.msra.mxu0 0
        %2351 = vmatprep.subr.bf16.mxu0 0
        %2352 = vmatpush1.bf16.xpose.msra.mxu0 0
        %2353 = vmatprep.subr.bf16.mxu0 0
        %2354 = vmatpush1.bf16.xpose.msra.mxu0 0
        %2355 = vmatprep.subr.bf16.mxu0 0
        %2356 = vmatpush1.bf16.xpose.msra.mxu0 %v2339
        %2357 = vmatprep.subr.bf16.mxu0 0
        %2358 = vmatpush2.bf16.xpose.msra.mxu0 0
        %2359 = vmatprep.subr.bf16.mxu0 0
        %2360 = vmatpush2.bf16.xpose.msra.mxu0 0
        %2361 = vmatprep.subr.bf16.mxu0 0
        %2362 = vmatpush2.bf16.xpose.msra.mxu0 0
        %2363 = vmatprep.subr.bf16.mxu0 0
        %2364 = vmatpush2.bf16.xpose.msra.mxu0 0
        %2365 = vmatprep.subr.bf16.mxu0 0
        %2366 = vmatpush2.bf16.xpose.msra.mxu0 0
        %2367 = vmatprep.subr.bf16.mxu0 0
        %2368 = vmatpush2.bf16.xpose.msra.mxu0 0
        %2369 = vmatprep.subr.bf16.mxu0 0
        %2370 = vmatpush2.bf16.xpose.msra.mxu0 0
        %2371 = vmatprep.subr.bf16.mxu0 0
        %2372 = vmatpush2.bf16.xpose.msra.mxu0 0
        %2373 = vmatprep.mubr.bf16.mxu0 0
        %2374 = vmatmul.mubr.bf16.gmra.mxu0 %v2336
        %v2375 = vpop.f32.mrf.mxu0
        %v2376 = vadd.f32 %v2176, %v2375
        %v2377 = vpop.f32.mrf.mxu0
        %v2378 = vpop.f32.mrf.mxu0
        %v2379 = vadd.f32 %v2177, %v2378
        %v2380 = vpop.f32.mrf.mxu0
        %2381 = vdwg.mxu0
        %v2382 = vsel %vm654, %v2223, -inf
        %2383 = vmax.xlane.f32.xlu0 %v2382
        %v2384 = vpop.xlane.xlu0 %2383
        %v2385 = vsel %vm654, %v2226, -inf
        %2386 = vmax.xlane.f32.xlu0 %v2385
        %v2387 = vpop.xlane.xlu0 %2386
        %v2388 = vsel %vm654, %v2274, -inf
        %2389 = vmax.xlane.f32.xlu0 %v2388
        %v2390 = vpop.xlane.xlu0 %2389
        %v2391 = vsel %vm654, %v2277, -inf
        %2392 = vmax.xlane.f32.xlu0 %v2391
        %v2393 = vpop.xlane.xlu0 %2392
        %v2394 = vsel %vm654, %v2325, -inf
        %2395 = vmax.xlane.f32.xlu0 %v2394
        %v2396 = vpop.xlane.xlu0 %2395
        %v2397 = vsel %vm654, %v2328, -inf
        %2398 = vmax.xlane.f32.xlu0 %v2397
        %v2399 = vpop.xlane.xlu0 %2398
        %v2400 = vsel %vm654, %v2376, -inf
        %2401 = vmax.xlane.f32.xlu0 %v2400
        %v2402 = vpop.xlane.xlu0 %2401
        %v2403 = vsel %vm654, %v2379, -inf
        %2404 = vmax.xlane.f32.xlu0 %v2403
        %v2405 = vpop.xlane.xlu0 %2404
        %v2406 = vsub.f32 %v2223, %v2384
        %v2407 = vsub.f32 %v2226, %v2387
        %v2408 = vsub.f32 %v2274, %v2390
        %v2409 = vsub.f32 %v2277, %v2393
        %v2410 = vsub.f32 %v2325, %v2396
        %v2411 = vsub.f32 %v2328, %v2399
        %v2412 = vsub.f32 %v2376, %v2402
        %v2413 = vsub.f32 %v2379, %v2405
        %v2414 = vmul.f32 %v2406, 1.442695
        %v2415 = vpow.pop %v2414
        %v2416 = vmul.f32 %v2407, 1.442695
        %v2417 = vpow.pop %v2416
        %v2418 = vmul.f32 %v2408, 1.442695
        %v2419 = vpow.pop %v2418
        %v2420 = vmul.f32 %v2409, 1.442695
        %v2421 = vpow.pop %v2420
        %v2422 = vmul.f32 %v2410, 1.442695
        %v2423 = vpow.pop %v2422
        %v2424 = vmul.f32 %v2411, 1.442695
        %v2425 = vpow.pop %v2424
        %v2426 = vmul.f32 %v2412, 1.442695
        %v2427 = vpow.pop %v2426
        %v2428 = vmul.f32 %v2413, 1.442695
        %v2429 = vpow.pop %v2428
        %v2430 = vsel %vm654, %v2415, 0.0
        %2431 = vadd.xlane.f32.xlu0 %v2430
        %v2432 = vpop.xlane.xlu0 %2431
        %v2433 = vsel %vm654, %v2417, 0.0
        %2434 = vadd.xlane.f32.xlu0 %v2433
        %v2435 = vpop.xlane.xlu0 %2434
        %v2436 = vsel %vm654, %v2419, 0.0
        %2437 = vadd.xlane.f32.xlu0 %v2436
        %v2438 = vpop.xlane.xlu0 %2437
        %v2439 = vsel %vm654, %v2421, 0.0
        %2440 = vadd.xlane.f32.xlu0 %v2439
        %v2441 = vpop.xlane.xlu0 %2440
        %v2442 = vsel %vm654, %v2423, 0.0
        %2443 = vadd.xlane.f32.xlu0 %v2442
        %v2444 = vpop.xlane.xlu0 %2443
        %v2445 = vsel %vm654, %v2425, 0.0
        %2446 = vadd.xlane.f32.xlu0 %v2445
        %v2447 = vpop.xlane.xlu0 %2446
        %v2448 = vsel %vm654, %v2427, 0.0
        %2449 = vadd.xlane.f32.xlu0 %v2448
        %v2450 = vpop.xlane.xlu0 %2449
        %v2451 = vsel %vm654, %v2429, 0.0
        %2452 = vadd.xlane.f32.xlu0 %v2451
        %v2453 = vpop.xlane.xlu0 %2452
        %v2454 = vrcp.pop %v2432
        %v2455 = vrcp.pop %v2435
        %v2456 = vrcp.pop %v2438
        %v2457 = vrcp.pop %v2441
        %v2458 = vrcp.pop %v2444
        %v2459 = vrcp.pop %v2447
        %v2460 = vrcp.pop %v2450
        %v2461 = vrcp.pop %v2453
        %v2462 = vmul.f32 %v2415, %v2454
        %v2463 = vmul.f32 %v2417, %v2455
        %v2464 = vmul.f32 %v2419, %v2456
        %v2465 = vmul.f32 %v2421, %v2457
        %v2466 = vmul.f32 %v2423, %v2458
        %v2467 = vmul.f32 %v2425, %v2459
        %v2468 = vmul.f32 %v2427, %v2460
        %v2469 = vmul.f32 %v2429, %v2461
        %v2470 = vpack.c.bf16 %v2463, %v2462
        %v2471 = vpack.c.bf16 %v2465, %v2464
        %v2472 = vpack.c.bf16 %v2467, %v2466
        %v2473 = vpack.c.bf16 %v2469, %v2468
        %2474 = vrot.lane.b32.xlu0 %v447, 40
        %v2475 = vpop.permute.xlu0 %2474
        %v2478 = vsel %vm654, %v2470, 0
        %2480 = vmatprep.subr.bf16.mxu0 0
        %2481 = vmatpush1.bf16.msra.mxu0 0
        %2482 = vmatprep.subr.bf16.mxu0 0
        %2483 = vmatpush1.bf16.msra.mxu0 0
        %2484 = vmatprep.subr.bf16.mxu0 0
        %2485 = vmatpush1.bf16.msra.mxu0 0
        %2486 = vmatprep.subr.bf16.mxu0 0
        %2487 = vmatpush1.bf16.msra.mxu0 0
        %2488 = vmatprep.subr.bf16.mxu0 0
        %2489 = vmatpush1.bf16.msra.mxu0 0
        %2490 = vmatprep.subr.bf16.mxu0 0
        %2491 = vmatpush1.bf16.msra.mxu0 0
        %2492 = vmatprep.subr.bf16.mxu0 0
        %2493 = vmatpush1.bf16.msra.mxu0 0
        %2494 = vmatprep.subr.bf16.mxu0 0
        %2495 = vmatpush1.bf16.msra.mxu0 %v2475
        %2496 = vmatprep.subr.bf16.mxu0 0
        %2497 = vmatpush2.bf16.msra.mxu0 0
        %2498 = vmatprep.subr.bf16.mxu0 0
        %2499 = vmatpush2.bf16.msra.mxu0 0
        %2500 = vmatprep.subr.bf16.mxu0 0
        %2501 = vmatpush2.bf16.msra.mxu0 0
        %2502 = vmatprep.subr.bf16.mxu0 0
        %2503 = vmatpush2.bf16.msra.mxu0 0
        %2504 = vmatprep.subr.bf16.mxu0 0
        %2505 = vmatpush2.bf16.msra.mxu0 0
        %2506 = vmatprep.subr.bf16.mxu0 0
        %2507 = vmatpush2.bf16.msra.mxu0 0
        %2508 = vmatprep.subr.bf16.mxu0 0
        %2509 = vmatpush2.bf16.msra.mxu0 0
        %2510 = vmatprep.subr.bf16.mxu0 0
        %2511 = vmatpush2.bf16.msra.mxu0 0
        %2512 = vmatprep.mubr.bf16.mxu0 0
        %2513 = vmatmul.mubr.bf16.gmra.mxu0 %v2478
        %v2514 = vpop.f32.mrf.mxu0
        %v2515 = vadd.f32 0.0, %v2514
        %v2516 = vpop.f32.mrf.mxu0
        %v2517 = vpop.f32.mrf.mxu0
        %v2518 = vadd.f32 0.0, %v2517
        %v2519 = vpop.f32.mrf.mxu0
        %2520 = vdwg.mxu0
        %2521 = vrot.lane.b32.xlu0 %v448, 40
        %v2522 = vpop.permute.xlu0 %2521
        %v2525 = vsel %vm654, %v2471, 0
        %2527 = vmatprep.subr.bf16.mxu0 0
        %2528 = vmatpush1.bf16.msra.mxu0 0
        %2529 = vmatprep.subr.bf16.mxu0 0
        %2530 = vmatpush1.bf16.msra.mxu0 0
        %2531 = vmatprep.subr.bf16.mxu0 0
        %2532 = vmatpush1.bf16.msra.mxu0 0
        %2533 = vmatprep.subr.bf16.mxu0 0
        %2534 = vmatpush1.bf16.msra.mxu0 0
        %2535 = vmatprep.subr.bf16.mxu0 0
        %2536 = vmatpush1.bf16.msra.mxu0 0
        %2537 = vmatprep.subr.bf16.mxu0 0
        %2538 = vmatpush1.bf16.msra.mxu0 0
        %2539 = vmatprep.subr.bf16.mxu0 0
        %2540 = vmatpush1.bf16.msra.mxu0 0
        %2541 = vmatprep.subr.bf16.mxu0 0
        %2542 = vmatpush1.bf16.msra.mxu0 %v2522
        %2543 = vmatprep.subr.bf16.mxu0 0
        %2544 = vmatpush2.bf16.msra.mxu0 0
        %2545 = vmatprep.subr.bf16.mxu0 0
        %2546 = vmatpush2.bf16.msra.mxu0 0
        %2547 = vmatprep.subr.bf16.mxu0 0
        %2548 = vmatpush2.bf16.msra.mxu0 0
        %2549 = vmatprep.subr.bf16.mxu0 0
        %2550 = vmatpush2.bf16.msra.mxu0 0
        %2551 = vmatprep.subr.bf16.mxu0 0
        %2552 = vmatpush2.bf16.msra.mxu0 0
        %2553 = vmatprep.subr.bf16.mxu0 0
        %2554 = vmatpush2.bf16.msra.mxu0 0
        %2555 = vmatprep.subr.bf16.mxu0 0
        %2556 = vmatpush2.bf16.msra.mxu0 0
        %2557 = vmatprep.subr.bf16.mxu0 0
        %2558 = vmatpush2.bf16.msra.mxu0 0
        %2559 = vmatprep.mubr.bf16.mxu0 0
        %2560 = vmatmul.mubr.bf16.gmra.mxu0 %v2525
        %v2561 = vpop.f32.mrf.mxu0
        %v2562 = vadd.f32 0.0, %v2561
        %v2563 = vpop.f32.mrf.mxu0
        %v2564 = vpop.f32.mrf.mxu0
        %v2565 = vadd.f32 0.0, %v2564
        %v2566 = vpop.f32.mrf.mxu0
        %2567 = vdwg.mxu0
        %2568 = vrot.lane.b32.xlu0 %v449, 40
        %v2569 = vpop.permute.xlu0 %2568
        %v2572 = vsel %vm654, %v2472, 0
        %2574 = vmatprep.subr.bf16.mxu0 0
        %2575 = vmatpush1.bf16.msra.mxu0 0
        %2576 = vmatprep.subr.bf16.mxu0 0
        %2577 = vmatpush1.bf16.msra.mxu0 0
        %2578 = vmatprep.subr.bf16.mxu0 0
        %2579 = vmatpush1.bf16.msra.mxu0 0
        %2580 = vmatprep.subr.bf16.mxu0 0
        %2581 = vmatpush1.bf16.msra.mxu0 0
        %2582 = vmatprep.subr.bf16.mxu0 0
        %2583 = vmatpush1.bf16.msra.mxu0 0
        %2584 = vmatprep.subr.bf16.mxu0 0
        %2585 = vmatpush1.bf16.msra.mxu0 0
        %2586 = vmatprep.subr.bf16.mxu0 0
        %2587 = vmatpush1.bf16.msra.mxu0 0
        %2588 = vmatprep.subr.bf16.mxu0 0
        %2589 = vmatpush1.bf16.msra.mxu0 %v2569
        %2590 = vmatprep.subr.bf16.mxu0 0
        %2591 = vmatpush2.bf16.msra.mxu0 0
        %2592 = vmatprep.subr.bf16.mxu0 0
        %2593 = vmatpush2.bf16.msra.mxu0 0
        %2594 = vmatprep.subr.bf16.mxu0 0
        %2595 = vmatpush2.bf16.msra.mxu0 0
        %2596 = vmatprep.subr.bf16.mxu0 0
        %2597 = vmatpush2.bf16.msra.mxu0 0
        %2598 = vmatprep.subr.bf16.mxu0 0
        %2599 = vmatpush2.bf16.msra.mxu0 0
        %2600 = vmatprep.subr.bf16.mxu0 0
        %2601 = vmatpush2.bf16.msra.mxu0 0
        %2602 = vmatprep.subr.bf16.mxu0 0
        %2603 = vmatpush2.bf16.msra.mxu0 0
        %2604 = vmatprep.subr.bf16.mxu0 0
        %2605 = vmatpush2.bf16.msra.mxu0 0
        %2606 = vmatprep.mubr.bf16.mxu0 0
        %2607 = vmatmul.mubr.bf16.gmra.mxu0 %v2572
        %v2608 = vpop.f32.mrf.mxu0
        %v2609 = vadd.f32 0.0, %v2608
        %v2610 = vpop.f32.mrf.mxu0
        %v2611 = vpop.f32.mrf.mxu0
        %v2612 = vadd.f32 0.0, %v2611
        %v2613 = vpop.f32.mrf.mxu0
        %2614 = vdwg.mxu0
        %2615 = vrot.lane.b32.xlu0 %v450, 40
        %v2616 = vpop.permute.xlu0 %2615
        %v2619 = vsel %vm654, %v2473, 0
        %2621 = vmatprep.subr.bf16.mxu0 0
        %2622 = vmatpush1.bf16.msra.mxu0 0
        %2623 = vmatprep.subr.bf16.mxu0 0
        %2624 = vmatpush1.bf16.msra.mxu0 0
        %2625 = vmatprep.subr.bf16.mxu0 0
        %2626 = vmatpush1.bf16.msra.mxu0 0
        %2627 = vmatprep.subr.bf16.mxu0 0
        %2628 = vmatpush1.bf16.msra.mxu0 0
        %2629 = vmatprep.subr.bf16.mxu0 0
        %2630 = vmatpush1.bf16.msra.mxu0 0
        %2631 = vmatprep.subr.bf16.mxu0 0
        %2632 = vmatpush1.bf16.msra.mxu0 0
        %2633 = vmatprep.subr.bf16.mxu0 0
        %2634 = vmatpush1.bf16.msra.mxu0 0
        %2635 = vmatprep.subr.bf16.mxu0 0
        %2636 = vmatpush1.bf16.msra.mxu0 %v2616
        %2637 = vmatprep.subr.bf16.mxu0 0
        %2638 = vmatpush2.bf16.msra.mxu0 0
        %2639 = vmatprep.subr.bf16.mxu0 0
        %2640 = vmatpush2.bf16.msra.mxu0 0
        %2641 = vmatprep.subr.bf16.mxu0 0
        %2642 = vmatpush2.bf16.msra.mxu0 0
        %2643 = vmatprep.subr.bf16.mxu0 0
        %2644 = vmatpush2.bf16.msra.mxu0 0
        %2645 = vmatprep.subr.bf16.mxu0 0
        %2646 = vmatpush2.bf16.msra.mxu0 0
        %2647 = vmatprep.subr.bf16.mxu0 0
        %2648 = vmatpush2.bf16.msra.mxu0 0
        %2649 = vmatprep.subr.bf16.mxu0 0
        %2650 = vmatpush2.bf16.msra.mxu0 0
        %2651 = vmatprep.subr.bf16.mxu0 0
        %2652 = vmatpush2.bf16.msra.mxu0 0
        %2653 = vmatprep.mubr.bf16.mxu0 0
        %2654 = vmatmul.mubr.bf16.gmra.mxu0 %v2619
        %v2655 = vpop.f32.mrf.mxu0
        %v2656 = vadd.f32 0.0, %v2655
        %v2657 = vpop.f32.mrf.mxu0
        %v2658 = vpop.f32.mrf.mxu0
        %v2659 = vadd.f32 0.0, %v2658
        %v2660 = vpop.f32.mrf.mxu0
        %2661 = vdwg.mxu0
        %v2662 = vpack.c.bf16 %v2518, %v2515
        %v2663 = vpack.c.bf16 %v2565, %v2562
        %v2664 = vpack.c.bf16 %v2612, %v2609
        %v2665 = vpack.c.bf16 %v2659, %v2656
        %s2666 = scalar_lea.vmem [#allocation8], 12
        %v2667 = vld [vmem:[%s2666] sm:$0xf]
        %v2669 = vsel %vm456, %v2662, 0
        %v2672 = vsel %vm456, %v2663, 0
        %v2675 = vsel %vm456, %v2664, 0
        %v2678 = vsel %vm456, %v2665, 0
        %v2681 = vsel %vm1445, %v2667, 0
        %2683 = vmatprep.subr.bf16.mxu0 0
        %2684 = vmatpush1.bf16.msra.mxu0 0
        %2685 = vmatprep.subr.bf16.mxu0 0
        %2686 = vmatpush1.bf16.msra.mxu0 0
        %2687 = vmatprep.subr.bf16.mxu0 0
        %2688 = vmatpush1.bf16.msra.mxu0 0
        %2689 = vmatprep.subr.bf16.mxu0 0
        %2690 = vmatpush1.bf16.msra.mxu0 0
        %2691 = vmatprep.subr.bf16.mxu0 0
        %2692 = vmatpush1.bf16.msra.mxu0 0
        %2693 = vmatprep.subr.bf16.mxu0 0
        %2694 = vmatpush1.bf16.msra.mxu0 0
        %2695 = vmatprep.subr.bf16.mxu0 0
        %2696 = vmatpush1.bf16.msra.mxu0 0
        %2697 = vmatprep.subr.bf16.mxu0 0
        %2698 = vmatpush1.bf16.msra.mxu0 %v2681
        %2699 = vmatprep.subr.bf16.mxu0 0
        %2700 = vmatpush2.bf16.msra.mxu0 0
        %2701 = vmatprep.subr.bf16.mxu0 0
        %2702 = vmatpush2.bf16.msra.mxu0 0
        %2703 = vmatprep.subr.bf16.mxu0 0
        %2704 = vmatpush2.bf16.msra.mxu0 0
        %2705 = vmatprep.subr.bf16.mxu0 0
        %2706 = vmatpush2.bf16.msra.mxu0 0
        %2707 = vmatprep.subr.bf16.mxu0 0
        %2708 = vmatpush2.bf16.msra.mxu0 0
        %2709 = vmatprep.subr.bf16.mxu0 0
        %2710 = vmatpush2.bf16.msra.mxu0 0
        %2711 = vmatprep.subr.bf16.mxu0 0
        %2712 = vmatpush2.bf16.msra.mxu0 0
        %2713 = vmatprep.subr.bf16.mxu0 0
        %2714 = vmatpush2.bf16.msra.mxu0 0
        %2715 = vmatprep.mubr.bf16.mxu0 0
        %2716 = vmatmul.mubr.bf16.gmra.mxu0 %v2669
        %v2717 = vpop.f32.mrf.mxu0
        %v2718 = vadd.f32 0.0, %v2717
        %v2719 = vpop.f32.mrf.mxu0
        %v2720 = vpop.f32.mrf.mxu0
        %v2721 = vadd.f32 0.0, %v2720
        %v2722 = vpop.f32.mrf.mxu0
        %2723 = vmatprep.mubr.bf16.mxu0 0
        %2724 = vmatmul.mubr.bf16.gmra.mxu0 %v2672
        %v2725 = vpop.f32.mrf.mxu0
        %v2726 = vadd.f32 0.0, %v2725
        %v2727 = vpop.f32.mrf.mxu0
        %v2728 = vpop.f32.mrf.mxu0
        %v2729 = vadd.f32 0.0, %v2728
        %v2730 = vpop.f32.mrf.mxu0
        %2731 = vmatprep.mubr.bf16.mxu0 0
        %2732 = vmatmul.mubr.bf16.gmra.mxu0 %v2675
        %v2733 = vpop.f32.mrf.mxu0
        %v2734 = vadd.f32 0.0, %v2733
        %v2735 = vpop.f32.mrf.mxu0
        %v2736 = vpop.f32.mrf.mxu0
        %v2737 = vadd.f32 0.0, %v2736
        %v2738 = vpop.f32.mrf.mxu0
        %2739 = vmatprep.mubr.bf16.mxu0 0
        %2740 = vmatmul.mubr.bf16.gmra.mxu0 %v2678
        %v2741 = vpop.f32.mrf.mxu0
        %v2742 = vadd.f32 0.0, %v2741
        %v2743 = vpop.f32.mrf.mxu0
        %v2744 = vpop.f32.mrf.mxu0
        %v2745 = vadd.f32 0.0, %v2744
        %v2746 = vpop.f32.mrf.mxu0
        %2747 = vdwg.mxu0
        %v2748 = vadd.f32 %v2167, %v2718
        %v2749 = vadd.f32 %v2168, %v2721
        %v2750 = vadd.f32 %v2169, %v2726
        %v2751 = vadd.f32 %v2170, %v2729
        %v2752 = vadd.f32 %v2171, %v2734
        %v2753 = vadd.f32 %v2172, %v2737
        %v2754 = vadd.f32 %v2173, %v2742
        %v2755 = vadd.f32 %v2174, %v2745
        %v2756 = vld [vmem:[%s5] sm:$0x1]
        %v2758 = vlaneseq
        %v2759 = vshrl.u32 %v2758, 7
        %v2760 = vsub.s32 0, %v2759
        %v2761 = vrot.slane %v2756, %v2760
        %v2763 = vadd.f32 %v2748, %v2761
        %v2764 = vadd.f32 %v2749, %v2761
        %v2765 = vadd.f32 %v2750, %v2761
        %v2766 = vadd.f32 %v2751, %v2761
        %v2767 = vadd.f32 %v2752, %v2761
        %v2768 = vadd.f32 %v2753, %v2761
        %v2769 = vadd.f32 %v2754, %v2761
        %v2770 = vadd.f32 %v2755, %v2761
        %2771 = vst.msk [vmem:[%s314] sm:$0xff] %vm369, %v2763
        %2772 = vst.msk [vmem:[%s314 + $0x8] sm:$0xff] %vm369, %v2764
        %2773 = vst.msk [vmem:[%s314 + $0x10] sm:$0xff] %vm369, %v2765
        %2774 = vst.msk [vmem:[%s314 + $0x18] sm:$0xff] %vm369, %v2766
        %2775 = vst.msk [vmem:[%s314 + $0x20] sm:$0xff] %vm369, %v2767
        %2776 = vst.msk [vmem:[%s314 + $0x28] sm:$0xff] %vm369, %v2768
        %2777 = vst.msk [vmem:[%s314 + $0x30] sm:$0xff] %vm369, %v2769
        %2778 = vst.msk [vmem:[%s314 + $0x38] sm:$0xff] %vm369, %v2770
        %s2779 = sand.u32 %s164, 1
        %s2780 = scalar_lea.sflag [#allocation4], %s2779
        %s2781 = sand.u32 %s164, 1
        %s2782 = smul.addr %s2781, 64
        %s2783 = scalar_lea.vmem [#allocation10], %s2782
        // Predicated region
        $region61: #{tpu_custom_call.1} parent=43 // pred_check
          %p2784 = pneg %p174
        $region62: #{tpu_custom_call.1} parent=43 // pred_check_branch
          %2786 = sbr.rel (%p2784) target = $region64
        $region63: #{tpu_custom_call.1} parent=43 // pred_region
          %s2787 = smul.u32 4, %s25
          %s2789 = ssub.s32 1024, 1024
          %2790 = vsyncadd %s2780, %s2789
          %s2791 = smul.addr %s2787, 2
          %s2792 = smul.addr %s2791, 128
          %s2793 = scalar_lea.hbm %s6, %s2792
          %s2794 = sshll.u32 %s2783, 4
          %s2795 = int_to_ptr.vmem [resolvable:$true] %s2794
          %2800 = dma.vmem_to_hbm [thread:$0]  %s2795, 1024, %s2793, %s2780, 128, 128, 8
        $region64: #{tpu_custom_call.1} parent=43 // pred_fallthru
          _
      $region44: #{tpu_custom_call.1} parent=5 // pred_fallthru
        _
      %p2801 = scmp.le.s32.totalorder 2, %s20
      // Predicated region
      $region65: #{tpu_custom_call.1} parent=5 // pred_check
        %p2802 = pneg %p2801
      $region66: #{tpu_custom_call.1} parent=5 // pred_check_branch
        %2804 = sbr.rel (%p2802) target = $region68
      $region67: #{tpu_custom_call.1} parent=5 // pred_region
        %s2805 = ssub.s32 %s20, 2
        // Predicated region
        $region69: #{tpu_custom_call.1} parent=67 // pred_check
          %p2806 = pneg %p180
        $region70: #{tpu_custom_call.1} parent=67 // pred_check_branch
          %2808 = sbr.rel (%p2806) target = $region72
        $region71: #{tpu_custom_call.1} parent=67 // pred_region
          %s2809 = sand.u32 %s165, 1
          %s2810 = scalar_lea.sflag [#allocation4], %s2809
          %s2811 = sand.u32 %s165, 1
          %s2812 = smul.addr %s2811, 64
          %s2813 = scalar_lea.vmem [#allocation10], %s2812
          %2814 = dma.done %s2810, 1024
        $region72: #{tpu_custom_call.1} parent=67 // pred_fallthru
          _
      $region68: #{tpu_custom_call.1} parent=5 // pred_fallthru
        _
    $region6: #{tpu_custom_call.1} parent=1 // loop_footer
      %s24 = sadd.s32 1, %s20
    $region7: #{tpu_custom_call.1} parent=1 // loop_footer_branch
      %19 = sbr.rel target = $region3
    $region8: #{tpu_custom_call.1} parent=1 // loop_exit
      _
    %2815 = vsyncpa [#allocation3], 1
    %s2816 = scalar_lea.sflag [#allocation3], 1
    %2817 = vsyncpa %s2816, 1
    %2818 = vsyncpa [#allocation6], 1
    %2819 = vsyncpa [#allocation9], 1
    %2820 = vsyncpa [#allocation4], 1
    %s2821 = scalar_lea.sflag [#allocation4], 1
    %2822 = vsyncpa %s2821, 1

</llo_original>
